<compile_context>
chip_gen: v7x
topology: tpu7x:2x2x1
jax: 0.10.0
libtpu: 0.0.40
codegen_flags: <defaults>
</compile_context>

<pallas_src>
import math

import jax
import jax.numpy as jnp
from jax.experimental import pallas as pl
from jax.experimental.pallas import tpu as pltpu

# ----------------------------- small synthetic config -----------------------
VOCAB = 128
D_MODEL = 32
N_HEADS = 4
D_HEAD = 8            # N_HEADS * D_HEAD == inner attention dim (here == D_MODEL)
D_INNER = N_HEADS * D_HEAD
D_FF = 64
N_LAYERS = 2
EPS = 1e-6
REL_BUCKETS = 32
REL_MAX_DIST = 128


# ----------------------------- in-kernel helpers -----------------------------
def _rms_norm(x, w):
    # T5 LayerNorm: no mean subtraction, no bias.
    xf = x.astype(jnp.float32)
    var = jnp.mean(xf * xf, axis=-1, keepdims=True)
    return (xf * jax.lax.rsqrt(var + EPS)) * w


def _bf16(x):
    return x.astype(jnp.bfloat16)


# ----------------------------- fused Pallas kernel ---------------------------
def fused_encoder_kernel(x_ref, bias_ref,
                         ln1_ref, wq_ref, wk_ref, wv_ref, wo_ref,
                         ln2_ref, wi_ref, wff_ref, lnf_ref,
                         o_ref):
    """Full encoder stack + final RMSNorm + mean pool for one batch element."""
    S = x_ref.shape[1]
    x = x_ref[0].astype(jnp.float32)          # (S, D)
    bias = bias_ref[0]                        # (H, S, S) combined rel-pos + mask bias

    for l in range(N_LAYERS):                 # static unroll; weight refs indexed on
        # ---- self attention (pre-RMSNorm, no 1/sqrt(d) scaling: T5) ---------  leading dim
        h = _rms_norm(x, ln1_ref[l])                                        # (S, D) f32
        hb = jnp.broadcast_to(_bf16(h)[None], (N_HEADS, S, D_MODEL))        # (H, S, D)
        q = jnp.einsum('hsd,hde->hse', hb, _bf16(wq_ref[l]),
                       preferred_element_type=jnp.float32)                  # (H, S, Dh)
        k = jnp.einsum('hsd,hde->hse', hb, _bf16(wk_ref[l]),
                       preferred_element_type=jnp.float32)
        v = jnp.einsum('hsd,hde->hse', hb, _bf16(wv_ref[l]),
                       preferred_element_type=jnp.float32)

        scores = jnp.einsum('hqe,hke->hqk', _bf16(q), _bf16(k),
                            preferred_element_type=jnp.float32) + bias      # (H, S, S)
        scores = scores - jnp.max(scores, axis=-1, keepdims=True)
        p = jnp.exp(scores)
        p = p * pl.reciprocal(jnp.sum(p, axis=-1, keepdims=True), approx=True)

        ctx = jnp.einsum('hqk,hke->hqe', _bf16(p), _bf16(v),
                         preferred_element_type=jnp.float32)                # (H, S, Dh)
        attn = jnp.einsum('hqe,hed->hqd', _bf16(ctx), _bf16(wo_ref[l]),
                          preferred_element_type=jnp.float32)               # (H, S, D)
        x = x + jnp.sum(attn, axis=0)

        # ---- feed forward (DenseReluDense) ----------------------------------
        h2 = _rms_norm(x, ln2_ref[l])
        ff = jnp.dot(_bf16(h2), _bf16(wi_ref[l]),
                     preferred_element_type=jnp.float32)                    # (S, D_FF)
        ff = jnp.maximum(ff, 0.0)
        ff = jnp.dot(_bf16(ff), _bf16(wff_ref[l]),
                     preferred_element_type=jnp.float32)                    # (S, D)
        x = x + ff

    # ---- final RMSNorm + unmasked mean over sequence (== .mean(dim=1)) ------
    hf = _rms_norm(x, lnf_ref[...])                                         # (S, D)
    o_ref[0] = jnp.mean(hf, axis=0, keepdims=True).astype(o_ref.dtype)      # (1, D)


# ----------------------------- wrapper ---------------------------------------
def protein_encoder_pallas(x, bias, params):
    B, S, D = x.shape
    L = N_LAYERS
    out = pl.pallas_call(
        fused_encoder_kernel,
        out_shape=jax.ShapeDtypeStruct((B, 1, D), jnp.float32),
        grid=(B,),
        in_specs=[
            pl.BlockSpec((1, S, D), lambda b: (b, 0, 0)),                   # x
            pl.BlockSpec((1, N_HEADS, S, S), lambda b: (b, 0, 0, 0)),       # combined bias
            pl.BlockSpec((L, 1, D), lambda b: (0, 0, 0)),                   # ln1 (stacked)
            pl.BlockSpec((L, N_HEADS, D, D_HEAD), lambda b: (0, 0, 0, 0)),  # Wq
            pl.BlockSpec((L, N_HEADS, D, D_HEAD), lambda b: (0, 0, 0, 0)),  # Wk
            pl.BlockSpec((L, N_HEADS, D, D_HEAD), lambda b: (0, 0, 0, 0)),  # Wv
            pl.BlockSpec((L, N_HEADS, D_HEAD, D), lambda b: (0, 0, 0, 0)),  # Wo
            pl.BlockSpec((L, 1, D), lambda b: (0, 0, 0)),                   # ln2 (stacked)
            pl.BlockSpec((L, D, D_FF), lambda b: (0, 0, 0)),                # Wi
            pl.BlockSpec((L, D_FF, D), lambda b: (0, 0, 0)),                # Wff
            pl.BlockSpec((1, D), lambda b: (0, 0)),                         # final ln
        ],
        out_specs=pl.BlockSpec((1, 1, D), lambda b: (b, 0, 0)),
        compiler_params=pltpu.CompilerParams(dimension_semantics=("parallel",)),
    )(x, bias, params["ln1"], params["wq"], params["wk"], params["wv"],
      params["wo"], params["ln2"], params["wi"], params["wff"], params["ln_final"])
    return out[:, 0, :]                                                      # (B, D)


# ----------------------------- glue (plain JAX) -------------------------------
def relative_position_bucket(relative_position, num_buckets=REL_BUCKETS,
                             max_distance=REL_MAX_DIST):
    # HF T5 bidirectional bucketing.
    num_buckets //= 2
    relative_buckets = (relative_position > 0).astype(jnp.int32) * num_buckets
    n = jnp.abs(relative_position)
    max_exact = num_buckets // 2
    is_small = n < max_exact
    safe_n = jnp.maximum(n, 1).astype(jnp.float32)
    val_if_large = max_exact + (
        jnp.log(safe_n / max_exact) / math.log(max_distance / max_exact)
        * (num_buckets - max_exact)
    ).astype(jnp.int32)
    val_if_large = jnp.minimum(val_if_large, num_buckets - 1)
    relative_buckets += jnp.where(is_small, n, val_if_large)
    return relative_buckets


def compute_position_bias(rel_bias_table, seq_len):
    ctx = jnp.arange(seq_len)[:, None]       # query positions
    mem = jnp.arange(seq_len)[None, :]       # key positions
    buckets = relative_position_bucket(mem - ctx)             # (S, S)
    bias = rel_bias_table[buckets]                            # (S, S, H)
    return jnp.transpose(bias, (2, 0, 1)).astype(jnp.float32)  # (H, S, S)


def init_params(key):
    ks = jax.random.split(key, 8)
    scale_d = 1.0 / math.sqrt(D_MODEL)
    scale_i = 1.0 / math.sqrt(D_INNER)
    scale_f = 1.0 / math.sqrt(D_FF)
    return {
        "embedding": 0.02 * jax.random.normal(ks[0], (VOCAB, D_MODEL), jnp.float32),
        "rel_bias": 0.02 * jax.random.normal(ks[1], (REL_BUCKETS, N_HEADS), jnp.float32),
        "ln1": jnp.ones((N_LAYERS, 1, D_MODEL), jnp.float32),
        "wq": scale_d * jax.random.normal(ks[2], (N_LAYERS, N_HEADS, D_MODEL, D_HEAD), jnp.float32),
        "wk": scale_d * jax.random.normal(ks[3], (N_LAYERS, N_HEADS, D_MODEL, D_HEAD), jnp.float32),
        "wv": scale_d * jax.random.normal(ks[4], (N_LAYERS, N_HEADS, D_MODEL, D_HEAD), jnp.float32),
        "wo": scale_i * jax.random.normal(ks[5], (N_LAYERS, N_HEADS, D_HEAD, D_MODEL), jnp.float32),
        "ln2": jnp.ones((N_LAYERS, 1, D_MODEL), jnp.float32),
        "wi": scale_d * jax.random.normal(ks[6], (N_LAYERS, D_MODEL, D_FF), jnp.float32),
        "wff": scale_f * jax.random.normal(ks[7], (N_LAYERS, D_FF, D_MODEL), jnp.float32),
        "ln_final": jnp.ones((1, D_MODEL), jnp.float32),
    }


@jax.jit
def protein_encoder_forward(params, input_ids, attention_mask):
    B, S = input_ids.shape
    # embedding lookup (glue)
    x = jnp.take(params["embedding"], input_ids, axis=0).astype(jnp.float32)     # (B, S, D)
    # combined per-batch bias: relative-position bias + additive key mask (glue)
    mask_bias = (1.0 - attention_mask.astype(jnp.float32)) * -1e9                # (B, S)
    pos_bias = compute_position_bias(params["rel_bias"], S)                      # (H, S, S)
    bias = pos_bias[None, :, :, :] + mask_bias[:, None, None, :]                 # (B, H, S, S)
    # whole encoder stack + final norm + mean pool: one fused Pallas kernel
    return protein_encoder_pallas(x, bias, params)                               # (B, D)


if __name__ == "__main__":
    key = jax.random.PRNGKey(0)
    k_params, k_ids = jax.random.split(key)
    params = init_params(k_params)

    B, S = 2, 8
    input_ids = jax.random.randint(k_ids, (B, S), 0, VOCAB, dtype=jnp.int32)
    attention_mask = jnp.ones((B, S), jnp.int32).at[1, 6:].set(0)    # ragged lengths

    out = protein_encoder_forward(params, input_ids, attention_mask)
    out = jax.block_until_ready(out)
    assert out.shape == (B, D_MODEL), out.shape
    assert bool(jnp.all(jnp.isfinite(out)))
    print("KERNEL_OK")
</pallas_src>

<mosaic_0001>
module attributes {stable_mosaic.version = 11 : i64} {
  func.func @fused_encoder_kernel(%arg0: i32, %arg1: memref<1x8x32xf32, #tpu.memory_space<vmem>>, %arg2: memref<1x4x8x8xf32, #tpu.memory_space<vmem>>, %arg3: memref<2x1x32xf32, #tpu.memory_space<vmem>>, %arg4: memref<2x4x32x8xf32, #tpu.memory_space<vmem>>, %arg5: memref<2x4x32x8xf32, #tpu.memory_space<vmem>>, %arg6: memref<2x4x32x8xf32, #tpu.memory_space<vmem>>, %arg7: memref<2x4x8x32xf32, #tpu.memory_space<vmem>>, %arg8: memref<2x1x32xf32, #tpu.memory_space<vmem>>, %arg9: memref<2x32x64xf32, #tpu.memory_space<vmem>>, %arg10: memref<2x64x32xf32, #tpu.memory_space<vmem>>, %arg11: memref<1x32xf32, #tpu.memory_space<vmem>>, %arg12: memref<1x1x32xf32, #tpu.memory_space<vmem>>) attributes {dimension_semantics = [#tpu.dimension_semantics<parallel>], iteration_bounds = array<i64: 2>, scalar_prefetch = 0 : i64, scratch_operands = 0 : i64, tpu.core_type = #tpu.core_type<tc>, window_params = [{transform_indices = @transform_0, window_bounds = array<i64: 1, 8, 32>}, {transform_indices = @transform_1, window_bounds = array<i64: 1, 4, 8, 8>}, {pipeline_mode = #tpu.pipeline_mode<synchronous>, transform_indices = @transform_2, window_bounds = array<i64: 2, 1, 32>}, {pipeline_mode = #tpu.pipeline_mode<synchronous>, transform_indices = @transform_3, window_bounds = array<i64: 2, 4, 32, 8>}, {pipeline_mode = #tpu.pipeline_mode<synchronous>, transform_indices = @transform_4, window_bounds = array<i64: 2, 4, 32, 8>}, {pipeline_mode = #tpu.pipeline_mode<synchronous>, transform_indices = @transform_5, window_bounds = array<i64: 2, 4, 32, 8>}, {pipeline_mode = #tpu.pipeline_mode<synchronous>, transform_indices = @transform_6, window_bounds = array<i64: 2, 4, 8, 32>}, {pipeline_mode = #tpu.pipeline_mode<synchronous>, transform_indices = @transform_7, window_bounds = array<i64: 2, 1, 32>}, {pipeline_mode = #tpu.pipeline_mode<synchronous>, transform_indices = @transform_8, window_bounds = array<i64: 2, 32, 64>}, {pipeline_mode = #tpu.pipeline_mode<synchronous>, transform_indices = @transform_9, window_bounds = array<i64: 2, 64, 32>}, {pipeline_mode = #tpu.pipeline_mode<synchronous>, transform_indices = @transform_10, window_bounds = array<i64: 1, 32>}, {transform_indices = @transform_11, window_bounds = array<i64: 1, 1, 32>}]} {
    %c0 = arith.constant 0 : index
    %c0_0 = arith.constant 0 : index
    %c0_1 = arith.constant 0 : index
    %0 = vector.load %arg1[%c0, %c0_0, %c0_1] : memref<1x8x32xf32, #tpu.memory_space<vmem>>, vector<1x8x32xf32>
    %1 = vector.shape_cast %0 : vector<1x8x32xf32> to vector<8x32xf32>
    %c0_2 = arith.constant 0 : index
    %c0_3 = arith.constant 0 : index
    %c0_4 = arith.constant 0 : index
    %c0_5 = arith.constant 0 : index
    %2 = vector.load %arg2[%c0_2, %c0_3, %c0_4, %c0_5] : memref<1x4x8x8xf32, #tpu.memory_space<vmem>>, vector<1x4x8x8xf32>
    %3 = vector.shape_cast %2 : vector<1x4x8x8xf32> to vector<4x8x8xf32>
    %c0_6 = arith.constant 0 : index
    %c0_7 = arith.constant 0 : index
    %c0_8 = arith.constant 0 : index
    %4 = vector.load %arg3[%c0_6, %c0_7, %c0_8] : memref<2x1x32xf32, #tpu.memory_space<vmem>>, vector<1x1x32xf32>
    %5 = vector.shape_cast %4 : vector<1x1x32xf32> to vector<1x32xf32>
    %6 = arith.mulf %1, %1 : vector<8x32xf32>
    %cst = arith.constant dense<0.000000e+00> : vector<8xf32>
    %7 = vector.multi_reduction <add>, %6, %cst [1] : vector<8x32xf32> to vector<8xf32>
    %8 = vector.shape_cast %7 : vector<8xf32> to vector<8x1xf32>
    %cst_9 = arith.constant 3.200000e+01 : f32
    %9 = vector.broadcast %cst_9 : f32 to vector<8x1xf32>
    %10 = arith.divf %8, %9 : vector<8x1xf32>
    %cst_10 = arith.constant 9.99999997E-7 : f32
    %11 = vector.broadcast %cst_10 : f32 to vector<8x1xf32>
    %12 = arith.addf %10, %11 : vector<8x1xf32>
    %13 = math.rsqrt %12 : vector<8x1xf32>
    %14 = vector.broadcast %13 : vector<8x1xf32> to vector<8x32xf32>
    %15 = arith.mulf %1, %14 : vector<8x32xf32>
    %16 = vector.broadcast %5 : vector<1x32xf32> to vector<8x32xf32>
    %17 = arith.mulf %15, %16 : vector<8x32xf32>
    %18 = arith.truncf %17 : vector<8x32xf32> to vector<8x32xbf16>
    %19 = vector.shape_cast %18 : vector<8x32xbf16> to vector<1x8x32xbf16>
    %20 = vector.shape_cast %19 : vector<1x8x32xbf16> to vector<1x8x32xbf16>
    %21 = vector.broadcast %20 : vector<1x8x32xbf16> to vector<4x8x32xbf16>
    %c0_11 = arith.constant 0 : index
    %c0_12 = arith.constant 0 : index
    %c0_13 = arith.constant 0 : index
    %c0_14 = arith.constant 0 : index
    %22 = vector.load %arg4[%c0_11, %c0_12, %c0_13, %c0_14] : memref<2x4x32x8xf32, #tpu.memory_space<vmem>>, vector<1x4x32x8xf32>
    %23 = vector.shape_cast %22 : vector<1x4x32x8xf32> to vector<4x32x8xf32>
    %24 = arith.truncf %23 : vector<4x32x8xf32> to vector<4x32x8xbf16>
    "tpu.trace_start"() <{level = 10 : i32, message = "hsd,hde->hse"}> : () -> ()
    %cst_15 = arith.constant dense<0.000000e+00> : vector<4x8x8xf32>
    %25 = tpu.matmul %21, %24, %cst_15 {dimension_numbers = #tpu.dot_dimension_numbers<[2], [1], [1], [2], [0, 0, 0, 1, 1, 2], [0], [0]>} : vector<4x8x32xbf16>, vector<4x32x8xbf16>, vector<4x8x8xf32> -> vector<4x8x8xf32>
    "tpu.trace_stop"() : () -> ()
    %c0_16 = arith.constant 0 : index
    %c0_17 = arith.constant 0 : index
    %c0_18 = arith.constant 0 : index
    %c0_19 = arith.constant 0 : index
    %26 = vector.load %arg5[%c0_16, %c0_17, %c0_18, %c0_19] : memref<2x4x32x8xf32, #tpu.memory_space<vmem>>, vector<1x4x32x8xf32>
    %27 = vector.shape_cast %26 : vector<1x4x32x8xf32> to vector<4x32x8xf32>
    %28 = arith.truncf %27 : vector<4x32x8xf32> to vector<4x32x8xbf16>
    "tpu.trace_start"() <{level = 10 : i32, message = "hsd,hde->hse"}> : () -> ()
    %cst_20 = arith.constant dense<0.000000e+00> : vector<4x8x8xf32>
    %29 = tpu.matmul %21, %28, %cst_20 {dimension_numbers = #tpu.dot_dimension_numbers<[2], [1], [1], [2], [0, 0, 0, 1, 1, 2], [0], [0]>} : vector<4x8x32xbf16>, vector<4x32x8xbf16>, vector<4x8x8xf32> -> vector<4x8x8xf32>
    "tpu.trace_stop"() : () -> ()
    %c0_21 = arith.constant 0 : index
    %c0_22 = arith.constant 0 : index
    %c0_23 = arith.constant 0 : index
    %c0_24 = arith.constant 0 : index
    %30 = vector.load %arg6[%c0_21, %c0_22, %c0_23, %c0_24] : memref<2x4x32x8xf32, #tpu.memory_space<vmem>>, vector<1x4x32x8xf32>
    %31 = vector.shape_cast %30 : vector<1x4x32x8xf32> to vector<4x32x8xf32>
    %32 = arith.truncf %31 : vector<4x32x8xf32> to vector<4x32x8xbf16>
    "tpu.trace_start"() <{level = 10 : i32, message = "hsd,hde->hse"}> : () -> ()
    %cst_25 = arith.constant dense<0.000000e+00> : vector<4x8x8xf32>
    %33 = tpu.matmul %21, %32, %cst_25 {dimension_numbers = #tpu.dot_dimension_numbers<[2], [1], [1], [2], [0, 0, 0, 1, 1, 2], [0], [0]>} : vector<4x8x32xbf16>, vector<4x32x8xbf16>, vector<4x8x8xf32> -> vector<4x8x8xf32>
    "tpu.trace_stop"() : () -> ()
    %34 = arith.truncf %25 : vector<4x8x8xf32> to vector<4x8x8xbf16>
    %35 = arith.truncf %29 : vector<4x8x8xf32> to vector<4x8x8xbf16>
    "tpu.trace_start"() <{level = 10 : i32, message = "hqe,hke->hqk"}> : () -> ()
    %cst_26 = arith.constant dense<0.000000e+00> : vector<4x8x8xf32>
    %36 = tpu.matmul %34, %35, %cst_26 {dimension_numbers = #tpu.dot_dimension_numbers<[2], [2], [1], [1], [0, 0, 0, 1, 1, 1], [0], [0]>} : vector<4x8x8xbf16>, vector<4x8x8xbf16>, vector<4x8x8xf32> -> vector<4x8x8xf32>
    "tpu.trace_stop"() : () -> ()
    %37 = arith.addf %36, %3 : vector<4x8x8xf32>
    %cst_27 = arith.constant dense<0xFF800000> : vector<4x8xf32>
    %38 = vector.multi_reduction <maximumf>, %37, %cst_27 [2] : vector<4x8x8xf32> to vector<4x8xf32>
    %39 = vector.shape_cast %38 : vector<4x8xf32> to vector<4x8x1xf32>
    %40 = vector.broadcast %39 : vector<4x8x1xf32> to vector<4x8x8xf32>
    %41 = arith.subf %37, %40 : vector<4x8x8xf32>
    %42 = math.exp %41 : vector<4x8x8xf32>
    %cst_28 = arith.constant dense<0.000000e+00> : vector<4x8xf32>
    %43 = vector.multi_reduction <add>, %42, %cst_28 [2] : vector<4x8x8xf32> to vector<4x8xf32>
    %44 = vector.shape_cast %43 : vector<4x8xf32> to vector<4x8x1xf32>
    %45 = tpu.reciprocal %44 {approx = true} : vector<4x8x1xf32> -> vector<4x8x1xf32>
    %46 = vector.broadcast %45 : vector<4x8x1xf32> to vector<4x8x8xf32>
    %47 = arith.mulf %42, %46 : vector<4x8x8xf32>
    %48 = arith.truncf %47 : vector<4x8x8xf32> to vector<4x8x8xbf16>
    %49 = arith.truncf %33 : vector<4x8x8xf32> to vector<4x8x8xbf16>
    "tpu.trace_start"() <{level = 10 : i32, message = "hqk,hke->hqe"}> : () -> ()
    %cst_29 = arith.constant dense<0.000000e+00> : vector<4x8x8xf32>
    %50 = tpu.matmul %48, %49, %cst_29 {dimension_numbers = #tpu.dot_dimension_numbers<[2], [1], [1], [2], [0, 0, 0, 1, 1, 2], [0], [0]>} : vector<4x8x8xbf16>, vector<4x8x8xbf16>, vector<4x8x8xf32> -> vector<4x8x8xf32>
    "tpu.trace_stop"() : () -> ()
    %51 = arith.truncf %50 : vector<4x8x8xf32> to vector<4x8x8xbf16>
    %c0_30 = arith.constant 0 : index
    %c0_31 = arith.constant 0 : index
    %c0_32 = arith.constant 0 : index
    %c0_33 = arith.constant 0 : index
    %52 = vector.load %arg7[%c0_30, %c0_31, %c0_32, %c0_33] : memref<2x4x8x32xf32, #tpu.memory_space<vmem>>, vector<1x4x8x32xf32>
    %53 = vector.shape_cast %52 : vector<1x4x8x32xf32> to vector<4x8x32xf32>
    %54 = arith.truncf %53 : vector<4x8x32xf32> to vector<4x8x32xbf16>
    "tpu.trace_start"() <{level = 10 : i32, message = "hqe,hed->hqd"}> : () -> ()
    %cst_34 = arith.constant dense<0.000000e+00> : vector<4x8x32xf32>
    %55 = tpu.matmul %51, %54, %cst_34 {dimension_numbers = #tpu.dot_dimension_numbers<[2], [1], [1], [2], [0, 0, 0, 1, 1, 2], [0], [0]>} : vector<4x8x8xbf16>, vector<4x8x32xbf16>, vector<4x8x32xf32> -> vector<4x8x32xf32>
    "tpu.trace_stop"() : () -> ()
    %cst_35 = arith.constant dense<0.000000e+00> : vector<8x32xf32>
    %56 = vector.multi_reduction <add>, %55, %cst_35 [0] : vector<4x8x32xf32> to vector<8x32xf32>
    %57 = arith.addf %1, %56 : vector<8x32xf32>
    %c0_36 = arith.constant 0 : index
    %c0_37 = arith.constant 0 : index
    %c0_38 = arith.constant 0 : index
    %58 = vector.load %arg8[%c0_36, %c0_37, %c0_38] : memref<2x1x32xf32, #tpu.memory_space<vmem>>, vector<1x1x32xf32>
    %59 = vector.shape_cast %58 : vector<1x1x32xf32> to vector<1x32xf32>
    %60 = arith.mulf %57, %57 : vector<8x32xf32>
    %cst_39 = arith.constant dense<0.000000e+00> : vector<8xf32>
    %61 = vector.multi_reduction <add>, %60, %cst_39 [1] : vector<8x32xf32> to vector<8xf32>
    %62 = vector.shape_cast %61 : vector<8xf32> to vector<8x1xf32>
    %cst_40 = arith.constant 3.200000e+01 : f32
    %63 = vector.broadcast %cst_40 : f32 to vector<8x1xf32>
    %64 = arith.divf %62, %63 : vector<8x1xf32>
    %cst_41 = arith.constant 9.99999997E-7 : f32
    %65 = vector.broadcast %cst_41 : f32 to vector<8x1xf32>
    %66 = arith.addf %64, %65 : vector<8x1xf32>
    %67 = math.rsqrt %66 : vector<8x1xf32>
    %68 = vector.broadcast %67 : vector<8x1xf32> to vector<8x32xf32>
    %69 = arith.mulf %57, %68 : vector<8x32xf32>
    %70 = vector.broadcast %59 : vector<1x32xf32> to vector<8x32xf32>
    %71 = arith.mulf %69, %70 : vector<8x32xf32>
    %72 = arith.truncf %71 : vector<8x32xf32> to vector<8x32xbf16>
    %c0_42 = arith.constant 0 : index
    %c0_43 = arith.constant 0 : index
    %c0_44 = arith.constant 0 : index
    %73 = vector.load %arg9[%c0_42, %c0_43, %c0_44] : memref<2x32x64xf32, #tpu.memory_space<vmem>>, vector<1x32x64xf32>
    %74 = vector.shape_cast %73 : vector<1x32x64xf32> to vector<32x64xf32>
    %75 = arith.truncf %74 : vector<32x64xf32> to vector<32x64xbf16>
    %cst_45 = arith.constant dense<0.000000e+00> : vector<8x64xf32>
    %76 = tpu.matmul %72, %75, %cst_45 {dimension_numbers = #tpu.dot_dimension_numbers<[1], [0], [0], [1], [0, 0, 1, 1], [], []>} : vector<8x32xbf16>, vector<32x64xbf16>, vector<8x64xf32> -> vector<8x64xf32>
    %cst_46 = arith.constant 0.000000e+00 : f32
    %77 = vector.broadcast %cst_46 : f32 to vector<8x64xf32>
    %78 = arith.maximumf %76, %77 : vector<8x64xf32>
    %79 = arith.truncf %78 : vector<8x64xf32> to vector<8x64xbf16>
    %c0_47 = arith.constant 0 : index
    %c0_48 = arith.constant 0 : index
    %c0_49 = arith.constant 0 : index
    %80 = vector.load %arg10[%c0_47, %c0_48, %c0_49] : memref<2x64x32xf32, #tpu.memory_space<vmem>>, vector<1x64x32xf32>
    %81 = vector.shape_cast %80 : vector<1x64x32xf32> to vector<64x32xf32>
    %82 = arith.truncf %81 : vector<64x32xf32> to vector<64x32xbf16>
    %cst_50 = arith.constant dense<0.000000e+00> : vector<8x32xf32>
    %83 = tpu.matmul %79, %82, %cst_50 {dimension_numbers = #tpu.dot_dimension_numbers<[1], [0], [0], [1], [0, 0, 1, 1], [], []>} : vector<8x64xbf16>, vector<64x32xbf16>, vector<8x32xf32> -> vector<8x32xf32>
    %84 = arith.addf %57, %83 : vector<8x32xf32>
    %c1 = arith.constant 1 : index
    %c0_51 = arith.constant 0 : index
    %c0_52 = arith.constant 0 : index
    %85 = vector.load %arg3[%c1, %c0_51, %c0_52] : memref<2x1x32xf32, #tpu.memory_space<vmem>>, vector<1x1x32xf32>
    %86 = vector.shape_cast %85 : vector<1x1x32xf32> to vector<1x32xf32>
    %87 = arith.mulf %84, %84 : vector<8x32xf32>
    %cst_53 = arith.constant dense<0.000000e+00> : vector<8xf32>
    %88 = vector.multi_reduction <add>, %87, %cst_53 [1] : vector<8x32xf32> to vector<8xf32>
    %89 = vector.shape_cast %88 : vector<8xf32> to vector<8x1xf32>
    %cst_54 = arith.constant 3.200000e+01 : f32
    %90 = vector.broadcast %cst_54 : f32 to vector<8x1xf32>
    %91 = arith.divf %89, %90 : vector<8x1xf32>
    %cst_55 = arith.constant 9.99999997E-7 : f32
    %92 = vector.broadcast %cst_55 : f32 to vector<8x1xf32>
    %93 = arith.addf %91, %92 : vector<8x1xf32>
    %94 = math.rsqrt %93 : vector<8x1xf32>
    %95 = vector.broadcast %94 : vector<8x1xf32> to vector<8x32xf32>
    %96 = arith.mulf %84, %95 : vector<8x32xf32>
    %97 = vector.broadcast %86 : vector<1x32xf32> to vector<8x32xf32>
    %98 = arith.mulf %96, %97 : vector<8x32xf32>
    %99 = arith.truncf %98 : vector<8x32xf32> to vector<8x32xbf16>
    %100 = vector.shape_cast %99 : vector<8x32xbf16> to vector<1x8x32xbf16>
    %101 = vector.shape_cast %100 : vector<1x8x32xbf16> to vector<1x8x32xbf16>
    %102 = vector.broadcast %101 : vector<1x8x32xbf16> to vector<4x8x32xbf16>
    %c1_56 = arith.constant 1 : index
    %c0_57 = arith.constant 0 : index
    %c0_58 = arith.constant 0 : index
    %c0_59 = arith.constant 0 : index
    %103 = vector.load %arg4[%c1_56, %c0_57, %c0_58, %c0_59] : memref<2x4x32x8xf32, #tpu.memory_space<vmem>>, vector<1x4x32x8xf32>
    %104 = vector.shape_cast %103 : vector<1x4x32x8xf32> to vector<4x32x8xf32>
    %105 = arith.truncf %104 : vector<4x32x8xf32> to vector<4x32x8xbf16>
    "tpu.trace_start"() <{level = 10 : i32, message = "hsd,hde->hse"}> : () -> ()
    %cst_60 = arith.constant dense<0.000000e+00> : vector<4x8x8xf32>
    %106 = tpu.matmul %102, %105, %cst_60 {dimension_numbers = #tpu.dot_dimension_numbers<[2], [1], [1], [2], [0, 0, 0, 1, 1, 2], [0], [0]>} : vector<4x8x32xbf16>, vector<4x32x8xbf16>, vector<4x8x8xf32> -> vector<4x8x8xf32>
    "tpu.trace_stop"() : () -> ()
    %c1_61 = arith.constant 1 : index
    %c0_62 = arith.constant 0 : index
    %c0_63 = arith.constant 0 : index
    %c0_64 = arith.constant 0 : index
    %107 = vector.load %arg5[%c1_61, %c0_62, %c0_63, %c0_64] : memref<2x4x32x8xf32, #tpu.memory_space<vmem>>, vector<1x4x32x8xf32>
    %108 = vector.shape_cast %107 : vector<1x4x32x8xf32> to vector<4x32x8xf32>
    %109 = arith.truncf %108 : vector<4x32x8xf32> to vector<4x32x8xbf16>
    "tpu.trace_start"() <{level = 10 : i32, message = "hsd,hde->hse"}> : () -> ()
    %cst_65 = arith.constant dense<0.000000e+00> : vector<4x8x8xf32>
    %110 = tpu.matmul %102, %109, %cst_65 {dimension_numbers = #tpu.dot_dimension_numbers<[2], [1], [1], [2], [0, 0, 0, 1, 1, 2], [0], [0]>} : vector<4x8x32xbf16>, vector<4x32x8xbf16>, vector<4x8x8xf32> -> vector<4x8x8xf32>
    "tpu.trace_stop"() : () -> ()
    %c1_66 = arith.constant 1 : index
    %c0_67 = arith.constant 0 : index
    %c0_68 = arith.constant 0 : index
    %c0_69 = arith.constant 0 : index
    %111 = vector.load %arg6[%c1_66, %c0_67, %c0_68, %c0_69] : memref<2x4x32x8xf32, #tpu.memory_space<vmem>>, vector<1x4x32x8xf32>
    %112 = vector.shape_cast %111 : vector<1x4x32x8xf32> to vector<4x32x8xf32>
    %113 = arith.truncf %112 : vector<4x32x8xf32> to vector<4x32x8xbf16>
    "tpu.trace_start"() <{level = 10 : i32, message = "hsd,hde->hse"}> : () -> ()
    %cst_70 = arith.constant dense<0.000000e+00> : vector<4x8x8xf32>
    %114 = tpu.matmul %102, %113, %cst_70 {dimension_numbers = #tpu.dot_dimension_numbers<[2], [1], [1], [2], [0, 0, 0, 1, 1, 2], [0], [0]>} : vector<4x8x32xbf16>, vector<4x32x8xbf16>, vector<4x8x8xf32> -> vector<4x8x8xf32>
    "tpu.trace_stop"() : () -> ()
    %115 = arith.truncf %106 : vector<4x8x8xf32> to vector<4x8x8xbf16>
    %116 = arith.truncf %110 : vector<4x8x8xf32> to vector<4x8x8xbf16>
    "tpu.trace_start"() <{level = 10 : i32, message = "hqe,hke->hqk"}> : () -> ()
    %cst_71 = arith.constant dense<0.000000e+00> : vector<4x8x8xf32>
    %117 = tpu.matmul %115, %116, %cst_71 {dimension_numbers = #tpu.dot_dimension_numbers<[2], [2], [1], [1], [0, 0, 0, 1, 1, 1], [0], [0]>} : vector<4x8x8xbf16>, vector<4x8x8xbf16>, vector<4x8x8xf32> -> vector<4x8x8xf32>
    "tpu.trace_stop"() : () -> ()
    %118 = arith.addf %117, %3 : vector<4x8x8xf32>
    %cst_72 = arith.constant dense<0xFF800000> : vector<4x8xf32>
    %119 = vector.multi_reduction <maximumf>, %118, %cst_72 [2] : vector<4x8x8xf32> to vector<4x8xf32>
    %120 = vector.shape_cast %119 : vector<4x8xf32> to vector<4x8x1xf32>
    %121 = vector.broadcast %120 : vector<4x8x1xf32> to vector<4x8x8xf32>
    %122 = arith.subf %118, %121 : vector<4x8x8xf32>
    %123 = math.exp %122 : vector<4x8x8xf32>
    %cst_73 = arith.constant dense<0.000000e+00> : vector<4x8xf32>
    %124 = vector.multi_reduction <add>, %123, %cst_73 [2] : vector<4x8x8xf32> to vector<4x8xf32>
    %125 = vector.shape_cast %124 : vector<4x8xf32> to vector<4x8x1xf32>
    %126 = tpu.reciprocal %125 {approx = true} : vector<4x8x1xf32> -> vector<4x8x1xf32>
    %127 = vector.broadcast %126 : vector<4x8x1xf32> to vector<4x8x8xf32>
    %128 = arith.mulf %123, %127 : vector<4x8x8xf32>
    %129 = arith.truncf %128 : vector<4x8x8xf32> to vector<4x8x8xbf16>
    %130 = arith.truncf %114 : vector<4x8x8xf32> to vector<4x8x8xbf16>
    "tpu.trace_start"() <{level = 10 : i32, message = "hqk,hke->hqe"}> : () -> ()
    %cst_74 = arith.constant dense<0.000000e+00> : vector<4x8x8xf32>
    %131 = tpu.matmul %129, %130, %cst_74 {dimension_numbers = #tpu.dot_dimension_numbers<[2], [1], [1], [2], [0, 0, 0, 1, 1, 2], [0], [0]>} : vector<4x8x8xbf16>, vector<4x8x8xbf16>, vector<4x8x8xf32> -> vector<4x8x8xf32>
    "tpu.trace_stop"() : () -> ()
    %132 = arith.truncf %131 : vector<4x8x8xf32> to vector<4x8x8xbf16>
    %c1_75 = arith.constant 1 : index
    %c0_76 = arith.constant 0 : index
    %c0_77 = arith.constant 0 : index
    %c0_78 = arith.constant 0 : index
    %133 = vector.load %arg7[%c1_75, %c0_76, %c0_77, %c0_78] : memref<2x4x8x32xf32, #tpu.memory_space<vmem>>, vector<1x4x8x32xf32>
    %134 = vector.shape_cast %133 : vector<1x4x8x32xf32> to vector<4x8x32xf32>
    %135 = arith.truncf %134 : vector<4x8x32xf32> to vector<4x8x32xbf16>
    "tpu.trace_start"() <{level = 10 : i32, message = "hqe,hed->hqd"}> : () -> ()
    %cst_79 = arith.constant dense<0.000000e+00> : vector<4x8x32xf32>
    %136 = tpu.matmul %132, %135, %cst_79 {dimension_numbers = #tpu.dot_dimension_numbers<[2], [1], [1], [2], [0, 0, 0, 1, 1, 2], [0], [0]>} : vector<4x8x8xbf16>, vector<4x8x32xbf16>, vector<4x8x32xf32> -> vector<4x8x32xf32>
    "tpu.trace_stop"() : () -> ()
    %cst_80 = arith.constant dense<0.000000e+00> : vector<8x32xf32>
    %137 = vector.multi_reduction <add>, %136, %cst_80 [0] : vector<4x8x32xf32> to vector<8x32xf32>
    %138 = arith.addf %84, %137 : vector<8x32xf32>
    %c1_81 = arith.constant 1 : index
    %c0_82 = arith.constant 0 : index
    %c0_83 = arith.constant 0 : index
    %139 = vector.load %arg8[%c1_81, %c0_82, %c0_83] : memref<2x1x32xf32, #tpu.memory_space<vmem>>, vector<1x1x32xf32>
    %140 = vector.shape_cast %139 : vector<1x1x32xf32> to vector<1x32xf32>
    %141 = arith.mulf %138, %138 : vector<8x32xf32>
    %cst_84 = arith.constant dense<0.000000e+00> : vector<8xf32>
    %142 = vector.multi_reduction <add>, %141, %cst_84 [1] : vector<8x32xf32> to vector<8xf32>
    %143 = vector.shape_cast %142 : vector<8xf32> to vector<8x1xf32>
    %cst_85 = arith.constant 3.200000e+01 : f32
    %144 = vector.broadcast %cst_85 : f32 to vector<8x1xf32>
    %145 = arith.divf %143, %144 : vector<8x1xf32>
    %cst_86 = arith.constant 9.99999997E-7 : f32
    %146 = vector.broadcast %cst_86 : f32 to vector<8x1xf32>
    %147 = arith.addf %145, %146 : vector<8x1xf32>
    %148 = math.rsqrt %147 : vector<8x1xf32>
    %149 = vector.broadcast %148 : vector<8x1xf32> to vector<8x32xf32>
    %150 = arith.mulf %138, %149 : vector<8x32xf32>
    %151 = vector.broadcast %140 : vector<1x32xf32> to vector<8x32xf32>
    %152 = arith.mulf %150, %151 : vector<8x32xf32>
    %153 = arith.truncf %152 : vector<8x32xf32> to vector<8x32xbf16>
    %c1_87 = arith.constant 1 : index
    %c0_88 = arith.constant 0 : index
    %c0_89 = arith.constant 0 : index
    %154 = vector.load %arg9[%c1_87, %c0_88, %c0_89] : memref<2x32x64xf32, #tpu.memory_space<vmem>>, vector<1x32x64xf32>
    %155 = vector.shape_cast %154 : vector<1x32x64xf32> to vector<32x64xf32>
    %156 = arith.truncf %155 : vector<32x64xf32> to vector<32x64xbf16>
    %cst_90 = arith.constant dense<0.000000e+00> : vector<8x64xf32>
    %157 = tpu.matmul %153, %156, %cst_90 {dimension_numbers = #tpu.dot_dimension_numbers<[1], [0], [0], [1], [0, 0, 1, 1], [], []>} : vector<8x32xbf16>, vector<32x64xbf16>, vector<8x64xf32> -> vector<8x64xf32>
    %cst_91 = arith.constant 0.000000e+00 : f32
    %158 = vector.broadcast %cst_91 : f32 to vector<8x64xf32>
    %159 = arith.maximumf %157, %158 : vector<8x64xf32>
    %160 = arith.truncf %159 : vector<8x64xf32> to vector<8x64xbf16>
    %c1_92 = arith.constant 1 : index
    %c0_93 = arith.constant 0 : index
    %c0_94 = arith.constant 0 : index
    %161 = vector.load %arg10[%c1_92, %c0_93, %c0_94] : memref<2x64x32xf32, #tpu.memory_space<vmem>>, vector<1x64x32xf32>
    %162 = vector.shape_cast %161 : vector<1x64x32xf32> to vector<64x32xf32>
    %163 = arith.truncf %162 : vector<64x32xf32> to vector<64x32xbf16>
    %cst_95 = arith.constant dense<0.000000e+00> : vector<8x32xf32>
    %164 = tpu.matmul %160, %163, %cst_95 {dimension_numbers = #tpu.dot_dimension_numbers<[1], [0], [0], [1], [0, 0, 1, 1], [], []>} : vector<8x64xbf16>, vector<64x32xbf16>, vector<8x32xf32> -> vector<8x32xf32>
    %165 = arith.addf %138, %164 : vector<8x32xf32>
    %c0_96 = arith.constant 0 : index
    %c0_97 = arith.constant 0 : index
    %166 = vector.load %arg11[%c0_96, %c0_97] : memref<1x32xf32, #tpu.memory_space<vmem>>, vector<1x32xf32>
    %167 = arith.mulf %165, %165 : vector<8x32xf32>
    %cst_98 = arith.constant dense<0.000000e+00> : vector<8xf32>
    %168 = vector.multi_reduction <add>, %167, %cst_98 [1] : vector<8x32xf32> to vector<8xf32>
    %169 = vector.shape_cast %168 : vector<8xf32> to vector<8x1xf32>
    %cst_99 = arith.constant 3.200000e+01 : f32
    %170 = vector.broadcast %cst_99 : f32 to vector<8x1xf32>
    %171 = arith.divf %169, %170 : vector<8x1xf32>
    %cst_100 = arith.constant 9.99999997E-7 : f32
    %172 = vector.broadcast %cst_100 : f32 to vector<8x1xf32>
    %173 = arith.addf %171, %172 : vector<8x1xf32>
    %174 = math.rsqrt %173 : vector<8x1xf32>
    %175 = vector.broadcast %174 : vector<8x1xf32> to vector<8x32xf32>
    %176 = arith.mulf %165, %175 : vector<8x32xf32>
    %177 = vector.broadcast %166 : vector<1x32xf32> to vector<8x32xf32>
    %178 = arith.mulf %176, %177 : vector<8x32xf32>
    %cst_101 = arith.constant dense<0.000000e+00> : vector<32xf32>
    %179 = vector.multi_reduction <add>, %178, %cst_101 [0] : vector<8x32xf32> to vector<32xf32>
    %180 = vector.shape_cast %179 : vector<32xf32> to vector<1x32xf32>
    %cst_102 = arith.constant 8.000000e+00 : f32
    %181 = vector.broadcast %cst_102 : f32 to vector<1x32xf32>
    %182 = arith.divf %180, %181 : vector<1x32xf32>
    %c0_103 = arith.constant 0 : index
    %c0_104 = arith.constant 0 : index
    %c0_105 = arith.constant 0 : index
    %183 = vector.load %arg12[%c0_103, %c0_104, %c0_105] : memref<1x1x32xf32, #tpu.memory_space<vmem>>, vector<1x1x32xf32>
    %184 = vector.shape_cast %183 : vector<1x1x32xf32> to vector<1x32xf32>
    %185 = vector.shape_cast %182 : vector<1x32xf32> to vector<1x1x32xf32>
    tpu.vector_store %arg12[%c0_103, %c0_104, %c0_105], %185 {strides = array<i32>} : memref<1x1x32xf32, #tpu.memory_space<vmem>>, vector<1x1x32xf32>,
    return
  }
  func.func @transform_0(%arg0: i32) -> (i32, i32, i32) {
    %c0_i32 = arith.constant 0 : i32
    %c0_i32_0 = arith.constant 0 : i32
    %c0_i32_1 = arith.constant 0 : i32
    return %arg0, %c0_i32, %c0_i32_0 : i32, i32, i32
  }
  func.func @transform_1(%arg0: i32) -> (i32, i32, i32, i32) {
    %c0_i32 = arith.constant 0 : i32
    %c0_i32_0 = arith.constant 0 : i32
    %c0_i32_1 = arith.constant 0 : i32
    %c0_i32_2 = arith.constant 0 : i32
    return %arg0, %c0_i32, %c0_i32_0, %c0_i32_1 : i32, i32, i32, i32
  }
  func.func @transform_2(%arg0: i32) -> (i32, i32, i32) {
    %c0_i32 = arith.constant 0 : i32
    %c0_i32_0 = arith.constant 0 : i32
    %c0_i32_1 = arith.constant 0 : i32
    %c0_i32_2 = arith.constant 0 : i32
    return %c0_i32, %c0_i32_0, %c0_i32_1 : i32, i32, i32
  }
  func.func @transform_3(%arg0: i32) -> (i32, i32, i32, i32) {
    %c0_i32 = arith.constant 0 : i32
    %c0_i32_0 = arith.constant 0 : i32
    %c0_i32_1 = arith.constant 0 : i32
    %c0_i32_2 = arith.constant 0 : i32
    %c0_i32_3 = arith.constant 0 : i32
    return %c0_i32, %c0_i32_0, %c0_i32_1, %c0_i32_2 : i32, i32, i32, i32
  }
  func.func @transform_4(%arg0: i32) -> (i32, i32, i32, i32) {
    %c0_i32 = arith.constant 0 : i32
    %c0_i32_0 = arith.constant 0 : i32
    %c0_i32_1 = arith.constant 0 : i32
    %c0_i32_2 = arith.constant 0 : i32
    %c0_i32_3 = arith.constant 0 : i32
    return %c0_i32, %c0_i32_0, %c0_i32_1, %c0_i32_2 : i32, i32, i32, i32
  }
  func.func @transform_5(%arg0: i32) -> (i32, i32, i32, i32) {
    %c0_i32 = arith.constant 0 : i32
    %c0_i32_0 = arith.constant 0 : i32
    %c0_i32_1 = arith.constant 0 : i32
    %c0_i32_2 = arith.constant 0 : i32
    %c0_i32_3 = arith.constant 0 : i32
    return %c0_i32, %c0_i32_0, %c0_i32_1, %c0_i32_2 : i32, i32, i32, i32
  }
  func.func @transform_6(%arg0: i32) -> (i32, i32, i32, i32) {
    %c0_i32 = arith.constant 0 : i32
    %c0_i32_0 = arith.constant 0 : i32
    %c0_i32_1 = arith.constant 0 : i32
    %c0_i32_2 = arith.constant 0 : i32
    %c0_i32_3 = arith.constant 0 : i32
    return %c0_i32, %c0_i32_0, %c0_i32_1, %c0_i32_2 : i32, i32, i32, i32
  }
  func.func @transform_7(%arg0: i32) -> (i32, i32, i32) {
    %c0_i32 = arith.constant 0 : i32
    %c0_i32_0 = arith.constant 0 : i32
    %c0_i32_1 = arith.constant 0 : i32
    %c0_i32_2 = arith.constant 0 : i32
    return %c0_i32, %c0_i32_0, %c0_i32_1 : i32, i32, i32
  }
  func.func @transform_8(%arg0: i32) -> (i32, i32, i32) {
    %c0_i32 = arith.constant 0 : i32
    %c0_i32_0 = arith.constant 0 : i32
    %c0_i32_1 = arith.constant 0 : i32
    %c0_i32_2 = arith.constant 0 : i32
    return %c0_i32, %c0_i32_0, %c0_i32_1 : i32, i32, i32
  }
  func.func @transform_9(%arg0: i32) -> (i32, i32, i32) {
    %c0_i32 = arith.constant 0 : i32
    %c0_i32_0 = arith.constant 0 : i32
    %c0_i32_1 = arith.constant 0 : i32
    %c0_i32_2 = arith.constant 0 : i32
    return %c0_i32, %c0_i32_0, %c0_i32_1 : i32, i32, i32
  }
  func.func @transform_10(%arg0: i32) -> (i32, i32) {
    %c0_i32 = arith.constant 0 : i32
    %c0_i32_0 = arith.constant 0 : i32
    %c0_i32_1 = arith.constant 0 : i32
    return %c0_i32, %c0_i32_0 : i32, i32
  }
  func.func @transform_11(%arg0: i32) -> (i32, i32, i32) {
    %c0_i32 = arith.constant 0 : i32
    %c0_i32_0 = arith.constant 0 : i32
    %c0_i32_1 = arith.constant 0 : i32
    return %arg0, %c0_i32, %c0_i32_0 : i32, i32, i32
  }
}

</mosaic_0001>

<llo_original>
// kernel: protein_encoder_forward.1
$region0: #{protein_encoder_forward.1}
  #allocation0 [shape = 'u32[]', space=smem, size = 0x4, offset = 0x4, fixed_abs, tag = 'smem constant byte address 0x4 - core index']
  #allocation1 [shape = 'u32[144,128]{1,0:T(1,128)}', space=vmem, size = 0x12000, scoped, tag = 'internal scratch']
  %s0 = inlined_call_operand.vmem [shape: f32[2,8,32], index: 0, kind: input, shape index: {}]
  %s1 = inlined_call_operand.vmem [shape: f32[2,4,8,8], index: 1, kind: input, shape index: {}]
  %s2 = inlined_call_operand.vmem [shape: f32[2,1,32], index: 2, kind: input, shape index: {}]
  %s3 = inlined_call_operand.vmem [shape: f32[2,4,32,8], index: 3, kind: input, shape index: {}]
  %s4 = inlined_call_operand.vmem [shape: f32[2,4,32,8], index: 4, kind: input, shape index: {}]
  %s5 = inlined_call_operand.vmem [shape: f32[2,4,32,8], index: 5, kind: input, shape index: {}]
  %s6 = inlined_call_operand.vmem [shape: f32[2,4,8,32], index: 6, kind: input, shape index: {}]
  %s7 = inlined_call_operand.vmem [shape: f32[2,1,32], index: 7, kind: input, shape index: {}]
  %s8 = inlined_call_operand.vmem [shape: f32[2,32,64], index: 8, kind: input, shape index: {}]
  %s9 = inlined_call_operand.vmem [shape: f32[2,64,32], index: 9, kind: input, shape index: {}]
  %s10 = inlined_call_operand.vmem [shape: f32[1,32], index: 10, kind: input, shape index: {}]
  %s11 = inlined_call_operand.hbm [shape: f32[2,1,32], index: 11, kind: output, shape index: {}]
  %s12 = sld [smem:[#allocation0]]
  $region77: #{protein_encoder_forward.1} parent=0
    _
  %s14 = ssub.s32 1, %s12
  %s15 = scalar_select 0, %s14, %s12
  $region1: #{protein_encoder_forward.1} parent=0
    #allocation2 [shape = 'u8[1024]{0}', space=vmem, size = 0x400, scoped, tag = 'output window, operand 0']
    #allocation3 [shape = 's32[2]{0}', space=sflag, size = 0x8, scoped, tag = 'scoped memory for protein_encoder_forward.1']
    %16 = vsyncpa [#allocation3], 0
    %s17 = scalar_lea.sflag [#allocation3], 1
    %18 = vsyncpa %s17, 0
    loop: start=0, step=1, limit=4
    $region2: #{protein_encoder_forward.1} parent=1 // loop_pre_header
      _
    $region3: #{protein_encoder_forward.1} parent=1 // loop_header
      %s20 = sphi 0, %s24
      %p21 = scmp.ge.s32.totalorder %s20, 4
      %s30 = sphi 0, %s32
      %s33 = sphi 0, %s30
      %s34 = sphi 0, %s33
      %s50 = sphi 0, %s34
      %s56 = sphi 0, %s58
      %s59 = sphi 0, %s56
      %s60 = sphi 0, %s59
      %s76 = sphi 0, %s60
      %s80 = sphi 0, %s80
      %s82 = sphi 0, %s80
      %s83 = sphi 0, %s82
      %s97 = sphi 0, %s83
      %s101 = sphi 0, %s101
      %s103 = sphi 0, %s101
      %s104 = sphi 0, %s103
      %s118 = sphi 0, %s104
      %s122 = sphi 0, %s122
      %s124 = sphi 0, %s122
      %s125 = sphi 0, %s124
      %s139 = sphi 0, %s125
      %s143 = sphi 0, %s143
      %s145 = sphi 0, %s143
      %s146 = sphi 0, %s145
      %s160 = sphi 0, %s146
      %s164 = sphi 0, %s164
      %s166 = sphi 0, %s164
      %s167 = sphi 0, %s166
      %s181 = sphi 0, %s167
      %s185 = sphi 0, %s185
      %s187 = sphi 0, %s185
      %s188 = sphi 0, %s187
      %s202 = sphi 0, %s188
      %s206 = sphi 0, %s206
      %s208 = sphi 0, %s206
      %s209 = sphi 0, %s208
      %s223 = sphi 0, %s209
      %s227 = sphi 0, %s227
      %s229 = sphi 0, %s227
      %s230 = sphi 0, %s229
      %s244 = sphi 0, %s230
      %s248 = sphi 0, %s248
      %s250 = sphi 0, %s248
      %s251 = sphi 0, %s250
      %s265 = sphi 0, %s251
      %s271 = sphi 0, %s273
      %s274 = sphi 0, %s271
      %s275 = sphi 0, %s274
      %s291 = sphi 0, %s275
    $region4: #{protein_encoder_forward.1} parent=1 // loop_header_branch
      %23 = sbr.rel (%p21) target = $region8
    $region5: #{protein_encoder_forward.1} parent=1 // loop_body
      %s25 = ssub.s32 %s20, 1
      %s26 = ssub.s32 %s20, 2
      %s27 = sadd.s32 %s20, 1
      %s28 = ssub.s32 %s20, %s27
      %p29 = scmp.eq.s32.totalorder %s28, 0
      %s31 = sadd.s32 %s30, 1
      %s32 = scalar_select %p29, %s30, %s31
      %p35 = pneg %p29
      %p36 = scmp.eq.s32.totalorder %s20, 1
      %p37 = por %p35, %p36
      %p38 = scmp.ne.s32.totalorder %s30, %s33
      %p39 = scmp.eq.s32.totalorder %s20, 0
      %p40 = por %p38, %p39
      %p41 = scmp.ne.s32.totalorder %s30, %s33
      %p42 = scmp.eq.s32.totalorder %s25, 1
      %p43 = por %p41, %p42
      %p44 = scmp.ne.s32.totalorder %s33, %s34
      %p45 = scmp.eq.s32.totalorder %s25, 0
      %p46 = por %p44, %p45
      %p47 = scmp.ne.s32.totalorder %s33, %s34
      %p48 = scmp.eq.s32.totalorder %s26, 1
      %p49 = por %p47, %p48
      %p51 = scmp.ne.s32.totalorder %s34, %s50
      %p52 = scmp.eq.s32.totalorder %s26, 0
      %p53 = por %p51, %p52
      %s54 = ssub.s32 %s20, %s27
      %p55 = scmp.eq.s32.totalorder %s54, 0
      %s57 = sadd.s32 %s56, 1
      %s58 = scalar_select %p55, %s56, %s57
      %p61 = pneg %p55
      %p62 = scmp.eq.s32.totalorder %s20, 1
      %p63 = por %p61, %p62
      %p64 = scmp.ne.s32.totalorder %s56, %s59
      %p65 = scmp.eq.s32.totalorder %s20, 0
      %p66 = por %p64, %p65
      %p67 = scmp.ne.s32.totalorder %s56, %s59
      %p68 = scmp.eq.s32.totalorder %s25, 1
      %p69 = por %p67, %p68
      %p70 = scmp.ne.s32.totalorder %s59, %s60
      %p71 = scmp.eq.s32.totalorder %s25, 0
      %p72 = por %p70, %p71
      %p73 = scmp.ne.s32.totalorder %s59, %s60
      %p74 = scmp.eq.s32.totalorder %s26, 1
      %p75 = por %p73, %p74
      %p77 = scmp.ne.s32.totalorder %s60, %s76
      %p78 = scmp.eq.s32.totalorder %s26, 0
      %p79 = por %p77, %p78
      %s81 = sadd.s32 %s80, 1
      %p84 = scmp.eq.s32.totalorder %s20, 1
      %p85 = scmp.ne.s32.totalorder %s80, %s82
      %p86 = scmp.eq.s32.totalorder %s20, 0
      %p87 = por %p85, %p86
      %p88 = scmp.ne.s32.totalorder %s80, %s82
      %p89 = scmp.eq.s32.totalorder %s25, 1
      %p90 = por %p88, %p89
      %p91 = scmp.ne.s32.totalorder %s82, %s83
      %p92 = scmp.eq.s32.totalorder %s25, 0
      %p93 = por %p91, %p92
      %p94 = scmp.ne.s32.totalorder %s82, %s83
      %p95 = scmp.eq.s32.totalorder %s26, 1
      %p96 = por %p94, %p95
      %p98 = scmp.ne.s32.totalorder %s83, %s97
      %p99 = scmp.eq.s32.totalorder %s26, 0
      %p100 = por %p98, %p99
      %s102 = sadd.s32 %s101, 1
      %p105 = scmp.eq.s32.totalorder %s20, 1
      %p106 = scmp.ne.s32.totalorder %s101, %s103
      %p107 = scmp.eq.s32.totalorder %s20, 0
      %p108 = por %p106, %p107
      %p109 = scmp.ne.s32.totalorder %s101, %s103
      %p110 = scmp.eq.s32.totalorder %s25, 1
      %p111 = por %p109, %p110
      %p112 = scmp.ne.s32.totalorder %s103, %s104
      %p113 = scmp.eq.s32.totalorder %s25, 0
      %p114 = por %p112, %p113
      %p115 = scmp.ne.s32.totalorder %s103, %s104
      %p116 = scmp.eq.s32.totalorder %s26, 1
      %p117 = por %p115, %p116
      %p119 = scmp.ne.s32.totalorder %s104, %s118
      %p120 = scmp.eq.s32.totalorder %s26, 0
      %p121 = por %p119, %p120
      %s123 = sadd.s32 %s122, 1
      %p126 = scmp.eq.s32.totalorder %s20, 1
      %p127 = scmp.ne.s32.totalorder %s122, %s124
      %p128 = scmp.eq.s32.totalorder %s20, 0
      %p129 = por %p127, %p128
      %p130 = scmp.ne.s32.totalorder %s122, %s124
      %p131 = scmp.eq.s32.totalorder %s25, 1
      %p132 = por %p130, %p131
      %p133 = scmp.ne.s32.totalorder %s124, %s125
      %p134 = scmp.eq.s32.totalorder %s25, 0
      %p135 = por %p133, %p134
      %p136 = scmp.ne.s32.totalorder %s124, %s125
      %p137 = scmp.eq.s32.totalorder %s26, 1
      %p138 = por %p136, %p137
      %p140 = scmp.ne.s32.totalorder %s125, %s139
      %p141 = scmp.eq.s32.totalorder %s26, 0
      %p142 = por %p140, %p141
      %s144 = sadd.s32 %s143, 1
      %p147 = scmp.eq.s32.totalorder %s20, 1
      %p148 = scmp.ne.s32.totalorder %s143, %s145
      %p149 = scmp.eq.s32.totalorder %s20, 0
      %p150 = por %p148, %p149
      %p151 = scmp.ne.s32.totalorder %s143, %s145
      %p152 = scmp.eq.s32.totalorder %s25, 1
      %p153 = por %p151, %p152
      %p154 = scmp.ne.s32.totalorder %s145, %s146
      %p155 = scmp.eq.s32.totalorder %s25, 0
      %p156 = por %p154, %p155
      %p157 = scmp.ne.s32.totalorder %s145, %s146
      %p158 = scmp.eq.s32.totalorder %s26, 1
      %p159 = por %p157, %p158
      %p161 = scmp.ne.s32.totalorder %s146, %s160
      %p162 = scmp.eq.s32.totalorder %s26, 0
      %p163 = por %p161, %p162
      %s165 = sadd.s32 %s164, 1
      %p168 = scmp.eq.s32.totalorder %s20, 1
      %p169 = scmp.ne.s32.totalorder %s164, %s166
      %p170 = scmp.eq.s32.totalorder %s20, 0
      %p171 = por %p169, %p170
      %p172 = scmp.ne.s32.totalorder %s164, %s166
      %p173 = scmp.eq.s32.totalorder %s25, 1
      %p174 = por %p172, %p173
      %p175 = scmp.ne.s32.totalorder %s166, %s167
      %p176 = scmp.eq.s32.totalorder %s25, 0
      %p177 = por %p175, %p176
      %p178 = scmp.ne.s32.totalorder %s166, %s167
      %p179 = scmp.eq.s32.totalorder %s26, 1
      %p180 = por %p178, %p179
      %p182 = scmp.ne.s32.totalorder %s167, %s181
      %p183 = scmp.eq.s32.totalorder %s26, 0
      %p184 = por %p182, %p183
      %s186 = sadd.s32 %s185, 1
      %p189 = scmp.eq.s32.totalorder %s20, 1
      %p190 = scmp.ne.s32.totalorder %s185, %s187
      %p191 = scmp.eq.s32.totalorder %s20, 0
      %p192 = por %p190, %p191
      %p193 = scmp.ne.s32.totalorder %s185, %s187
      %p194 = scmp.eq.s32.totalorder %s25, 1
      %p195 = por %p193, %p194
      %p196 = scmp.ne.s32.totalorder %s187, %s188
      %p197 = scmp.eq.s32.totalorder %s25, 0
      %p198 = por %p196, %p197
      %p199 = scmp.ne.s32.totalorder %s187, %s188
      %p200 = scmp.eq.s32.totalorder %s26, 1
      %p201 = por %p199, %p200
      %p203 = scmp.ne.s32.totalorder %s188, %s202
      %p204 = scmp.eq.s32.totalorder %s26, 0
      %p205 = por %p203, %p204
      %s207 = sadd.s32 %s206, 1
      %p210 = scmp.eq.s32.totalorder %s20, 1
      %p211 = scmp.ne.s32.totalorder %s206, %s208
      %p212 = scmp.eq.s32.totalorder %s20, 0
      %p213 = por %p211, %p212
      %p214 = scmp.ne.s32.totalorder %s206, %s208
      %p215 = scmp.eq.s32.totalorder %s25, 1
      %p216 = por %p214, %p215
      %p217 = scmp.ne.s32.totalorder %s208, %s209
      %p218 = scmp.eq.s32.totalorder %s25, 0
      %p219 = por %p217, %p218
      %p220 = scmp.ne.s32.totalorder %s208, %s209
      %p221 = scmp.eq.s32.totalorder %s26, 1
      %p222 = por %p220, %p221
      %p224 = scmp.ne.s32.totalorder %s209, %s223
      %p225 = scmp.eq.s32.totalorder %s26, 0
      %p226 = por %p224, %p225
      %s228 = sadd.s32 %s227, 1
      %p231 = scmp.eq.s32.totalorder %s20, 1
      %p232 = scmp.ne.s32.totalorder %s227, %s229
      %p233 = scmp.eq.s32.totalorder %s20, 0
      %p234 = por %p232, %p233
      %p235 = scmp.ne.s32.totalorder %s227, %s229
      %p236 = scmp.eq.s32.totalorder %s25, 1
      %p237 = por %p235, %p236
      %p238 = scmp.ne.s32.totalorder %s229, %s230
      %p239 = scmp.eq.s32.totalorder %s25, 0
      %p240 = por %p238, %p239
      %p241 = scmp.ne.s32.totalorder %s229, %s230
      %p242 = scmp.eq.s32.totalorder %s26, 1
      %p243 = por %p241, %p242
      %p245 = scmp.ne.s32.totalorder %s230, %s244
      %p246 = scmp.eq.s32.totalorder %s26, 0
      %p247 = por %p245, %p246
      %s249 = sadd.s32 %s248, 1
      %p252 = scmp.eq.s32.totalorder %s20, 1
      %p253 = scmp.ne.s32.totalorder %s248, %s250
      %p254 = scmp.eq.s32.totalorder %s20, 0
      %p255 = por %p253, %p254
      %p256 = scmp.ne.s32.totalorder %s248, %s250
      %p257 = scmp.eq.s32.totalorder %s25, 1
      %p258 = por %p256, %p257
      %p259 = scmp.ne.s32.totalorder %s250, %s251
      %p260 = scmp.eq.s32.totalorder %s25, 0
      %p261 = por %p259, %p260
      %p262 = scmp.ne.s32.totalorder %s250, %s251
      %p263 = scmp.eq.s32.totalorder %s26, 1
      %p264 = por %p262, %p263
      %p266 = scmp.ne.s32.totalorder %s251, %s265
      %p267 = scmp.eq.s32.totalorder %s26, 0
      %p268 = por %p266, %p267
      %s269 = ssub.s32 %s20, %s27
      %p270 = scmp.eq.s32.totalorder %s269, 0
      %s272 = sadd.s32 %s271, 1
      %s273 = scalar_select %p270, %s271, %s272
      %p276 = pneg %p270
      %p277 = scmp.eq.s32.totalorder %s20, 1
      %p278 = por %p276, %p277
      %p279 = scmp.ne.s32.totalorder %s271, %s274
      %p280 = scmp.eq.s32.totalorder %s20, 0
      %p281 = por %p279, %p280
      %p282 = scmp.ne.s32.totalorder %s271, %s274
      %p283 = scmp.eq.s32.totalorder %s25, 1
      %p284 = por %p282, %p283
      %p285 = scmp.ne.s32.totalorder %s274, %s275
      %p286 = scmp.eq.s32.totalorder %s25, 0
      %p287 = por %p285, %p286
      %p288 = scmp.ne.s32.totalorder %s274, %s275
      %p289 = scmp.eq.s32.totalorder %s26, 1
      %p290 = por %p288, %p289
      %p292 = scmp.ne.s32.totalorder %s275, %s291
      %p293 = scmp.eq.s32.totalorder %s26, 0
      %p294 = por %p292, %p293
      %p295 = scmp.le.s32.totalorder 1, %s20
      %p296 = scmp.lt.s32.totalorder %s20, 3
      %p297 = pnand %p295, %p296
      %p298 = pneg %p297
      // Predicated region
      $region9: #{protein_encoder_forward.1} parent=5 // pred_check
        _
      $region10: #{protein_encoder_forward.1} parent=5 // pred_check_branch
        %300 = sbr.rel (%p297) target = $region12
      $region11: #{protein_encoder_forward.1} parent=5 // pred_region
        %s301 = ssub.s32 %s20, 1
        // Predicated region
        $region13: #{protein_encoder_forward.1} parent=11 // pred_check
          %p302 = pneg %p93
        $region14: #{protein_encoder_forward.1} parent=11 // pred_check_branch
          %304 = sbr.rel (%p302) target = $region16
        $region15: #{protein_encoder_forward.1} parent=11 // pred_region
          _
        $region16: #{protein_encoder_forward.1} parent=11 // pred_fallthru
          _
        // Predicated region
        $region17: #{protein_encoder_forward.1} parent=11 // pred_check
          %p305 = pneg %p114
        $region18: #{protein_encoder_forward.1} parent=11 // pred_check_branch
          %307 = sbr.rel (%p305) target = $region20
        $region19: #{protein_encoder_forward.1} parent=11 // pred_region
          _
        $region20: #{protein_encoder_forward.1} parent=11 // pred_fallthru
          _
        // Predicated region
        $region21: #{protein_encoder_forward.1} parent=11 // pred_check
          %p308 = pneg %p135
        $region22: #{protein_encoder_forward.1} parent=11 // pred_check_branch
          %310 = sbr.rel (%p308) target = $region24
        $region23: #{protein_encoder_forward.1} parent=11 // pred_region
          _
        $region24: #{protein_encoder_forward.1} parent=11 // pred_fallthru
          _
        // Predicated region
        $region25: #{protein_encoder_forward.1} parent=11 // pred_check
          %p311 = pneg %p156
        $region26: #{protein_encoder_forward.1} parent=11 // pred_check_branch
          %313 = sbr.rel (%p311) target = $region28
        $region27: #{protein_encoder_forward.1} parent=11 // pred_region
          _
        $region28: #{protein_encoder_forward.1} parent=11 // pred_fallthru
          _
        // Predicated region
        $region29: #{protein_encoder_forward.1} parent=11 // pred_check
          %p314 = pneg %p177
        $region30: #{protein_encoder_forward.1} parent=11 // pred_check_branch
          %316 = sbr.rel (%p314) target = $region32
        $region31: #{protein_encoder_forward.1} parent=11 // pred_region
          _
        $region32: #{protein_encoder_forward.1} parent=11 // pred_fallthru
          _
        // Predicated region
        $region33: #{protein_encoder_forward.1} parent=11 // pred_check
          %p317 = pneg %p198
        $region34: #{protein_encoder_forward.1} parent=11 // pred_check_branch
          %319 = sbr.rel (%p317) target = $region36
        $region35: #{protein_encoder_forward.1} parent=11 // pred_region
          _
        $region36: #{protein_encoder_forward.1} parent=11 // pred_fallthru
          _
        // Predicated region
        $region37: #{protein_encoder_forward.1} parent=11 // pred_check
          %p320 = pneg %p219
        $region38: #{protein_encoder_forward.1} parent=11 // pred_check_branch
          %322 = sbr.rel (%p320) target = $region40
        $region39: #{protein_encoder_forward.1} parent=11 // pred_region
          _
        $region40: #{protein_encoder_forward.1} parent=11 // pred_fallthru
          _
        // Predicated region
        $region41: #{protein_encoder_forward.1} parent=11 // pred_check
          %p323 = pneg %p240
        $region42: #{protein_encoder_forward.1} parent=11 // pred_check_branch
          %325 = sbr.rel (%p323) target = $region44
        $region43: #{protein_encoder_forward.1} parent=11 // pred_region
          _
        $region44: #{protein_encoder_forward.1} parent=11 // pred_fallthru
          _
        // Predicated region
        $region45: #{protein_encoder_forward.1} parent=11 // pred_check
          %p326 = pneg %p261
        $region46: #{protein_encoder_forward.1} parent=11 // pred_check_branch
          %328 = sbr.rel (%p326) target = $region48
        $region47: #{protein_encoder_forward.1} parent=11 // pred_region
          _
        $region48: #{protein_encoder_forward.1} parent=11 // pred_fallthru
          _
      $region12: #{protein_encoder_forward.1} parent=5 // pred_fallthru
        _
      %p329 = scmp.lt.s32.totalorder %s20, 2
      // Predicated region
      $region49: #{protein_encoder_forward.1} parent=5 // pred_check
        %p330 = pneg %p329
      $region50: #{protein_encoder_forward.1} parent=5 // pred_check_branch
        %332 = sbr.rel (%p330) target = $region52
      $region51: #{protein_encoder_forward.1} parent=5 // pred_region
        // Predicated region
        $region53: #{protein_encoder_forward.1} parent=51 // pred_check
          %p333 = pneg %p40
        $region54: #{protein_encoder_forward.1} parent=51 // pred_check_branch
          %335 = sbr.rel (%p333) target = $region56
        $region55: #{protein_encoder_forward.1} parent=51 // pred_region
          %p336 = scmp.lt.s32.totalorder %s20, 1
          %s337 = scalar_select %p336, %s20, 1
          %s338 = smul.addr %s337, 8
          %s339 = scalar_lea.vmem %s0, %s338
        $region56: #{protein_encoder_forward.1} parent=51 // pred_fallthru
          _
        // Predicated region
        $region57: #{protein_encoder_forward.1} parent=51 // pred_check
          %p340 = pneg %p66
        $region58: #{protein_encoder_forward.1} parent=51 // pred_check_branch
          %342 = sbr.rel (%p340) target = $region60
        $region59: #{protein_encoder_forward.1} parent=51 // pred_region
          %p343 = scmp.lt.s32.totalorder %s20, 1
          %s344 = scalar_select %p343, %s20, 1
          %s345 = smul.addr %s344, 4
          %s346 = smul.addr %s345, 8
          %s347 = scalar_lea.vmem %s1, %s346
        $region60: #{protein_encoder_forward.1} parent=51 // pred_fallthru
          _
      $region52: #{protein_encoder_forward.1} parent=5 // pred_fallthru
        _
      %p348 = scmp.le.s32.totalorder 1, %s20
      %p349 = scmp.lt.s32.totalorder %s20, 3
      %p350 = pnand %p348, %p349
      %p351 = pneg %p350
      // Predicated region
      $region61: #{protein_encoder_forward.1} parent=5 // pred_check
        _
      $region62: #{protein_encoder_forward.1} parent=5 // pred_check_branch
        %353 = sbr.rel (%p350) target = $region64
      $region63: #{protein_encoder_forward.1} parent=5 // pred_region
        %s354 = ssub.s32 %s20, 1
        %p355 = scmp.lt.s32.totalorder %s25, 1
        %s356 = scalar_select %p355, %s25, 1
        %s357 = smul.addr %s356, 8
        %s358 = scalar_lea.vmem %s0, %s357
        %p359 = pneg %p46
        %p360 = pneg %p43
        %p361 = scmp.lt.s32.totalorder %s25, 1
        %s362 = scalar_select %p361, %s25, 1
        %s363 = smul.addr %s362, 4
        %s364 = smul.addr %s363, 8
        %s365 = scalar_lea.vmem %s1, %s364
        %p366 = pneg %p72
        %p367 = pneg %p69
        %p368 = pneg %p93
        %p369 = pneg %p90
        %p370 = pneg %p114
        %p371 = pneg %p111
        %p372 = pneg %p135
        %p373 = pneg %p132
        %p374 = pneg %p156
        %p375 = pneg %p153
        %p376 = pneg %p177
        %p377 = pneg %p174
        %p378 = pneg %p198
        %p379 = pneg %p195
        %p380 = pneg %p219
        %p381 = pneg %p216
        %p382 = pneg %p240
        %p383 = pneg %p237
        %p384 = pneg %p261
        %p385 = pneg %p258
        %p386 = pneg %p287
        %p387 = pneg %p284
        %s388 = sand.u32 %s274, 1
        %s389 = scalar_lea.sflag [#allocation3], %s388
        %s390 = sand.u32 %s274, 1
        %s391 = scalar_lea.vmem [#allocation2], %s390
        %p392 = scmp.lt.s32.totalorder %s25, 1
        %s393 = scalar_select %p392, %s25, 1
        %s394 = smul.addr %s393, 8
        %s395 = scalar_lea.vmem %s0, %s394
        %p396 = scmp.lt.s32.totalorder %s25, 1
        %s397 = scalar_select %p396, %s25, 1
        %s398 = smul.addr %s397, 4
        %s399 = smul.addr %s398, 8
        %s400 = scalar_lea.vmem %s1, %s399
        %v402 = vld [vmem:[%s395] sm:$0xff]
        %v403 = vld [vmem:[%s400] sm:$0xff]
        %v404 = vld [vmem:[%s400 + $0x8] sm:$0xff]
        %v405 = vld [vmem:[%s400 + $0x10] sm:$0xff]
        %v406 = vld [vmem:[%s400 + $0x18] sm:$0xff]
        %v407 = vld [vmem:[%s2] sm:$0x1]
        %v408 = vmul.f32 %v402, %v402
        %vm409 = vcmask 261120
        %v410 = vsel %vm409, %v408, 0.0
        %411 = vadd.xlane.f32.xlu0 %v410
        %v412 = vpop.xlane.xlu0 %411
        %v413 = vrcp.pop 32.0
        %v414 = vmul.f32 %v412, %v413
        %v415 = vadd.f32 %v414, 1e-06
        %v416 = vrsqrt.pop %v415
        %v417 = vmul.f32 %v402, %v416
        %v419 = vlaneseq
        %v420 = vshrl.u32 %v419, 7
        %v421 = vsub.s32 0, %v420
        %v422 = vrot.slane %v407, %v421
        %v424 = vmul.f32 %v417, %v422
        %v425 = vpack.c.bf16 %v424, %v424
        %v426 = vld [vmem:[%s3] sm:$0xff]
        %v427 = vld [vmem:[%s3 + $0x8] sm:$0xff]
        %v428 = vld [vmem:[%s3 + $0x10] sm:$0xff]
        %v429 = vld [vmem:[%s3 + $0x18] sm:$0xff]
        %v430 = vld [vmem:[%s3 + $0x20] sm:$0xff]
        %v431 = vld [vmem:[%s3 + $0x28] sm:$0xff]
        %v432 = vld [vmem:[%s3 + $0x30] sm:$0xff]
        %v433 = vld [vmem:[%s3 + $0x38] sm:$0xff]
        %v434 = vld [vmem:[%s3 + $0x40] sm:$0xff]
        %v435 = vld [vmem:[%s3 + $0x48] sm:$0xff]
        %v436 = vld [vmem:[%s3 + $0x50] sm:$0xff]
        %v437 = vld [vmem:[%s3 + $0x58] sm:$0xff]
        %v438 = vld [vmem:[%s3 + $0x60] sm:$0xff]
        %v439 = vld [vmem:[%s3 + $0x68] sm:$0xff]
        %v440 = vld [vmem:[%s3 + $0x70] sm:$0xff]
        %v441 = vld [vmem:[%s3 + $0x78] sm:$0xff]
        %v442 = vpack.c.bf16 %v427, %v426
        %v443 = vpack.c.bf16 %v429, %v428
        %v444 = vpack.c.bf16 %v431, %v430
        %v445 = vpack.c.bf16 %v433, %v432
        %v446 = vpack.c.bf16 %v435, %v434
        %v447 = vpack.c.bf16 %v437, %v436
        %v448 = vpack.c.bf16 %v439, %v438
        %v449 = vpack.c.bf16 %v441, %v440
        %v451 = vsel %vm409, %v425, 0
        %453 = vmatprep.subr.bf16.mxu0 0
        %454 = vmatpush1.bf16.msra.mxu0 %v442
        %455 = vmatprep.subr.bf16.mxu0 0
        %456 = vmatpush1.bf16.msra.mxu0 %v443
        %457 = vmatprep.subr.bf16.mxu0 0
        %458 = vmatpush1.bf16.msra.mxu0 0
        %459 = vmatprep.subr.bf16.mxu0 0
        %460 = vmatpush1.bf16.msra.mxu0 0
        %461 = vmatprep.subr.bf16.mxu0 0
        %462 = vmatpush1.bf16.msra.mxu0 0
        %463 = vmatprep.subr.bf16.mxu0 0
        %464 = vmatpush1.bf16.msra.mxu0 0
        %465 = vmatprep.subr.bf16.mxu0 0
        %466 = vmatpush1.bf16.msra.mxu0 0
        %467 = vmatprep.subr.bf16.mxu0 0
        %468 = vmatpush1.bf16.msra.mxu0 0
        %469 = vmatprep.subr.bf16.mxu0 0
        %470 = vmatpush1.bf16.msra.mxu0 0
        %471 = vmatprep.subr.bf16.mxu0 0
        %472 = vmatpush1.bf16.msra.mxu0 0
        %473 = vmatprep.subr.bf16.mxu0 0
        %474 = vmatpush1.bf16.msra.mxu0 0
        %475 = vmatprep.subr.bf16.mxu0 0
        %476 = vmatpush1.bf16.msra.mxu0 0
        %477 = vmatprep.subr.bf16.mxu0 0
        %478 = vmatpush1.bf16.msra.mxu0 0
        %479 = vmatprep.subr.bf16.mxu0 0
        %480 = vmatpush1.bf16.msra.mxu0 0
        %481 = vmatprep.subr.bf16.mxu0 0
        %482 = vmatpush1.bf16.msra.mxu0 0
        %483 = vmatprep.subr.bf16.mxu0 0
        %484 = vmatpush1.bf16.msra.mxu0 0
        %485 = vmatprep.mubr.bf16.mxu0 0
        %486 = vmatmul.mubr.bf16.gmra.mrb[0].mxu0 %v451
        %v487 = vpop.f32.mrb[0].mxu0
        %v488 = vadd.f32 0.0, %v487
        %v489 = vpop.f32.mrb[0].mxu0
        %v490 = vpop.f32.mrb[0].mxu0
        %v491 = vpop.f32.mrb[0].mxu0
        %492 = vdwg.mxu0
        %493 = vmatprep.subr.bf16.mxu0 0
        %494 = vmatpush1.bf16.msra.mxu0 %v444
        %495 = vmatprep.subr.bf16.mxu0 0
        %496 = vmatpush1.bf16.msra.mxu0 %v445
        %497 = vmatprep.subr.bf16.mxu0 0
        %498 = vmatpush1.bf16.msra.mxu0 0
        %499 = vmatprep.subr.bf16.mxu0 0
        %500 = vmatpush1.bf16.msra.mxu0 0
        %501 = vmatprep.subr.bf16.mxu0 0
        %502 = vmatpush1.bf16.msra.mxu0 0
        %503 = vmatprep.subr.bf16.mxu0 0
        %504 = vmatpush1.bf16.msra.mxu0 0
        %505 = vmatprep.subr.bf16.mxu0 0
        %506 = vmatpush1.bf16.msra.mxu0 0
        %507 = vmatprep.subr.bf16.mxu0 0
        %508 = vmatpush1.bf16.msra.mxu0 0
        %509 = vmatprep.subr.bf16.mxu0 0
        %510 = vmatpush1.bf16.msra.mxu0 0
        %511 = vmatprep.subr.bf16.mxu0 0
        %512 = vmatpush1.bf16.msra.mxu0 0
        %513 = vmatprep.subr.bf16.mxu0 0
        %514 = vmatpush1.bf16.msra.mxu0 0
        %515 = vmatprep.subr.bf16.mxu0 0
        %516 = vmatpush1.bf16.msra.mxu0 0
        %517 = vmatprep.subr.bf16.mxu0 0
        %518 = vmatpush1.bf16.msra.mxu0 0
        %519 = vmatprep.subr.bf16.mxu0 0
        %520 = vmatpush1.bf16.msra.mxu0 0
        %521 = vmatprep.subr.bf16.mxu0 0
        %522 = vmatpush1.bf16.msra.mxu0 0
        %523 = vmatprep.subr.bf16.mxu0 0
        %524 = vmatpush1.bf16.msra.mxu0 0
        %525 = vmatprep.mubr.bf16.mxu0 0
        %526 = vmatmul.mubr.bf16.gmra.mrb[0].mxu0 %v451
        %v527 = vpop.f32.mrb[0].mxu0
        %v528 = vadd.f32 0.0, %v527
        %v529 = vpop.f32.mrb[0].mxu0
        %v530 = vpop.f32.mrb[0].mxu0
        %v531 = vpop.f32.mrb[0].mxu0
        %532 = vdwg.mxu0
        %533 = vmatprep.subr.bf16.mxu0 0
        %534 = vmatpush1.bf16.msra.mxu0 %v446
        %535 = vmatprep.subr.bf16.mxu0 0
        %536 = vmatpush1.bf16.msra.mxu0 %v447
        %537 = vmatprep.subr.bf16.mxu0 0
        %538 = vmatpush1.bf16.msra.mxu0 0
        %539 = vmatprep.subr.bf16.mxu0 0
        %540 = vmatpush1.bf16.msra.mxu0 0
        %541 = vmatprep.subr.bf16.mxu0 0
        %542 = vmatpush1.bf16.msra.mxu0 0
        %543 = vmatprep.subr.bf16.mxu0 0
        %544 = vmatpush1.bf16.msra.mxu0 0
        %545 = vmatprep.subr.bf16.mxu0 0
        %546 = vmatpush1.bf16.msra.mxu0 0
        %547 = vmatprep.subr.bf16.mxu0 0
        %548 = vmatpush1.bf16.msra.mxu0 0
        %549 = vmatprep.subr.bf16.mxu0 0
        %550 = vmatpush1.bf16.msra.mxu0 0
        %551 = vmatprep.subr.bf16.mxu0 0
        %552 = vmatpush1.bf16.msra.mxu0 0
        %553 = vmatprep.subr.bf16.mxu0 0
        %554 = vmatpush1.bf16.msra.mxu0 0
        %555 = vmatprep.subr.bf16.mxu0 0
        %556 = vmatpush1.bf16.msra.mxu0 0
        %557 = vmatprep.subr.bf16.mxu0 0
        %558 = vmatpush1.bf16.msra.mxu0 0
        %559 = vmatprep.subr.bf16.mxu0 0
        %560 = vmatpush1.bf16.msra.mxu0 0
        %561 = vmatprep.subr.bf16.mxu0 0
        %562 = vmatpush1.bf16.msra.mxu0 0
        %563 = vmatprep.subr.bf16.mxu0 0
        %564 = vmatpush1.bf16.msra.mxu0 0
        %565 = vmatprep.mubr.bf16.mxu0 0
        %566 = vmatmul.mubr.bf16.gmra.mrb[0].mxu0 %v451
        %v567 = vpop.f32.mrb[0].mxu0
        %v568 = vadd.f32 0.0, %v567
        %v569 = vpop.f32.mrb[0].mxu0
        %v570 = vpop.f32.mrb[0].mxu0
        %v571 = vpop.f32.mrb[0].mxu0
        %572 = vdwg.mxu0
        %573 = vmatprep.subr.bf16.mxu0 0
        %574 = vmatpush1.bf16.msra.mxu0 %v448
        %575 = vmatprep.subr.bf16.mxu0 0
        %576 = vmatpush1.bf16.msra.mxu0 %v449
        %577 = vmatprep.subr.bf16.mxu0 0
        %578 = vmatpush1.bf16.msra.mxu0 0
        %579 = vmatprep.subr.bf16.mxu0 0
        %580 = vmatpush1.bf16.msra.mxu0 0
        %581 = vmatprep.subr.bf16.mxu0 0
        %582 = vmatpush1.bf16.msra.mxu0 0
        %583 = vmatprep.subr.bf16.mxu0 0
        %584 = vmatpush1.bf16.msra.mxu0 0
        %585 = vmatprep.subr.bf16.mxu0 0
        %586 = vmatpush1.bf16.msra.mxu0 0
        %587 = vmatprep.subr.bf16.mxu0 0
        %588 = vmatpush1.bf16.msra.mxu0 0
        %589 = vmatprep.subr.bf16.mxu0 0
        %590 = vmatpush1.bf16.msra.mxu0 0
        %591 = vmatprep.subr.bf16.mxu0 0
        %592 = vmatpush1.bf16.msra.mxu0 0
        %593 = vmatprep.subr.bf16.mxu0 0
        %594 = vmatpush1.bf16.msra.mxu0 0
        %595 = vmatprep.subr.bf16.mxu0 0
        %596 = vmatpush1.bf16.msra.mxu0 0
        %597 = vmatprep.subr.bf16.mxu0 0
        %598 = vmatpush1.bf16.msra.mxu0 0
        %599 = vmatprep.subr.bf16.mxu0 0
        %600 = vmatpush1.bf16.msra.mxu0 0
        %601 = vmatprep.subr.bf16.mxu0 0
        %602 = vmatpush1.bf16.msra.mxu0 0
        %603 = vmatprep.subr.bf16.mxu0 0
        %604 = vmatpush1.bf16.msra.mxu0 0
        %605 = vmatprep.mubr.bf16.mxu0 0
        %606 = vmatmul.mubr.bf16.gmra.mrb[0].mxu0 %v451
        %v607 = vpop.f32.mrb[0].mxu0
        %v608 = vadd.f32 0.0, %v607
        %v609 = vpop.f32.mrb[0].mxu0
        %v610 = vpop.f32.mrb[0].mxu0
        %v611 = vpop.f32.mrb[0].mxu0
        %612 = vdwg.mxu0
        %v613 = vld [vmem:[%s4] sm:$0xff]
        %v614 = vld [vmem:[%s4 + $0x8] sm:$0xff]
        %v615 = vld [vmem:[%s4 + $0x10] sm:$0xff]
        %v616 = vld [vmem:[%s4 + $0x18] sm:$0xff]
        %v617 = vld [vmem:[%s4 + $0x20] sm:$0xff]
        %v618 = vld [vmem:[%s4 + $0x28] sm:$0xff]
        %v619 = vld [vmem:[%s4 + $0x30] sm:$0xff]
        %v620 = vld [vmem:[%s4 + $0x38] sm:$0xff]
        %v621 = vld [vmem:[%s4 + $0x40] sm:$0xff]
        %v622 = vld [vmem:[%s4 + $0x48] sm:$0xff]
        %v623 = vld [vmem:[%s4 + $0x50] sm:$0xff]
        %v624 = vld [vmem:[%s4 + $0x58] sm:$0xff]
        %v625 = vld [vmem:[%s4 + $0x60] sm:$0xff]
        %v626 = vld [vmem:[%s4 + $0x68] sm:$0xff]
        %v627 = vld [vmem:[%s4 + $0x70] sm:$0xff]
        %v628 = vld [vmem:[%s4 + $0x78] sm:$0xff]
        %v629 = vpack.c.bf16 %v614, %v613
        %v630 = vpack.c.bf16 %v616, %v615
        %v631 = vpack.c.bf16 %v618, %v617
        %v632 = vpack.c.bf16 %v620, %v619
        %v633 = vpack.c.bf16 %v622, %v621
        %v634 = vpack.c.bf16 %v624, %v623
        %v635 = vpack.c.bf16 %v626, %v625
        %v636 = vpack.c.bf16 %v628, %v627
        %637 = vmatprep.subr.bf16.mxu0 0
        %638 = vmatpush1.bf16.msra.mxu0 %v629
        %639 = vmatprep.subr.bf16.mxu0 0
        %640 = vmatpush1.bf16.msra.mxu0 %v630
        %641 = vmatprep.subr.bf16.mxu0 0
        %642 = vmatpush1.bf16.msra.mxu0 0
        %643 = vmatprep.subr.bf16.mxu0 0
        %644 = vmatpush1.bf16.msra.mxu0 0
        %645 = vmatprep.subr.bf16.mxu0 0
        %646 = vmatpush1.bf16.msra.mxu0 0
        %647 = vmatprep.subr.bf16.mxu0 0
        %648 = vmatpush1.bf16.msra.mxu0 0
        %649 = vmatprep.subr.bf16.mxu0 0
        %650 = vmatpush1.bf16.msra.mxu0 0
        %651 = vmatprep.subr.bf16.mxu0 0
        %652 = vmatpush1.bf16.msra.mxu0 0
        %653 = vmatprep.subr.bf16.mxu0 0
        %654 = vmatpush1.bf16.msra.mxu0 0
        %655 = vmatprep.subr.bf16.mxu0 0
        %656 = vmatpush1.bf16.msra.mxu0 0
        %657 = vmatprep.subr.bf16.mxu0 0
        %658 = vmatpush1.bf16.msra.mxu0 0
        %659 = vmatprep.subr.bf16.mxu0 0
        %660 = vmatpush1.bf16.msra.mxu0 0
        %661 = vmatprep.subr.bf16.mxu0 0
        %662 = vmatpush1.bf16.msra.mxu0 0
        %663 = vmatprep.subr.bf16.mxu0 0
        %664 = vmatpush1.bf16.msra.mxu0 0
        %665 = vmatprep.subr.bf16.mxu0 0
        %666 = vmatpush1.bf16.msra.mxu0 0
        %667 = vmatprep.subr.bf16.mxu0 0
        %668 = vmatpush1.bf16.msra.mxu0 0
        %669 = vmatprep.mubr.bf16.mxu0 0
        %670 = vmatmul.mubr.bf16.gmra.mrb[0].mxu0 %v451
        %v671 = vpop.f32.mrb[0].mxu0
        %v672 = vadd.f32 0.0, %v671
        %v673 = vpop.f32.mrb[0].mxu0
        %v674 = vpop.f32.mrb[0].mxu0
        %v675 = vpop.f32.mrb[0].mxu0
        %676 = vdwg.mxu0
        %677 = vmatprep.subr.bf16.mxu0 0
        %678 = vmatpush1.bf16.msra.mxu0 %v631
        %679 = vmatprep.subr.bf16.mxu0 0
        %680 = vmatpush1.bf16.msra.mxu0 %v632
        %681 = vmatprep.subr.bf16.mxu0 0
        %682 = vmatpush1.bf16.msra.mxu0 0
        %683 = vmatprep.subr.bf16.mxu0 0
        %684 = vmatpush1.bf16.msra.mxu0 0
        %685 = vmatprep.subr.bf16.mxu0 0
        %686 = vmatpush1.bf16.msra.mxu0 0
        %687 = vmatprep.subr.bf16.mxu0 0
        %688 = vmatpush1.bf16.msra.mxu0 0
        %689 = vmatprep.subr.bf16.mxu0 0
        %690 = vmatpush1.bf16.msra.mxu0 0
        %691 = vmatprep.subr.bf16.mxu0 0
        %692 = vmatpush1.bf16.msra.mxu0 0
        %693 = vmatprep.subr.bf16.mxu0 0
        %694 = vmatpush1.bf16.msra.mxu0 0
        %695 = vmatprep.subr.bf16.mxu0 0
        %696 = vmatpush1.bf16.msra.mxu0 0
        %697 = vmatprep.subr.bf16.mxu0 0
        %698 = vmatpush1.bf16.msra.mxu0 0
        %699 = vmatprep.subr.bf16.mxu0 0
        %700 = vmatpush1.bf16.msra.mxu0 0
        %701 = vmatprep.subr.bf16.mxu0 0
        %702 = vmatpush1.bf16.msra.mxu0 0
        %703 = vmatprep.subr.bf16.mxu0 0
        %704 = vmatpush1.bf16.msra.mxu0 0
        %705 = vmatprep.subr.bf16.mxu0 0
        %706 = vmatpush1.bf16.msra.mxu0 0
        %707 = vmatprep.subr.bf16.mxu0 0
        %708 = vmatpush1.bf16.msra.mxu0 0
        %709 = vmatprep.mubr.bf16.mxu0 0
        %710 = vmatmul.mubr.bf16.gmra.mrb[0].mxu0 %v451
        %v711 = vpop.f32.mrb[0].mxu0
        %v712 = vadd.f32 0.0, %v711
        %v713 = vpop.f32.mrb[0].mxu0
        %v714 = vpop.f32.mrb[0].mxu0
        %v715 = vpop.f32.mrb[0].mxu0
        %716 = vdwg.mxu0
        %717 = vmatprep.subr.bf16.mxu0 0
        %718 = vmatpush1.bf16.msra.mxu0 %v633
        %719 = vmatprep.subr.bf16.mxu0 0
        %720 = vmatpush1.bf16.msra.mxu0 %v634
        %721 = vmatprep.subr.bf16.mxu0 0
        %722 = vmatpush1.bf16.msra.mxu0 0
        %723 = vmatprep.subr.bf16.mxu0 0
        %724 = vmatpush1.bf16.msra.mxu0 0
        %725 = vmatprep.subr.bf16.mxu0 0
        %726 = vmatpush1.bf16.msra.mxu0 0
        %727 = vmatprep.subr.bf16.mxu0 0
        %728 = vmatpush1.bf16.msra.mxu0 0
        %729 = vmatprep.subr.bf16.mxu0 0
        %730 = vmatpush1.bf16.msra.mxu0 0
        %731 = vmatprep.subr.bf16.mxu0 0
        %732 = vmatpush1.bf16.msra.mxu0 0
        %733 = vmatprep.subr.bf16.mxu0 0
        %734 = vmatpush1.bf16.msra.mxu0 0
        %735 = vmatprep.subr.bf16.mxu0 0
        %736 = vmatpush1.bf16.msra.mxu0 0
        %737 = vmatprep.subr.bf16.mxu0 0
        %738 = vmatpush1.bf16.msra.mxu0 0
        %739 = vmatprep.subr.bf16.mxu0 0
        %740 = vmatpush1.bf16.msra.mxu0 0
        %741 = vmatprep.subr.bf16.mxu0 0
        %742 = vmatpush1.bf16.msra.mxu0 0
        %743 = vmatprep.subr.bf16.mxu0 0
        %744 = vmatpush1.bf16.msra.mxu0 0
        %745 = vmatprep.subr.bf16.mxu0 0
        %746 = vmatpush1.bf16.msra.mxu0 0
        %747 = vmatprep.subr.bf16.mxu0 0
        %748 = vmatpush1.bf16.msra.mxu0 0
        %749 = vmatprep.mubr.bf16.mxu0 0
        %750 = vmatmul.mubr.bf16.gmra.mrb[0].mxu0 %v451
        %v751 = vpop.f32.mrb[0].mxu0
        %v752 = vadd.f32 0.0, %v751
        %v753 = vpop.f32.mrb[0].mxu0
        %v754 = vpop.f32.mrb[0].mxu0
        %v755 = vpop.f32.mrb[0].mxu0
        %756 = vdwg.mxu0
        %757 = vmatprep.subr.bf16.mxu0 0
        %758 = vmatpush1.bf16.msra.mxu0 %v635
        %759 = vmatprep.subr.bf16.mxu0 0
        %760 = vmatpush1.bf16.msra.mxu0 %v636
        %761 = vmatprep.subr.bf16.mxu0 0
        %762 = vmatpush1.bf16.msra.mxu0 0
        %763 = vmatprep.subr.bf16.mxu0 0
        %764 = vmatpush1.bf16.msra.mxu0 0
        %765 = vmatprep.subr.bf16.mxu0 0
        %766 = vmatpush1.bf16.msra.mxu0 0
        %767 = vmatprep.subr.bf16.mxu0 0
        %768 = vmatpush1.bf16.msra.mxu0 0
        %769 = vmatprep.subr.bf16.mxu0 0
        %770 = vmatpush1.bf16.msra.mxu0 0
        %771 = vmatprep.subr.bf16.mxu0 0
        %772 = vmatpush1.bf16.msra.mxu0 0
        %773 = vmatprep.subr.bf16.mxu0 0
        %774 = vmatpush1.bf16.msra.mxu0 0
        %775 = vmatprep.subr.bf16.mxu0 0
        %776 = vmatpush1.bf16.msra.mxu0 0
        %777 = vmatprep.subr.bf16.mxu0 0
        %778 = vmatpush1.bf16.msra.mxu0 0
        %779 = vmatprep.subr.bf16.mxu0 0
        %780 = vmatpush1.bf16.msra.mxu0 0
        %781 = vmatprep.subr.bf16.mxu0 0
        %782 = vmatpush1.bf16.msra.mxu0 0
        %783 = vmatprep.subr.bf16.mxu0 0
        %784 = vmatpush1.bf16.msra.mxu0 0
        %785 = vmatprep.subr.bf16.mxu0 0
        %786 = vmatpush1.bf16.msra.mxu0 0
        %787 = vmatprep.subr.bf16.mxu0 0
        %788 = vmatpush1.bf16.msra.mxu0 0
        %789 = vmatprep.mubr.bf16.mxu0 0
        %790 = vmatmul.mubr.bf16.gmra.mrb[0].mxu0 %v451
        %v791 = vpop.f32.mrb[0].mxu0
        %v792 = vadd.f32 0.0, %v791
        %v793 = vpop.f32.mrb[0].mxu0
        %v794 = vpop.f32.mrb[0].mxu0
        %v795 = vpop.f32.mrb[0].mxu0
        %796 = vdwg.mxu0
        %v797 = vld [vmem:[%s5] sm:$0xff]
        %v798 = vld [vmem:[%s5 + $0x8] sm:$0xff]
        %v799 = vld [vmem:[%s5 + $0x10] sm:$0xff]
        %v800 = vld [vmem:[%s5 + $0x18] sm:$0xff]
        %v801 = vld [vmem:[%s5 + $0x20] sm:$0xff]
        %v802 = vld [vmem:[%s5 + $0x28] sm:$0xff]
        %v803 = vld [vmem:[%s5 + $0x30] sm:$0xff]
        %v804 = vld [vmem:[%s5 + $0x38] sm:$0xff]
        %v805 = vld [vmem:[%s5 + $0x40] sm:$0xff]
        %v806 = vld [vmem:[%s5 + $0x48] sm:$0xff]
        %v807 = vld [vmem:[%s5 + $0x50] sm:$0xff]
        %v808 = vld [vmem:[%s5 + $0x58] sm:$0xff]
        %v809 = vld [vmem:[%s5 + $0x60] sm:$0xff]
        %v810 = vld [vmem:[%s5 + $0x68] sm:$0xff]
        %v811 = vld [vmem:[%s5 + $0x70] sm:$0xff]
        %v812 = vld [vmem:[%s5 + $0x78] sm:$0xff]
        %v813 = vpack.c.bf16 %v798, %v797
        %v814 = vpack.c.bf16 %v800, %v799
        %v815 = vpack.c.bf16 %v802, %v801
        %v816 = vpack.c.bf16 %v804, %v803
        %v817 = vpack.c.bf16 %v806, %v805
        %v818 = vpack.c.bf16 %v808, %v807
        %v819 = vpack.c.bf16 %v810, %v809
        %v820 = vpack.c.bf16 %v812, %v811
        %821 = vmatprep.subr.bf16.mxu0 0
        %822 = vmatpush1.bf16.msra.mxu0 %v813
        %823 = vmatprep.subr.bf16.mxu0 0
        %824 = vmatpush1.bf16.msra.mxu0 %v814
        %825 = vmatprep.subr.bf16.mxu0 0
        %826 = vmatpush1.bf16.msra.mxu0 0
        %827 = vmatprep.subr.bf16.mxu0 0
        %828 = vmatpush1.bf16.msra.mxu0 0
        %829 = vmatprep.subr.bf16.mxu0 0
        %830 = vmatpush1.bf16.msra.mxu0 0
        %831 = vmatprep.subr.bf16.mxu0 0
        %832 = vmatpush1.bf16.msra.mxu0 0
        %833 = vmatprep.subr.bf16.mxu0 0
        %834 = vmatpush1.bf16.msra.mxu0 0
        %835 = vmatprep.subr.bf16.mxu0 0
        %836 = vmatpush1.bf16.msra.mxu0 0
        %837 = vmatprep.subr.bf16.mxu0 0
        %838 = vmatpush1.bf16.msra.mxu0 0
        %839 = vmatprep.subr.bf16.mxu0 0
        %840 = vmatpush1.bf16.msra.mxu0 0
        %841 = vmatprep.subr.bf16.mxu0 0
        %842 = vmatpush1.bf16.msra.mxu0 0
        %843 = vmatprep.subr.bf16.mxu0 0
        %844 = vmatpush1.bf16.msra.mxu0 0
        %845 = vmatprep.subr.bf16.mxu0 0
        %846 = vmatpush1.bf16.msra.mxu0 0
        %847 = vmatprep.subr.bf16.mxu0 0
        %848 = vmatpush1.bf16.msra.mxu0 0
        %849 = vmatprep.subr.bf16.mxu0 0
        %850 = vmatpush1.bf16.msra.mxu0 0
        %851 = vmatprep.subr.bf16.mxu0 0
        %852 = vmatpush1.bf16.msra.mxu0 0
        %853 = vmatprep.mubr.bf16.mxu0 0
        %854 = vmatmul.mubr.bf16.gmra.mrb[0].mxu0 %v451
        %v855 = vpop.f32.mrb[0].mxu0
        %v856 = vadd.f32 0.0, %v855
        %v857 = vpop.f32.mrb[0].mxu0
        %v858 = vpop.f32.mrb[0].mxu0
        %v859 = vpop.f32.mrb[0].mxu0
        %860 = vdwg.mxu0
        %861 = vmatprep.subr.bf16.mxu0 0
        %862 = vmatpush1.bf16.msra.mxu0 %v815
        %863 = vmatprep.subr.bf16.mxu0 0
        %864 = vmatpush1.bf16.msra.mxu0 %v816
        %865 = vmatprep.subr.bf16.mxu0 0
        %866 = vmatpush1.bf16.msra.mxu0 0
        %867 = vmatprep.subr.bf16.mxu0 0
        %868 = vmatpush1.bf16.msra.mxu0 0
        %869 = vmatprep.subr.bf16.mxu0 0
        %870 = vmatpush1.bf16.msra.mxu0 0
        %871 = vmatprep.subr.bf16.mxu0 0
        %872 = vmatpush1.bf16.msra.mxu0 0
        %873 = vmatprep.subr.bf16.mxu0 0
        %874 = vmatpush1.bf16.msra.mxu0 0
        %875 = vmatprep.subr.bf16.mxu0 0
        %876 = vmatpush1.bf16.msra.mxu0 0
        %877 = vmatprep.subr.bf16.mxu0 0
        %878 = vmatpush1.bf16.msra.mxu0 0
        %879 = vmatprep.subr.bf16.mxu0 0
        %880 = vmatpush1.bf16.msra.mxu0 0
        %881 = vmatprep.subr.bf16.mxu0 0
        %882 = vmatpush1.bf16.msra.mxu0 0
        %883 = vmatprep.subr.bf16.mxu0 0
        %884 = vmatpush1.bf16.msra.mxu0 0
        %885 = vmatprep.subr.bf16.mxu0 0
        %886 = vmatpush1.bf16.msra.mxu0 0
        %887 = vmatprep.subr.bf16.mxu0 0
        %888 = vmatpush1.bf16.msra.mxu0 0
        %889 = vmatprep.subr.bf16.mxu0 0
        %890 = vmatpush1.bf16.msra.mxu0 0
        %891 = vmatprep.subr.bf16.mxu0 0
        %892 = vmatpush1.bf16.msra.mxu0 0
        %893 = vmatprep.mubr.bf16.mxu0 0
        %894 = vmatmul.mubr.bf16.gmra.mrb[0].mxu0 %v451
        %v895 = vpop.f32.mrb[0].mxu0
        %v896 = vadd.f32 0.0, %v895
        %v897 = vpop.f32.mrb[0].mxu0
        %v898 = vpop.f32.mrb[0].mxu0
        %v899 = vpop.f32.mrb[0].mxu0
        %900 = vdwg.mxu0
        %901 = vmatprep.subr.bf16.mxu0 0
        %902 = vmatpush1.bf16.msra.mxu0 %v817
        %903 = vmatprep.subr.bf16.mxu0 0
        %904 = vmatpush1.bf16.msra.mxu0 %v818
        %905 = vmatprep.subr.bf16.mxu0 0
        %906 = vmatpush1.bf16.msra.mxu0 0
        %907 = vmatprep.subr.bf16.mxu0 0
        %908 = vmatpush1.bf16.msra.mxu0 0
        %909 = vmatprep.subr.bf16.mxu0 0
        %910 = vmatpush1.bf16.msra.mxu0 0
        %911 = vmatprep.subr.bf16.mxu0 0
        %912 = vmatpush1.bf16.msra.mxu0 0
        %913 = vmatprep.subr.bf16.mxu0 0
        %914 = vmatpush1.bf16.msra.mxu0 0
        %915 = vmatprep.subr.bf16.mxu0 0
        %916 = vmatpush1.bf16.msra.mxu0 0
        %917 = vmatprep.subr.bf16.mxu0 0
        %918 = vmatpush1.bf16.msra.mxu0 0
        %919 = vmatprep.subr.bf16.mxu0 0
        %920 = vmatpush1.bf16.msra.mxu0 0
        %921 = vmatprep.subr.bf16.mxu0 0
        %922 = vmatpush1.bf16.msra.mxu0 0
        %923 = vmatprep.subr.bf16.mxu0 0
        %924 = vmatpush1.bf16.msra.mxu0 0
        %925 = vmatprep.subr.bf16.mxu0 0
        %926 = vmatpush1.bf16.msra.mxu0 0
        %927 = vmatprep.subr.bf16.mxu0 0
        %928 = vmatpush1.bf16.msra.mxu0 0
        %929 = vmatprep.subr.bf16.mxu0 0
        %930 = vmatpush1.bf16.msra.mxu0 0
        %931 = vmatprep.subr.bf16.mxu0 0
        %932 = vmatpush1.bf16.msra.mxu0 0
        %933 = vmatprep.mubr.bf16.mxu0 0
        %934 = vmatmul.mubr.bf16.gmra.mrb[0].mxu0 %v451
        %v935 = vpop.f32.mrb[0].mxu0
        %v936 = vadd.f32 0.0, %v935
        %v937 = vpop.f32.mrb[0].mxu0
        %v938 = vpop.f32.mrb[0].mxu0
        %v939 = vpop.f32.mrb[0].mxu0
        %940 = vdwg.mxu0
        %941 = vmatprep.subr.bf16.mxu0 0
        %942 = vmatpush1.bf16.msra.mxu0 %v819
        %943 = vmatprep.subr.bf16.mxu0 0
        %944 = vmatpush1.bf16.msra.mxu0 %v820
        %945 = vmatprep.subr.bf16.mxu0 0
        %946 = vmatpush1.bf16.msra.mxu0 0
        %947 = vmatprep.subr.bf16.mxu0 0
        %948 = vmatpush1.bf16.msra.mxu0 0
        %949 = vmatprep.subr.bf16.mxu0 0
        %950 = vmatpush1.bf16.msra.mxu0 0
        %951 = vmatprep.subr.bf16.mxu0 0
        %952 = vmatpush1.bf16.msra.mxu0 0
        %953 = vmatprep.subr.bf16.mxu0 0
        %954 = vmatpush1.bf16.msra.mxu0 0
        %955 = vmatprep.subr.bf16.mxu0 0
        %956 = vmatpush1.bf16.msra.mxu0 0
        %957 = vmatprep.subr.bf16.mxu0 0
        %958 = vmatpush1.bf16.msra.mxu0 0
        %959 = vmatprep.subr.bf16.mxu0 0
        %960 = vmatpush1.bf16.msra.mxu0 0
        %961 = vmatprep.subr.bf16.mxu0 0
        %962 = vmatpush1.bf16.msra.mxu0 0
        %963 = vmatprep.subr.bf16.mxu0 0
        %964 = vmatpush1.bf16.msra.mxu0 0
        %965 = vmatprep.subr.bf16.mxu0 0
        %966 = vmatpush1.bf16.msra.mxu0 0
        %967 = vmatprep.subr.bf16.mxu0 0
        %968 = vmatpush1.bf16.msra.mxu0 0
        %969 = vmatprep.subr.bf16.mxu0 0
        %970 = vmatpush1.bf16.msra.mxu0 0
        %971 = vmatprep.subr.bf16.mxu0 0
        %972 = vmatpush1.bf16.msra.mxu0 0
        %973 = vmatprep.mubr.bf16.mxu0 0
        %974 = vmatmul.mubr.bf16.gmra.mrb[0].mxu0 %v451
        %v975 = vpop.f32.mrb[0].mxu0
        %v976 = vadd.f32 0.0, %v975
        %v977 = vpop.f32.mrb[0].mxu0
        %v978 = vpop.f32.mrb[0].mxu0
        %v979 = vpop.f32.mrb[0].mxu0
        %980 = vdwg.mxu0
        %v981 = vpack.c.bf16 %v488, %v488
        %v982 = vpack.c.bf16 %v528, %v528
        %v983 = vpack.c.bf16 %v568, %v568
        %v984 = vpack.c.bf16 %v608, %v608
        %v985 = vpack.c.bf16 %v672, %v672
        %v986 = vpack.c.bf16 %v712, %v712
        %v987 = vpack.c.bf16 %v752, %v752
        %v988 = vpack.c.bf16 %v792, %v792
        %vm989 = vcmask 64512
        %v991 = vsel %vm989, %v981, 0
        %v994 = vsel %vm989, %v985, 0
        %996 = vmatprep.subr.bf16.mxu0 0
        %997 = vmatpush1.bf16.xpose.msra.mxu0 %v994
        %998 = vmatprep.subr.bf16.mxu0 0
        %999 = vmatpush1.bf16.xpose.msra.mxu0 0
        %1000 = vmatprep.subr.bf16.mxu0 0
        %1001 = vmatpush1.bf16.xpose.msra.mxu0 0
        %1002 = vmatprep.subr.bf16.mxu0 0
        %1003 = vmatpush1.bf16.xpose.msra.mxu0 0
        %1004 = vmatprep.subr.bf16.mxu0 0
        %1005 = vmatpush1.bf16.xpose.msra.mxu0 0
        %1006 = vmatprep.subr.bf16.mxu0 0
        %1007 = vmatpush1.bf16.xpose.msra.mxu0 0
        %1008 = vmatprep.subr.bf16.mxu0 0
        %1009 = vmatpush1.bf16.xpose.msra.mxu0 0
        %1010 = vmatprep.subr.bf16.mxu0 0
        %1011 = vmatpush1.bf16.xpose.msra.mxu0 0
        %1012 = vmatprep.subr.bf16.mxu0 0
        %1013 = vmatpush1.bf16.xpose.msra.mxu0 0
        %1014 = vmatprep.subr.bf16.mxu0 0
        %1015 = vmatpush1.bf16.xpose.msra.mxu0 0
        %1016 = vmatprep.subr.bf16.mxu0 0
        %1017 = vmatpush1.bf16.xpose.msra.mxu0 0
        %1018 = vmatprep.subr.bf16.mxu0 0
        %1019 = vmatpush1.bf16.xpose.msra.mxu0 0
        %1020 = vmatprep.subr.bf16.mxu0 0
        %1021 = vmatpush1.bf16.xpose.msra.mxu0 0
        %1022 = vmatprep.subr.bf16.mxu0 0
        %1023 = vmatpush1.bf16.xpose.msra.mxu0 0
        %1024 = vmatprep.subr.bf16.mxu0 0
        %1025 = vmatpush1.bf16.xpose.msra.mxu0 0
        %1026 = vmatprep.subr.bf16.mxu0 0
        %1027 = vmatpush1.bf16.xpose.msra.mxu0 0
        %1028 = vmatprep.mubr.bf16.mxu0 0
        %1029 = vmatmul.mubr.bf16.gmra.mrb[0].mxu0 %v991
        %v1030 = vpop.f32.mrb[0].mxu0
        %v1031 = vadd.f32 %v403, %v1030
        %v1032 = vpop.f32.mrb[0].mxu0
        %v1033 = vpop.f32.mrb[0].mxu0
        %v1034 = vpop.f32.mrb[0].mxu0
        %1035 = vdwg.mxu0
        %v1037 = vsel %vm989, %v982, 0
        %v1040 = vsel %vm989, %v986, 0
        %1042 = vmatprep.subr.bf16.mxu0 0
        %1043 = vmatpush1.bf16.xpose.msra.mxu0 %v1040
        %1044 = vmatprep.subr.bf16.mxu0 0
        %1045 = vmatpush1.bf16.xpose.msra.mxu0 0
        %1046 = vmatprep.subr.bf16.mxu0 0
        %1047 = vmatpush1.bf16.xpose.msra.mxu0 0
        %1048 = vmatprep.subr.bf16.mxu0 0
        %1049 = vmatpush1.bf16.xpose.msra.mxu0 0
        %1050 = vmatprep.subr.bf16.mxu0 0
        %1051 = vmatpush1.bf16.xpose.msra.mxu0 0
        %1052 = vmatprep.subr.bf16.mxu0 0
        %1053 = vmatpush1.bf16.xpose.msra.mxu0 0
        %1054 = vmatprep.subr.bf16.mxu0 0
        %1055 = vmatpush1.bf16.xpose.msra.mxu0 0
        %1056 = vmatprep.subr.bf16.mxu0 0
        %1057 = vmatpush1.bf16.xpose.msra.mxu0 0
        %1058 = vmatprep.subr.bf16.mxu0 0
        %1059 = vmatpush1.bf16.xpose.msra.mxu0 0
        %1060 = vmatprep.subr.bf16.mxu0 0
        %1061 = vmatpush1.bf16.xpose.msra.mxu0 0
        %1062 = vmatprep.subr.bf16.mxu0 0
        %1063 = vmatpush1.bf16.xpose.msra.mxu0 0
        %1064 = vmatprep.subr.bf16.mxu0 0
        %1065 = vmatpush1.bf16.xpose.msra.mxu0 0
        %1066 = vmatprep.subr.bf16.mxu0 0
        %1067 = vmatpush1.bf16.xpose.msra.mxu0 0
        %1068 = vmatprep.subr.bf16.mxu0 0
        %1069 = vmatpush1.bf16.xpose.msra.mxu0 0
        %1070 = vmatprep.subr.bf16.mxu0 0
        %1071 = vmatpush1.bf16.xpose.msra.mxu0 0
        %1072 = vmatprep.subr.bf16.mxu0 0
        %1073 = vmatpush1.bf16.xpose.msra.mxu0 0
        %1074 = vmatprep.mubr.bf16.mxu0 0
        %1075 = vmatmul.mubr.bf16.gmra.mrb[0].mxu0 %v1037
        %v1076 = vpop.f32.mrb[0].mxu0
        %v1077 = vadd.f32 %v404, %v1076
        %v1078 = vpop.f32.mrb[0].mxu0
        %v1079 = vpop.f32.mrb[0].mxu0
        %v1080 = vpop.f32.mrb[0].mxu0
        %1081 = vdwg.mxu0
        %v1083 = vsel %vm989, %v983, 0
        %v1086 = vsel %vm989, %v987, 0
        %1088 = vmatprep.subr.bf16.mxu0 0
        %1089 = vmatpush1.bf16.xpose.msra.mxu0 %v1086
        %1090 = vmatprep.subr.bf16.mxu0 0
        %1091 = vmatpush1.bf16.xpose.msra.mxu0 0
        %1092 = vmatprep.subr.bf16.mxu0 0
        %1093 = vmatpush1.bf16.xpose.msra.mxu0 0
        %1094 = vmatprep.subr.bf16.mxu0 0
        %1095 = vmatpush1.bf16.xpose.msra.mxu0 0
        %1096 = vmatprep.subr.bf16.mxu0 0
        %1097 = vmatpush1.bf16.xpose.msra.mxu0 0
        %1098 = vmatprep.subr.bf16.mxu0 0
        %1099 = vmatpush1.bf16.xpose.msra.mxu0 0
        %1100 = vmatprep.subr.bf16.mxu0 0
        %1101 = vmatpush1.bf16.xpose.msra.mxu0 0
        %1102 = vmatprep.subr.bf16.mxu0 0
        %1103 = vmatpush1.bf16.xpose.msra.mxu0 0
        %1104 = vmatprep.subr.bf16.mxu0 0
        %1105 = vmatpush1.bf16.xpose.msra.mxu0 0
        %1106 = vmatprep.subr.bf16.mxu0 0
        %1107 = vmatpush1.bf16.xpose.msra.mxu0 0
        %1108 = vmatprep.subr.bf16.mxu0 0
        %1109 = vmatpush1.bf16.xpose.msra.mxu0 0
        %1110 = vmatprep.subr.bf16.mxu0 0
        %1111 = vmatpush1.bf16.xpose.msra.mxu0 0
        %1112 = vmatprep.subr.bf16.mxu0 0
        %1113 = vmatpush1.bf16.xpose.msra.mxu0 0
        %1114 = vmatprep.subr.bf16.mxu0 0
        %1115 = vmatpush1.bf16.xpose.msra.mxu0 0
        %1116 = vmatprep.subr.bf16.mxu0 0
        %1117 = vmatpush1.bf16.xpose.msra.mxu0 0
        %1118 = vmatprep.subr.bf16.mxu0 0
        %1119 = vmatpush1.bf16.xpose.msra.mxu0 0
        %1120 = vmatprep.mubr.bf16.mxu0 0
        %1121 = vmatmul.mubr.bf16.gmra.mrb[0].mxu0 %v1083
        %v1122 = vpop.f32.mrb[0].mxu0
        %v1123 = vadd.f32 %v405, %v1122
        %v1124 = vpop.f32.mrb[0].mxu0
        %v1125 = vpop.f32.mrb[0].mxu0
        %v1126 = vpop.f32.mrb[0].mxu0
        %1127 = vdwg.mxu0
        %v1129 = vsel %vm989, %v984, 0
        %v1132 = vsel %vm989, %v988, 0
        %1134 = vmatprep.subr.bf16.mxu0 0
        %1135 = vmatpush1.bf16.xpose.msra.mxu0 %v1132
        %1136 = vmatprep.subr.bf16.mxu0 0
        %1137 = vmatpush1.bf16.xpose.msra.mxu0 0
        %1138 = vmatprep.subr.bf16.mxu0 0
        %1139 = vmatpush1.bf16.xpose.msra.mxu0 0
        %1140 = vmatprep.subr.bf16.mxu0 0
        %1141 = vmatpush1.bf16.xpose.msra.mxu0 0
        %1142 = vmatprep.subr.bf16.mxu0 0
        %1143 = vmatpush1.bf16.xpose.msra.mxu0 0
        %1144 = vmatprep.subr.bf16.mxu0 0
        %1145 = vmatpush1.bf16.xpose.msra.mxu0 0
        %1146 = vmatprep.subr.bf16.mxu0 0
        %1147 = vmatpush1.bf16.xpose.msra.mxu0 0
        %1148 = vmatprep.subr.bf16.mxu0 0
        %1149 = vmatpush1.bf16.xpose.msra.mxu0 0
        %1150 = vmatprep.subr.bf16.mxu0 0
        %1151 = vmatpush1.bf16.xpose.msra.mxu0 0
        %1152 = vmatprep.subr.bf16.mxu0 0
        %1153 = vmatpush1.bf16.xpose.msra.mxu0 0
        %1154 = vmatprep.subr.bf16.mxu0 0
        %1155 = vmatpush1.bf16.xpose.msra.mxu0 0
        %1156 = vmatprep.subr.bf16.mxu0 0
        %1157 = vmatpush1.bf16.xpose.msra.mxu0 0
        %1158 = vmatprep.subr.bf16.mxu0 0
        %1159 = vmatpush1.bf16.xpose.msra.mxu0 0
        %1160 = vmatprep.subr.bf16.mxu0 0
        %1161 = vmatpush1.bf16.xpose.msra.mxu0 0
        %1162 = vmatprep.subr.bf16.mxu0 0
        %1163 = vmatpush1.bf16.xpose.msra.mxu0 0
        %1164 = vmatprep.subr.bf16.mxu0 0
        %1165 = vmatpush1.bf16.xpose.msra.mxu0 0
        %1166 = vmatprep.mubr.bf16.mxu0 0
        %1167 = vmatmul.mubr.bf16.gmra.mrb[0].mxu0 %v1129
        %v1168 = vpop.f32.mrb[0].mxu0
        %v1169 = vadd.f32 %v406, %v1168
        %v1170 = vpop.f32.mrb[0].mxu0
        %v1171 = vpop.f32.mrb[0].mxu0
        %v1172 = vpop.f32.mrb[0].mxu0
        %1173 = vdwg.mxu0
        %v1174 = vsel %vm989, %v1031, -inf
        %1175 = vmax.xlane.f32.xlu0 %v1174
        %v1176 = vpop.xlane.xlu0 %1175
        %v1177 = vsel %vm989, %v1077, -inf
        %1178 = vmax.xlane.f32.xlu0 %v1177
        %v1179 = vpop.xlane.xlu0 %1178
        %v1180 = vsel %vm989, %v1123, -inf
        %1181 = vmax.xlane.f32.xlu0 %v1180
        %v1182 = vpop.xlane.xlu0 %1181
        %v1183 = vsel %vm989, %v1169, -inf
        %1184 = vmax.xlane.f32.xlu0 %v1183
        %v1185 = vpop.xlane.xlu0 %1184
        %v1186 = vsub.f32 %v1031, %v1176
        %v1187 = vsub.f32 %v1077, %v1179
        %v1188 = vsub.f32 %v1123, %v1182
        %v1189 = vsub.f32 %v1169, %v1185
        %v1190 = vmul.f32 %v1186, 1.442695
        %v1191 = vpow.pop %v1190
        %v1192 = vmul.f32 %v1187, 1.442695
        %v1193 = vpow.pop %v1192
        %v1194 = vmul.f32 %v1188, 1.442695
        %v1195 = vpow.pop %v1194
        %v1196 = vmul.f32 %v1189, 1.442695
        %v1197 = vpow.pop %v1196
        %v1198 = vsel %vm989, %v1191, 0.0
        %1199 = vadd.xlane.f32.xlu0 %v1198
        %v1200 = vpop.xlane.xlu0 %1199
        %v1201 = vsel %vm989, %v1193, 0.0
        %1202 = vadd.xlane.f32.xlu0 %v1201
        %v1203 = vpop.xlane.xlu0 %1202
        %v1204 = vsel %vm989, %v1195, 0.0
        %1205 = vadd.xlane.f32.xlu0 %v1204
        %v1206 = vpop.xlane.xlu0 %1205
        %v1207 = vsel %vm989, %v1197, 0.0
        %1208 = vadd.xlane.f32.xlu0 %v1207
        %v1209 = vpop.xlane.xlu0 %1208
        %v1210 = vrcp.pop %v1200
        %v1211 = vrcp.pop %v1203
        %v1212 = vrcp.pop %v1206
        %v1213 = vrcp.pop %v1209
        %v1214 = vmul.f32 %v1191, %v1210
        %v1215 = vmul.f32 %v1193, %v1211
        %v1216 = vmul.f32 %v1195, %v1212
        %v1217 = vmul.f32 %v1197, %v1213
        %v1218 = vpack.c.bf16 %v1214, %v1214
        %v1219 = vpack.c.bf16 %v1215, %v1215
        %v1220 = vpack.c.bf16 %v1216, %v1216
        %v1221 = vpack.c.bf16 %v1217, %v1217
        %v1222 = vpack.c.bf16 %v856, %v856
        %v1223 = vpack.c.bf16 %v896, %v896
        %v1224 = vpack.c.bf16 %v936, %v936
        %v1225 = vpack.c.bf16 %v976, %v976
        %v1227 = vsel %vm989, %v1218, 0
        %vm1229 = vcmask 1043456
        %v1231 = vsel %vm1229, %v1222, 0
        %1233 = vmatprep.subr.bf16.mxu0 0
        %1234 = vmatpush1.bf16.msra.mxu0 %v1231
        %1235 = vmatprep.subr.bf16.mxu0 0
        %1236 = vmatpush1.bf16.msra.mxu0 0
        %1237 = vmatprep.subr.bf16.mxu0 0
        %1238 = vmatpush1.bf16.msra.mxu0 0
        %1239 = vmatprep.subr.bf16.mxu0 0
        %1240 = vmatpush1.bf16.msra.mxu0 0
        %1241 = vmatprep.subr.bf16.mxu0 0
        %1242 = vmatpush1.bf16.msra.mxu0 0
        %1243 = vmatprep.subr.bf16.mxu0 0
        %1244 = vmatpush1.bf16.msra.mxu0 0
        %1245 = vmatprep.subr.bf16.mxu0 0
        %1246 = vmatpush1.bf16.msra.mxu0 0
        %1247 = vmatprep.subr.bf16.mxu0 0
        %1248 = vmatpush1.bf16.msra.mxu0 0
        %1249 = vmatprep.subr.bf16.mxu0 0
        %1250 = vmatpush1.bf16.msra.mxu0 0
        %1251 = vmatprep.subr.bf16.mxu0 0
        %1252 = vmatpush1.bf16.msra.mxu0 0
        %1253 = vmatprep.subr.bf16.mxu0 0
        %1254 = vmatpush1.bf16.msra.mxu0 0
        %1255 = vmatprep.subr.bf16.mxu0 0
        %1256 = vmatpush1.bf16.msra.mxu0 0
        %1257 = vmatprep.subr.bf16.mxu0 0
        %1258 = vmatpush1.bf16.msra.mxu0 0
        %1259 = vmatprep.subr.bf16.mxu0 0
        %1260 = vmatpush1.bf16.msra.mxu0 0
        %1261 = vmatprep.subr.bf16.mxu0 0
        %1262 = vmatpush1.bf16.msra.mxu0 0
        %1263 = vmatprep.subr.bf16.mxu0 0
        %1264 = vmatpush1.bf16.msra.mxu0 0
        %1265 = vmatprep.mubr.bf16.mxu0 0
        %1266 = vmatmul.mubr.bf16.gmra.mrb[0].mxu0 %v1227
        %v1267 = vpop.f32.mrb[0].mxu0
        %v1268 = vadd.f32 0.0, %v1267
        %v1269 = vpop.f32.mrb[0].mxu0
        %v1270 = vpop.f32.mrb[0].mxu0
        %v1271 = vpop.f32.mrb[0].mxu0
        %1272 = vdwg.mxu0
        %v1274 = vsel %vm989, %v1219, 0
        %v1277 = vsel %vm1229, %v1223, 0
        %1279 = vmatprep.subr.bf16.mxu0 0
        %1280 = vmatpush1.bf16.msra.mxu0 %v1277
        %1281 = vmatprep.subr.bf16.mxu0 0
        %1282 = vmatpush1.bf16.msra.mxu0 0
        %1283 = vmatprep.subr.bf16.mxu0 0
        %1284 = vmatpush1.bf16.msra.mxu0 0
        %1285 = vmatprep.subr.bf16.mxu0 0
        %1286 = vmatpush1.bf16.msra.mxu0 0
        %1287 = vmatprep.subr.bf16.mxu0 0
        %1288 = vmatpush1.bf16.msra.mxu0 0
        %1289 = vmatprep.subr.bf16.mxu0 0
        %1290 = vmatpush1.bf16.msra.mxu0 0
        %1291 = vmatprep.subr.bf16.mxu0 0
        %1292 = vmatpush1.bf16.msra.mxu0 0
        %1293 = vmatprep.subr.bf16.mxu0 0
        %1294 = vmatpush1.bf16.msra.mxu0 0
        %1295 = vmatprep.subr.bf16.mxu0 0
        %1296 = vmatpush1.bf16.msra.mxu0 0
        %1297 = vmatprep.subr.bf16.mxu0 0
        %1298 = vmatpush1.bf16.msra.mxu0 0
        %1299 = vmatprep.subr.bf16.mxu0 0
        %1300 = vmatpush1.bf16.msra.mxu0 0
        %1301 = vmatprep.subr.bf16.mxu0 0
        %1302 = vmatpush1.bf16.msra.mxu0 0
        %1303 = vmatprep.subr.bf16.mxu0 0
        %1304 = vmatpush1.bf16.msra.mxu0 0
        %1305 = vmatprep.subr.bf16.mxu0 0
        %1306 = vmatpush1.bf16.msra.mxu0 0
        %1307 = vmatprep.subr.bf16.mxu0 0
        %1308 = vmatpush1.bf16.msra.mxu0 0
        %1309 = vmatprep.subr.bf16.mxu0 0
        %1310 = vmatpush1.bf16.msra.mxu0 0
        %1311 = vmatprep.mubr.bf16.mxu0 0
        %1312 = vmatmul.mubr.bf16.gmra.mrb[0].mxu0 %v1274
        %v1313 = vpop.f32.mrb[0].mxu0
        %v1314 = vadd.f32 0.0, %v1313
        %v1315 = vpop.f32.mrb[0].mxu0
        %v1316 = vpop.f32.mrb[0].mxu0
        %v1317 = vpop.f32.mrb[0].mxu0
        %1318 = vdwg.mxu0
        %v1320 = vsel %vm989, %v1220, 0
        %v1323 = vsel %vm1229, %v1224, 0
        %1325 = vmatprep.subr.bf16.mxu0 0
        %1326 = vmatpush1.bf16.msra.mxu0 %v1323
        %1327 = vmatprep.subr.bf16.mxu0 0
        %1328 = vmatpush1.bf16.msra.mxu0 0
        %1329 = vmatprep.subr.bf16.mxu0 0
        %1330 = vmatpush1.bf16.msra.mxu0 0
        %1331 = vmatprep.subr.bf16.mxu0 0
        %1332 = vmatpush1.bf16.msra.mxu0 0
        %1333 = vmatprep.subr.bf16.mxu0 0
        %1334 = vmatpush1.bf16.msra.mxu0 0
        %1335 = vmatprep.subr.bf16.mxu0 0
        %1336 = vmatpush1.bf16.msra.mxu0 0
        %1337 = vmatprep.subr.bf16.mxu0 0
        %1338 = vmatpush1.bf16.msra.mxu0 0
        %1339 = vmatprep.subr.bf16.mxu0 0
        %1340 = vmatpush1.bf16.msra.mxu0 0
        %1341 = vmatprep.subr.bf16.mxu0 0
        %1342 = vmatpush1.bf16.msra.mxu0 0
        %1343 = vmatprep.subr.bf16.mxu0 0
        %1344 = vmatpush1.bf16.msra.mxu0 0
        %1345 = vmatprep.subr.bf16.mxu0 0
        %1346 = vmatpush1.bf16.msra.mxu0 0
        %1347 = vmatprep.subr.bf16.mxu0 0
        %1348 = vmatpush1.bf16.msra.mxu0 0
        %1349 = vmatprep.subr.bf16.mxu0 0
        %1350 = vmatpush1.bf16.msra.mxu0 0
        %1351 = vmatprep.subr.bf16.mxu0 0
        %1352 = vmatpush1.bf16.msra.mxu0 0
        %1353 = vmatprep.subr.bf16.mxu0 0
        %1354 = vmatpush1.bf16.msra.mxu0 0
        %1355 = vmatprep.subr.bf16.mxu0 0
        %1356 = vmatpush1.bf16.msra.mxu0 0
        %1357 = vmatprep.mubr.bf16.mxu0 0
        %1358 = vmatmul.mubr.bf16.gmra.mrb[0].mxu0 %v1320
        %v1359 = vpop.f32.mrb[0].mxu0
        %v1360 = vadd.f32 0.0, %v1359
        %v1361 = vpop.f32.mrb[0].mxu0
        %v1362 = vpop.f32.mrb[0].mxu0
        %v1363 = vpop.f32.mrb[0].mxu0
        %1364 = vdwg.mxu0
        %v1366 = vsel %vm989, %v1221, 0
        %v1369 = vsel %vm1229, %v1225, 0
        %1371 = vmatprep.subr.bf16.mxu0 0
        %1372 = vmatpush1.bf16.msra.mxu0 %v1369
        %1373 = vmatprep.subr.bf16.mxu0 0
        %1374 = vmatpush1.bf16.msra.mxu0 0
        %1375 = vmatprep.subr.bf16.mxu0 0
        %1376 = vmatpush1.bf16.msra.mxu0 0
        %1377 = vmatprep.subr.bf16.mxu0 0
        %1378 = vmatpush1.bf16.msra.mxu0 0
        %1379 = vmatprep.subr.bf16.mxu0 0
        %1380 = vmatpush1.bf16.msra.mxu0 0
        %1381 = vmatprep.subr.bf16.mxu0 0
        %1382 = vmatpush1.bf16.msra.mxu0 0
        %1383 = vmatprep.subr.bf16.mxu0 0
        %1384 = vmatpush1.bf16.msra.mxu0 0
        %1385 = vmatprep.subr.bf16.mxu0 0
        %1386 = vmatpush1.bf16.msra.mxu0 0
        %1387 = vmatprep.subr.bf16.mxu0 0
        %1388 = vmatpush1.bf16.msra.mxu0 0
        %1389 = vmatprep.subr.bf16.mxu0 0
        %1390 = vmatpush1.bf16.msra.mxu0 0
        %1391 = vmatprep.subr.bf16.mxu0 0
        %1392 = vmatpush1.bf16.msra.mxu0 0
        %1393 = vmatprep.subr.bf16.mxu0 0
        %1394 = vmatpush1.bf16.msra.mxu0 0
        %1395 = vmatprep.subr.bf16.mxu0 0
        %1396 = vmatpush1.bf16.msra.mxu0 0
        %1397 = vmatprep.subr.bf16.mxu0 0
        %1398 = vmatpush1.bf16.msra.mxu0 0
        %1399 = vmatprep.subr.bf16.mxu0 0
        %1400 = vmatpush1.bf16.msra.mxu0 0
        %1401 = vmatprep.subr.bf16.mxu0 0
        %1402 = vmatpush1.bf16.msra.mxu0 0
        %1403 = vmatprep.mubr.bf16.mxu0 0
        %1404 = vmatmul.mubr.bf16.gmra.mrb[0].mxu0 %v1366
        %v1405 = vpop.f32.mrb[0].mxu0
        %v1406 = vadd.f32 0.0, %v1405
        %v1407 = vpop.f32.mrb[0].mxu0
        %v1408 = vpop.f32.mrb[0].mxu0
        %v1409 = vpop.f32.mrb[0].mxu0
        %1410 = vdwg.mxu0
        %v1411 = vpack.c.bf16 %v1268, %v1268
        %v1412 = vpack.c.bf16 %v1314, %v1314
        %v1413 = vpack.c.bf16 %v1360, %v1360
        %v1414 = vpack.c.bf16 %v1406, %v1406
        %v1415 = vld [vmem:[%s6] sm:$0xff]
        %v1416 = vld [vmem:[%s6 + $0x8] sm:$0xff]
        %v1417 = vld [vmem:[%s6 + $0x10] sm:$0xff]
        %v1418 = vld [vmem:[%s6 + $0x18] sm:$0xff]
        %v1419 = vpack.c.bf16 %v1415, %v1415
        %v1420 = vpack.c.bf16 %v1416, %v1416
        %v1421 = vpack.c.bf16 %v1417, %v1417
        %v1422 = vpack.c.bf16 %v1418, %v1418
        %v1424 = vsel %vm989, %v1411, 0
        %v1427 = vsel %vm1229, %v1419, 0
        %1429 = vmatprep.subr.bf16.mxu0 0
        %1430 = vmatpush1.bf16.msra.mxu0 %v1427
        %1431 = vmatprep.subr.bf16.mxu0 0
        %1432 = vmatpush1.bf16.msra.mxu0 0
        %1433 = vmatprep.subr.bf16.mxu0 0
        %1434 = vmatpush1.bf16.msra.mxu0 0
        %1435 = vmatprep.subr.bf16.mxu0 0
        %1436 = vmatpush1.bf16.msra.mxu0 0
        %1437 = vmatprep.subr.bf16.mxu0 0
        %1438 = vmatpush1.bf16.msra.mxu0 0
        %1439 = vmatprep.subr.bf16.mxu0 0
        %1440 = vmatpush1.bf16.msra.mxu0 0
        %1441 = vmatprep.subr.bf16.mxu0 0
        %1442 = vmatpush1.bf16.msra.mxu0 0
        %1443 = vmatprep.subr.bf16.mxu0 0
        %1444 = vmatpush1.bf16.msra.mxu0 0
        %1445 = vmatprep.subr.bf16.mxu0 0
        %1446 = vmatpush1.bf16.msra.mxu0 0
        %1447 = vmatprep.subr.bf16.mxu0 0
        %1448 = vmatpush1.bf16.msra.mxu0 0
        %1449 = vmatprep.subr.bf16.mxu0 0
        %1450 = vmatpush1.bf16.msra.mxu0 0
        %1451 = vmatprep.subr.bf16.mxu0 0
        %1452 = vmatpush1.bf16.msra.mxu0 0
        %1453 = vmatprep.subr.bf16.mxu0 0
        %1454 = vmatpush1.bf16.msra.mxu0 0
        %1455 = vmatprep.subr.bf16.mxu0 0
        %1456 = vmatpush1.bf16.msra.mxu0 0
        %1457 = vmatprep.subr.bf16.mxu0 0
        %1458 = vmatpush1.bf16.msra.mxu0 0
        %1459 = vmatprep.subr.bf16.mxu0 0
        %1460 = vmatpush1.bf16.msra.mxu0 0
        %1461 = vmatprep.mubr.bf16.mxu0 0
        %1462 = vmatmul.mubr.bf16.gmra.mrb[0].mxu0 %v1424
        %v1463 = vpop.f32.mrb[0].mxu0
        %v1464 = vadd.f32 0.0, %v1463
        %v1465 = vpop.f32.mrb[0].mxu0
        %v1466 = vpop.f32.mrb[0].mxu0
        %v1467 = vpop.f32.mrb[0].mxu0
        %1468 = vdwg.mxu0
        %v1470 = vsel %vm989, %v1412, 0
        %v1473 = vsel %vm1229, %v1420, 0
        %1475 = vmatprep.subr.bf16.mxu0 0
        %1476 = vmatpush1.bf16.msra.mxu0 %v1473
        %1477 = vmatprep.subr.bf16.mxu0 0
        %1478 = vmatpush1.bf16.msra.mxu0 0
        %1479 = vmatprep.subr.bf16.mxu0 0
        %1480 = vmatpush1.bf16.msra.mxu0 0
        %1481 = vmatprep.subr.bf16.mxu0 0
        %1482 = vmatpush1.bf16.msra.mxu0 0
        %1483 = vmatprep.subr.bf16.mxu0 0
        %1484 = vmatpush1.bf16.msra.mxu0 0
        %1485 = vmatprep.subr.bf16.mxu0 0
        %1486 = vmatpush1.bf16.msra.mxu0 0
        %1487 = vmatprep.subr.bf16.mxu0 0
        %1488 = vmatpush1.bf16.msra.mxu0 0
        %1489 = vmatprep.subr.bf16.mxu0 0
        %1490 = vmatpush1.bf16.msra.mxu0 0
        %1491 = vmatprep.subr.bf16.mxu0 0
        %1492 = vmatpush1.bf16.msra.mxu0 0
        %1493 = vmatprep.subr.bf16.mxu0 0
        %1494 = vmatpush1.bf16.msra.mxu0 0
        %1495 = vmatprep.subr.bf16.mxu0 0
        %1496 = vmatpush1.bf16.msra.mxu0 0
        %1497 = vmatprep.subr.bf16.mxu0 0
        %1498 = vmatpush1.bf16.msra.mxu0 0
        %1499 = vmatprep.subr.bf16.mxu0 0
        %1500 = vmatpush1.bf16.msra.mxu0 0
        %1501 = vmatprep.subr.bf16.mxu0 0
        %1502 = vmatpush1.bf16.msra.mxu0 0
        %1503 = vmatprep.subr.bf16.mxu0 0
        %1504 = vmatpush1.bf16.msra.mxu0 0
        %1505 = vmatprep.subr.bf16.mxu0 0
        %1506 = vmatpush1.bf16.msra.mxu0 0
        %1507 = vmatprep.mubr.bf16.mxu0 0
        %1508 = vmatmul.mubr.bf16.gmra.mrb[0].mxu0 %v1470
        %v1509 = vpop.f32.mrb[0].mxu0
        %v1510 = vadd.f32 0.0, %v1509
        %v1511 = vpop.f32.mrb[0].mxu0
        %v1512 = vpop.f32.mrb[0].mxu0
        %v1513 = vpop.f32.mrb[0].mxu0
        %1514 = vdwg.mxu0
        %v1516 = vsel %vm989, %v1413, 0
        %v1519 = vsel %vm1229, %v1421, 0
        %1521 = vmatprep.subr.bf16.mxu0 0
        %1522 = vmatpush1.bf16.msra.mxu0 %v1519
        %1523 = vmatprep.subr.bf16.mxu0 0
        %1524 = vmatpush1.bf16.msra.mxu0 0
        %1525 = vmatprep.subr.bf16.mxu0 0
        %1526 = vmatpush1.bf16.msra.mxu0 0
        %1527 = vmatprep.subr.bf16.mxu0 0
        %1528 = vmatpush1.bf16.msra.mxu0 0
        %1529 = vmatprep.subr.bf16.mxu0 0
        %1530 = vmatpush1.bf16.msra.mxu0 0
        %1531 = vmatprep.subr.bf16.mxu0 0
        %1532 = vmatpush1.bf16.msra.mxu0 0
        %1533 = vmatprep.subr.bf16.mxu0 0
        %1534 = vmatpush1.bf16.msra.mxu0 0
        %1535 = vmatprep.subr.bf16.mxu0 0
        %1536 = vmatpush1.bf16.msra.mxu0 0
        %1537 = vmatprep.subr.bf16.mxu0 0
        %1538 = vmatpush1.bf16.msra.mxu0 0
        %1539 = vmatprep.subr.bf16.mxu0 0
        %1540 = vmatpush1.bf16.msra.mxu0 0
        %1541 = vmatprep.subr.bf16.mxu0 0
        %1542 = vmatpush1.bf16.msra.mxu0 0
        %1543 = vmatprep.subr.bf16.mxu0 0
        %1544 = vmatpush1.bf16.msra.mxu0 0
        %1545 = vmatprep.subr.bf16.mxu0 0
        %1546 = vmatpush1.bf16.msra.mxu0 0
        %1547 = vmatprep.subr.bf16.mxu0 0
        %1548 = vmatpush1.bf16.msra.mxu0 0
        %1549 = vmatprep.subr.bf16.mxu0 0
        %1550 = vmatpush1.bf16.msra.mxu0 0
        %1551 = vmatprep.subr.bf16.mxu0 0
        %1552 = vmatpush1.bf16.msra.mxu0 0
        %1553 = vmatprep.mubr.bf16.mxu0 0
        %1554 = vmatmul.mubr.bf16.gmra.mrb[0].mxu0 %v1516
        %v1555 = vpop.f32.mrb[0].mxu0
        %v1556 = vadd.f32 0.0, %v1555
        %v1557 = vpop.f32.mrb[0].mxu0
        %v1558 = vpop.f32.mrb[0].mxu0
        %v1559 = vpop.f32.mrb[0].mxu0
        %1560 = vdwg.mxu0
        %v1562 = vsel %vm989, %v1414, 0
        %v1565 = vsel %vm1229, %v1422, 0
        %1567 = vmatprep.subr.bf16.mxu0 0
        %1568 = vmatpush1.bf16.msra.mxu0 %v1565
        %1569 = vmatprep.subr.bf16.mxu0 0
        %1570 = vmatpush1.bf16.msra.mxu0 0
        %1571 = vmatprep.subr.bf16.mxu0 0
        %1572 = vmatpush1.bf16.msra.mxu0 0
        %1573 = vmatprep.subr.bf16.mxu0 0
        %1574 = vmatpush1.bf16.msra.mxu0 0
        %1575 = vmatprep.subr.bf16.mxu0 0
        %1576 = vmatpush1.bf16.msra.mxu0 0
        %1577 = vmatprep.subr.bf16.mxu0 0
        %1578 = vmatpush1.bf16.msra.mxu0 0
        %1579 = vmatprep.subr.bf16.mxu0 0
        %1580 = vmatpush1.bf16.msra.mxu0 0
        %1581 = vmatprep.subr.bf16.mxu0 0
        %1582 = vmatpush1.bf16.msra.mxu0 0
        %1583 = vmatprep.subr.bf16.mxu0 0
        %1584 = vmatpush1.bf16.msra.mxu0 0
        %1585 = vmatprep.subr.bf16.mxu0 0
        %1586 = vmatpush1.bf16.msra.mxu0 0
        %1587 = vmatprep.subr.bf16.mxu0 0
        %1588 = vmatpush1.bf16.msra.mxu0 0
        %1589 = vmatprep.subr.bf16.mxu0 0
        %1590 = vmatpush1.bf16.msra.mxu0 0
        %1591 = vmatprep.subr.bf16.mxu0 0
        %1592 = vmatpush1.bf16.msra.mxu0 0
        %1593 = vmatprep.subr.bf16.mxu0 0
        %1594 = vmatpush1.bf16.msra.mxu0 0
        %1595 = vmatprep.subr.bf16.mxu0 0
        %1596 = vmatpush1.bf16.msra.mxu0 0
        %1597 = vmatprep.subr.bf16.mxu0 0
        %1598 = vmatpush1.bf16.msra.mxu0 0
        %1599 = vmatprep.mubr.bf16.mxu0 0
        %1600 = vmatmul.mubr.bf16.gmra.mrb[0].mxu0 %v1562
        %v1601 = vpop.f32.mrb[0].mxu0
        %v1602 = vadd.f32 0.0, %v1601
        %v1603 = vpop.f32.mrb[0].mxu0
        %v1604 = vpop.f32.mrb[0].mxu0
        %v1605 = vpop.f32.mrb[0].mxu0
        %1606 = vdwg.mxu0
        %v1607 = vsel %vm409, %v1464, 0.0
        %v1608 = vsel %vm409, %v1510, 0.0
        %v1609 = vadd.f32 %v1607, %v1608
        %v1610 = vsel %vm409, %v1556, 0.0
        %v1611 = vadd.f32 %v1609, %v1610
        %v1612 = vsel %vm409, %v1602, 0.0
        %v1613 = vadd.f32 %v1611, %v1612
        %v1614 = vadd.f32 %v402, %v1613
        %v1615 = vld [vmem:[%s7] sm:$0x1]
        %v1616 = vmul.f32 %v1614, %v1614
        %v1617 = vsel %vm409, %v1616, 0.0
        %1618 = vadd.xlane.f32.xlu0 %v1617
        %v1619 = vpop.xlane.xlu0 %1618
        %v1620 = vmul.f32 %v1619, %v413
        %v1621 = vadd.f32 %v1620, 1e-06
        %v1622 = vrsqrt.pop %v1621
        %v1623 = vmul.f32 %v1614, %v1622
        %v1625 = vlaneseq
        %v1626 = vshrl.u32 %v1625, 7
        %v1627 = vsub.s32 0, %v1626
        %v1628 = vrot.slane %v1615, %v1627
        %v1630 = vmul.f32 %v1623, %v1628
        %v1631 = vpack.c.bf16 %v1630, %v1630
        %v1632 = vld [vmem:[%s8] sm:$0xff]
        %v1633 = vld [vmem:[%s8 + $0x8] sm:$0xff]
        %v1634 = vld [vmem:[%s8 + $0x10] sm:$0xff]
        %v1635 = vld [vmem:[%s8 + $0x18] sm:$0xff]
        %v1636 = vpack.c.bf16 %v1633, %v1632
        %v1637 = vpack.c.bf16 %v1635, %v1634
        %v1639 = vsel %vm409, %v1631, 0
        %1641 = vmatprep.subr.bf16.mxu0 0
        %1642 = vmatpush1.bf16.msra.mxu0 %v1636
        %1643 = vmatprep.subr.bf16.mxu0 0
        %1644 = vmatpush1.bf16.msra.mxu0 %v1637
        %1645 = vmatprep.subr.bf16.mxu0 0
        %1646 = vmatpush1.bf16.msra.mxu0 0
        %1647 = vmatprep.subr.bf16.mxu0 0
        %1648 = vmatpush1.bf16.msra.mxu0 0
        %1649 = vmatprep.subr.bf16.mxu0 0
        %1650 = vmatpush1.bf16.msra.mxu0 0
        %1651 = vmatprep.subr.bf16.mxu0 0
        %1652 = vmatpush1.bf16.msra.mxu0 0
        %1653 = vmatprep.subr.bf16.mxu0 0
        %1654 = vmatpush1.bf16.msra.mxu0 0
        %1655 = vmatprep.subr.bf16.mxu0 0
        %1656 = vmatpush1.bf16.msra.mxu0 0
        %1657 = vmatprep.subr.bf16.mxu0 0
        %1658 = vmatpush1.bf16.msra.mxu0 0
        %1659 = vmatprep.subr.bf16.mxu0 0
        %1660 = vmatpush1.bf16.msra.mxu0 0
        %1661 = vmatprep.subr.bf16.mxu0 0
        %1662 = vmatpush1.bf16.msra.mxu0 0
        %1663 = vmatprep.subr.bf16.mxu0 0
        %1664 = vmatpush1.bf16.msra.mxu0 0
        %1665 = vmatprep.subr.bf16.mxu0 0
        %1666 = vmatpush1.bf16.msra.mxu0 0
        %1667 = vmatprep.subr.bf16.mxu0 0
        %1668 = vmatpush1.bf16.msra.mxu0 0
        %1669 = vmatprep.subr.bf16.mxu0 0
        %1670 = vmatpush1.bf16.msra.mxu0 0
        %1671 = vmatprep.subr.bf16.mxu0 0
        %1672 = vmatpush1.bf16.msra.mxu0 0
        %1673 = vmatprep.mubr.bf16.mxu0 0
        %1674 = vmatmul.mubr.bf16.gmra.mrb[0].mxu0 %v1639
        %v1675 = vpop.f32.mrb[0].mxu0
        %v1676 = vadd.f32 0.0, %v1675
        %v1677 = vpop.f32.mrb[0].mxu0
        %v1678 = vpop.f32.mrb[0].mxu0
        %v1679 = vpop.f32.mrb[0].mxu0
        %1680 = vdwg.mxu0
        %v1681 = vmax.f32 %v1676, 0.0
        %v1682 = vpack.c.bf16 %v1681, %v1681
        %v1683 = vld [vmem:[%s9] sm:$0xff]
        %v1684 = vld [vmem:[%s9 + $0x8] sm:$0xff]
        %v1685 = vld [vmem:[%s9 + $0x10] sm:$0xff]
        %v1686 = vld [vmem:[%s9 + $0x18] sm:$0xff]
        %v1687 = vld [vmem:[%s9 + $0x20] sm:$0xff]
        %v1688 = vld [vmem:[%s9 + $0x28] sm:$0xff]
        %v1689 = vld [vmem:[%s9 + $0x30] sm:$0xff]
        %v1690 = vld [vmem:[%s9 + $0x38] sm:$0xff]
        %v1691 = vpack.c.bf16 %v1684, %v1683
        %v1692 = vpack.c.bf16 %v1686, %v1685
        %v1693 = vpack.c.bf16 %v1688, %v1687
        %v1694 = vpack.c.bf16 %v1690, %v1689
        %vm1695 = vcmask 523264
        %v1697 = vsel %vm1695, %v1682, 0
        %1699 = vmatprep.subr.bf16.mxu0 0
        %1700 = vmatpush1.bf16.msra.mxu0 %v1691
        %1701 = vmatprep.subr.bf16.mxu0 0
        %1702 = vmatpush1.bf16.msra.mxu0 %v1692
        %1703 = vmatprep.subr.bf16.mxu0 0
        %1704 = vmatpush1.bf16.msra.mxu0 %v1693
        %1705 = vmatprep.subr.bf16.mxu0 0
        %1706 = vmatpush1.bf16.msra.mxu0 %v1694
        %1707 = vmatprep.subr.bf16.mxu0 0
        %1708 = vmatpush1.bf16.msra.mxu0 0
        %1709 = vmatprep.subr.bf16.mxu0 0
        %1710 = vmatpush1.bf16.msra.mxu0 0
        %1711 = vmatprep.subr.bf16.mxu0 0
        %1712 = vmatpush1.bf16.msra.mxu0 0
        %1713 = vmatprep.subr.bf16.mxu0 0
        %1714 = vmatpush1.bf16.msra.mxu0 0
        %1715 = vmatprep.subr.bf16.mxu0 0
        %1716 = vmatpush1.bf16.msra.mxu0 0
        %1717 = vmatprep.subr.bf16.mxu0 0
        %1718 = vmatpush1.bf16.msra.mxu0 0
        %1719 = vmatprep.subr.bf16.mxu0 0
        %1720 = vmatpush1.bf16.msra.mxu0 0
        %1721 = vmatprep.subr.bf16.mxu0 0
        %1722 = vmatpush1.bf16.msra.mxu0 0
        %1723 = vmatprep.subr.bf16.mxu0 0
        %1724 = vmatpush1.bf16.msra.mxu0 0
        %1725 = vmatprep.subr.bf16.mxu0 0
        %1726 = vmatpush1.bf16.msra.mxu0 0
        %1727 = vmatprep.subr.bf16.mxu0 0
        %1728 = vmatpush1.bf16.msra.mxu0 0
        %1729 = vmatprep.subr.bf16.mxu0 0
        %1730 = vmatpush1.bf16.msra.mxu0 0
        %1731 = vmatprep.mubr.bf16.mxu0 0
        %1732 = vmatmul.mubr.bf16.gmra.mrb[0].mxu0 %v1697
        %v1733 = vpop.f32.mrb[0].mxu0
        %v1734 = vadd.f32 0.0, %v1733
        %v1735 = vpop.f32.mrb[0].mxu0
        %v1736 = vpop.f32.mrb[0].mxu0
        %v1737 = vpop.f32.mrb[0].mxu0
        %1738 = vdwg.mxu0
        %v1739 = vadd.f32 %v1614, %v1734
        %s1740 = scalar_lea.vmem %s2, 1
        %v1741 = vld [vmem:[%s1740] sm:$0x1]
        %v1742 = vmul.f32 %v1739, %v1739
        %v1743 = vsel %vm409, %v1742, 0.0
        %1744 = vadd.xlane.f32.xlu0 %v1743
        %v1745 = vpop.xlane.xlu0 %1744
        %v1746 = vmul.f32 %v1745, %v413
        %v1747 = vadd.f32 %v1746, 1e-06
        %v1748 = vrsqrt.pop %v1747
        %v1749 = vmul.f32 %v1739, %v1748
        %v1751 = vlaneseq
        %v1752 = vshrl.u32 %v1751, 7
        %v1753 = vsub.s32 0, %v1752
        %v1754 = vrot.slane %v1741, %v1753
        %v1756 = vmul.f32 %v1749, %v1754
        %v1757 = vpack.c.bf16 %v1756, %v1756
        %s1758 = scalar_lea.vmem %s3, 128
        %v1759 = vld [vmem:[%s1758] sm:$0xff]
        %v1760 = vld [vmem:[%s1758 + $0x8] sm:$0xff]
        %v1761 = vld [vmem:[%s1758 + $0x10] sm:$0xff]
        %v1762 = vld [vmem:[%s1758 + $0x18] sm:$0xff]
        %v1763 = vld [vmem:[%s1758 + $0x20] sm:$0xff]
        %v1764 = vld [vmem:[%s1758 + $0x28] sm:$0xff]
        %v1765 = vld [vmem:[%s1758 + $0x30] sm:$0xff]
        %v1766 = vld [vmem:[%s1758 + $0x38] sm:$0xff]
        %v1767 = vld [vmem:[%s1758 + $0x40] sm:$0xff]
        %v1768 = vld [vmem:[%s1758 + $0x48] sm:$0xff]
        %v1769 = vld [vmem:[%s1758 + $0x50] sm:$0xff]
        %v1770 = vld [vmem:[%s1758 + $0x58] sm:$0xff]
        %v1771 = vld [vmem:[%s1758 + $0x60] sm:$0xff]
        %v1772 = vld [vmem:[%s1758 + $0x68] sm:$0xff]
        %v1773 = vld [vmem:[%s1758 + $0x70] sm:$0xff]
        %v1774 = vld [vmem:[%s1758 + $0x78] sm:$0xff]
        %v1775 = vpack.c.bf16 %v1760, %v1759
        %v1776 = vpack.c.bf16 %v1762, %v1761
        %v1777 = vpack.c.bf16 %v1764, %v1763
        %v1778 = vpack.c.bf16 %v1766, %v1765
        %v1779 = vpack.c.bf16 %v1768, %v1767
        %v1780 = vpack.c.bf16 %v1770, %v1769
        %v1781 = vpack.c.bf16 %v1772, %v1771
        %v1782 = vpack.c.bf16 %v1774, %v1773
        %v1784 = vsel %vm409, %v1757, 0
        %1786 = vmatprep.subr.bf16.mxu0 0
        %1787 = vmatpush1.bf16.msra.mxu0 %v1775
        %1788 = vmatprep.subr.bf16.mxu0 0
        %1789 = vmatpush1.bf16.msra.mxu0 %v1776
        %1790 = vmatprep.subr.bf16.mxu0 0
        %1791 = vmatpush1.bf16.msra.mxu0 0
        %1792 = vmatprep.subr.bf16.mxu0 0
        %1793 = vmatpush1.bf16.msra.mxu0 0
        %1794 = vmatprep.subr.bf16.mxu0 0
        %1795 = vmatpush1.bf16.msra.mxu0 0
        %1796 = vmatprep.subr.bf16.mxu0 0
        %1797 = vmatpush1.bf16.msra.mxu0 0
        %1798 = vmatprep.subr.bf16.mxu0 0
        %1799 = vmatpush1.bf16.msra.mxu0 0
        %1800 = vmatprep.subr.bf16.mxu0 0
        %1801 = vmatpush1.bf16.msra.mxu0 0
        %1802 = vmatprep.subr.bf16.mxu0 0
        %1803 = vmatpush1.bf16.msra.mxu0 0
        %1804 = vmatprep.subr.bf16.mxu0 0
        %1805 = vmatpush1.bf16.msra.mxu0 0
        %1806 = vmatprep.subr.bf16.mxu0 0
        %1807 = vmatpush1.bf16.msra.mxu0 0
        %1808 = vmatprep.subr.bf16.mxu0 0
        %1809 = vmatpush1.bf16.msra.mxu0 0
        %1810 = vmatprep.subr.bf16.mxu0 0
        %1811 = vmatpush1.bf16.msra.mxu0 0
        %1812 = vmatprep.subr.bf16.mxu0 0
        %1813 = vmatpush1.bf16.msra.mxu0 0
        %1814 = vmatprep.subr.bf16.mxu0 0
        %1815 = vmatpush1.bf16.msra.mxu0 0
        %1816 = vmatprep.subr.bf16.mxu0 0
        %1817 = vmatpush1.bf16.msra.mxu0 0
        %1818 = vmatprep.mubr.bf16.mxu0 0
        %1819 = vmatmul.mubr.bf16.gmra.mrb[0].mxu0 %v1784
        %v1820 = vpop.f32.mrb[0].mxu0
        %v1821 = vadd.f32 0.0, %v1820
        %v1822 = vpop.f32.mrb[0].mxu0
        %v1823 = vpop.f32.mrb[0].mxu0
        %v1824 = vpop.f32.mrb[0].mxu0
        %1825 = vdwg.mxu0
        %1826 = vmatprep.subr.bf16.mxu0 0
        %1827 = vmatpush1.bf16.msra.mxu0 %v1777
        %1828 = vmatprep.subr.bf16.mxu0 0
        %1829 = vmatpush1.bf16.msra.mxu0 %v1778
        %1830 = vmatprep.subr.bf16.mxu0 0
        %1831 = vmatpush1.bf16.msra.mxu0 0
        %1832 = vmatprep.subr.bf16.mxu0 0
        %1833 = vmatpush1.bf16.msra.mxu0 0
        %1834 = vmatprep.subr.bf16.mxu0 0
        %1835 = vmatpush1.bf16.msra.mxu0 0
        %1836 = vmatprep.subr.bf16.mxu0 0
        %1837 = vmatpush1.bf16.msra.mxu0 0
        %1838 = vmatprep.subr.bf16.mxu0 0
        %1839 = vmatpush1.bf16.msra.mxu0 0
        %1840 = vmatprep.subr.bf16.mxu0 0
        %1841 = vmatpush1.bf16.msra.mxu0 0
        %1842 = vmatprep.subr.bf16.mxu0 0
        %1843 = vmatpush1.bf16.msra.mxu0 0
        %1844 = vmatprep.subr.bf16.mxu0 0
        %1845 = vmatpush1.bf16.msra.mxu0 0
        %1846 = vmatprep.subr.bf16.mxu0 0
        %1847 = vmatpush1.bf16.msra.mxu0 0
        %1848 = vmatprep.subr.bf16.mxu0 0
        %1849 = vmatpush1.bf16.msra.mxu0 0
        %1850 = vmatprep.subr.bf16.mxu0 0
        %1851 = vmatpush1.bf16.msra.mxu0 0
        %1852 = vmatprep.subr.bf16.mxu0 0
        %1853 = vmatpush1.bf16.msra.mxu0 0
        %1854 = vmatprep.subr.bf16.mxu0 0
        %1855 = vmatpush1.bf16.msra.mxu0 0
        %1856 = vmatprep.subr.bf16.mxu0 0
        %1857 = vmatpush1.bf16.msra.mxu0 0
        %1858 = vmatprep.mubr.bf16.mxu0 0
        %1859 = vmatmul.mubr.bf16.gmra.mrb[0].mxu0 %v1784
        %v1860 = vpop.f32.mrb[0].mxu0
        %v1861 = vadd.f32 0.0, %v1860
        %v1862 = vpop.f32.mrb[0].mxu0
        %v1863 = vpop.f32.mrb[0].mxu0
        %v1864 = vpop.f32.mrb[0].mxu0
        %1865 = vdwg.mxu0
        %1866 = vmatprep.subr.bf16.mxu0 0
        %1867 = vmatpush1.bf16.msra.mxu0 %v1779
        %1868 = vmatprep.subr.bf16.mxu0 0
        %1869 = vmatpush1.bf16.msra.mxu0 %v1780
        %1870 = vmatprep.subr.bf16.mxu0 0
        %1871 = vmatpush1.bf16.msra.mxu0 0
        %1872 = vmatprep.subr.bf16.mxu0 0
        %1873 = vmatpush1.bf16.msra.mxu0 0
        %1874 = vmatprep.subr.bf16.mxu0 0
        %1875 = vmatpush1.bf16.msra.mxu0 0
        %1876 = vmatprep.subr.bf16.mxu0 0
        %1877 = vmatpush1.bf16.msra.mxu0 0
        %1878 = vmatprep.subr.bf16.mxu0 0
        %1879 = vmatpush1.bf16.msra.mxu0 0
        %1880 = vmatprep.subr.bf16.mxu0 0
        %1881 = vmatpush1.bf16.msra.mxu0 0
        %1882 = vmatprep.subr.bf16.mxu0 0
        %1883 = vmatpush1.bf16.msra.mxu0 0
        %1884 = vmatprep.subr.bf16.mxu0 0
        %1885 = vmatpush1.bf16.msra.mxu0 0
        %1886 = vmatprep.subr.bf16.mxu0 0
        %1887 = vmatpush1.bf16.msra.mxu0 0
        %1888 = vmatprep.subr.bf16.mxu0 0
        %1889 = vmatpush1.bf16.msra.mxu0 0
        %1890 = vmatprep.subr.bf16.mxu0 0
        %1891 = vmatpush1.bf16.msra.mxu0 0
        %1892 = vmatprep.subr.bf16.mxu0 0
        %1893 = vmatpush1.bf16.msra.mxu0 0
        %1894 = vmatprep.subr.bf16.mxu0 0
        %1895 = vmatpush1.bf16.msra.mxu0 0
        %1896 = vmatprep.subr.bf16.mxu0 0
        %1897 = vmatpush1.bf16.msra.mxu0 0
        %1898 = vmatprep.mubr.bf16.mxu0 0
        %1899 = vmatmul.mubr.bf16.gmra.mrb[0].mxu0 %v1784
        %v1900 = vpop.f32.mrb[0].mxu0
        %v1901 = vadd.f32 0.0, %v1900
        %v1902 = vpop.f32.mrb[0].mxu0
        %v1903 = vpop.f32.mrb[0].mxu0
        %v1904 = vpop.f32.mrb[0].mxu0
        %1905 = vdwg.mxu0
        %1906 = vmatprep.subr.bf16.mxu0 0
        %1907 = vmatpush1.bf16.msra.mxu0 %v1781
        %1908 = vmatprep.subr.bf16.mxu0 0
        %1909 = vmatpush1.bf16.msra.mxu0 %v1782
        %1910 = vmatprep.subr.bf16.mxu0 0
        %1911 = vmatpush1.bf16.msra.mxu0 0
        %1912 = vmatprep.subr.bf16.mxu0 0
        %1913 = vmatpush1.bf16.msra.mxu0 0
        %1914 = vmatprep.subr.bf16.mxu0 0
        %1915 = vmatpush1.bf16.msra.mxu0 0
        %1916 = vmatprep.subr.bf16.mxu0 0
        %1917 = vmatpush1.bf16.msra.mxu0 0
        %1918 = vmatprep.subr.bf16.mxu0 0
        %1919 = vmatpush1.bf16.msra.mxu0 0
        %1920 = vmatprep.subr.bf16.mxu0 0
        %1921 = vmatpush1.bf16.msra.mxu0 0
        %1922 = vmatprep.subr.bf16.mxu0 0
        %1923 = vmatpush1.bf16.msra.mxu0 0
        %1924 = vmatprep.subr.bf16.mxu0 0
        %1925 = vmatpush1.bf16.msra.mxu0 0
        %1926 = vmatprep.subr.bf16.mxu0 0
        %1927 = vmatpush1.bf16.msra.mxu0 0
        %1928 = vmatprep.subr.bf16.mxu0 0
        %1929 = vmatpush1.bf16.msra.mxu0 0
        %1930 = vmatprep.subr.bf16.mxu0 0
        %1931 = vmatpush1.bf16.msra.mxu0 0
        %1932 = vmatprep.subr.bf16.mxu0 0
        %1933 = vmatpush1.bf16.msra.mxu0 0
        %1934 = vmatprep.subr.bf16.mxu0 0
        %1935 = vmatpush1.bf16.msra.mxu0 0
        %1936 = vmatprep.subr.bf16.mxu0 0
        %1937 = vmatpush1.bf16.msra.mxu0 0
        %1938 = vmatprep.mubr.bf16.mxu0 0
        %1939 = vmatmul.mubr.bf16.gmra.mrb[0].mxu0 %v1784
        %v1940 = vpop.f32.mrb[0].mxu0
        %v1941 = vadd.f32 0.0, %v1940
        %v1942 = vpop.f32.mrb[0].mxu0
        %v1943 = vpop.f32.mrb[0].mxu0
        %v1944 = vpop.f32.mrb[0].mxu0
        %1945 = vdwg.mxu0
        %s1946 = scalar_lea.vmem %s4, 128
        %v1947 = vld [vmem:[%s1946] sm:$0xff]
        %v1948 = vld [vmem:[%s1946 + $0x8] sm:$0xff]
        %v1949 = vld [vmem:[%s1946 + $0x10] sm:$0xff]
        %v1950 = vld [vmem:[%s1946 + $0x18] sm:$0xff]
        %v1951 = vld [vmem:[%s1946 + $0x20] sm:$0xff]
        %v1952 = vld [vmem:[%s1946 + $0x28] sm:$0xff]
        %v1953 = vld [vmem:[%s1946 + $0x30] sm:$0xff]
        %v1954 = vld [vmem:[%s1946 + $0x38] sm:$0xff]
        %v1955 = vld [vmem:[%s1946 + $0x40] sm:$0xff]
        %v1956 = vld [vmem:[%s1946 + $0x48] sm:$0xff]
        %v1957 = vld [vmem:[%s1946 + $0x50] sm:$0xff]
        %v1958 = vld [vmem:[%s1946 + $0x58] sm:$0xff]
        %v1959 = vld [vmem:[%s1946 + $0x60] sm:$0xff]
        %v1960 = vld [vmem:[%s1946 + $0x68] sm:$0xff]
        %v1961 = vld [vmem:[%s1946 + $0x70] sm:$0xff]
        %v1962 = vld [vmem:[%s1946 + $0x78] sm:$0xff]
        %v1963 = vpack.c.bf16 %v1948, %v1947
        %v1964 = vpack.c.bf16 %v1950, %v1949
        %v1965 = vpack.c.bf16 %v1952, %v1951
        %v1966 = vpack.c.bf16 %v1954, %v1953
        %v1967 = vpack.c.bf16 %v1956, %v1955
        %v1968 = vpack.c.bf16 %v1958, %v1957
        %v1969 = vpack.c.bf16 %v1960, %v1959
        %v1970 = vpack.c.bf16 %v1962, %v1961
        %1971 = vmatprep.subr.bf16.mxu0 0
        %1972 = vmatpush1.bf16.msra.mxu0 %v1963
        %1973 = vmatprep.subr.bf16.mxu0 0
        %1974 = vmatpush1.bf16.msra.mxu0 %v1964
        %1975 = vmatprep.subr.bf16.mxu0 0
        %1976 = vmatpush1.bf16.msra.mxu0 0
        %1977 = vmatprep.subr.bf16.mxu0 0
        %1978 = vmatpush1.bf16.msra.mxu0 0
        %1979 = vmatprep.subr.bf16.mxu0 0
        %1980 = vmatpush1.bf16.msra.mxu0 0
        %1981 = vmatprep.subr.bf16.mxu0 0
        %1982 = vmatpush1.bf16.msra.mxu0 0
        %1983 = vmatprep.subr.bf16.mxu0 0
        %1984 = vmatpush1.bf16.msra.mxu0 0
        %1985 = vmatprep.subr.bf16.mxu0 0
        %1986 = vmatpush1.bf16.msra.mxu0 0
        %1987 = vmatprep.subr.bf16.mxu0 0
        %1988 = vmatpush1.bf16.msra.mxu0 0
        %1989 = vmatprep.subr.bf16.mxu0 0
        %1990 = vmatpush1.bf16.msra.mxu0 0
        %1991 = vmatprep.subr.bf16.mxu0 0
        %1992 = vmatpush1.bf16.msra.mxu0 0
        %1993 = vmatprep.subr.bf16.mxu0 0
        %1994 = vmatpush1.bf16.msra.mxu0 0
        %1995 = vmatprep.subr.bf16.mxu0 0
        %1996 = vmatpush1.bf16.msra.mxu0 0
        %1997 = vmatprep.subr.bf16.mxu0 0
        %1998 = vmatpush1.bf16.msra.mxu0 0
        %1999 = vmatprep.subr.bf16.mxu0 0
        %2000 = vmatpush1.bf16.msra.mxu0 0
        %2001 = vmatprep.subr.bf16.mxu0 0
        %2002 = vmatpush1.bf16.msra.mxu0 0
        %2003 = vmatprep.mubr.bf16.mxu0 0
        %2004 = vmatmul.mubr.bf16.gmra.mrb[0].mxu0 %v1784
        %v2005 = vpop.f32.mrb[0].mxu0
        %v2006 = vadd.f32 0.0, %v2005
        %v2007 = vpop.f32.mrb[0].mxu0
        %v2008 = vpop.f32.mrb[0].mxu0
        %v2009 = vpop.f32.mrb[0].mxu0
        %2010 = vdwg.mxu0
        %2011 = vmatprep.subr.bf16.mxu0 0
        %2012 = vmatpush1.bf16.msra.mxu0 %v1965
        %2013 = vmatprep.subr.bf16.mxu0 0
        %2014 = vmatpush1.bf16.msra.mxu0 %v1966
        %2015 = vmatprep.subr.bf16.mxu0 0
        %2016 = vmatpush1.bf16.msra.mxu0 0
        %2017 = vmatprep.subr.bf16.mxu0 0
        %2018 = vmatpush1.bf16.msra.mxu0 0
        %2019 = vmatprep.subr.bf16.mxu0 0
        %2020 = vmatpush1.bf16.msra.mxu0 0
        %2021 = vmatprep.subr.bf16.mxu0 0
        %2022 = vmatpush1.bf16.msra.mxu0 0
        %2023 = vmatprep.subr.bf16.mxu0 0
        %2024 = vmatpush1.bf16.msra.mxu0 0
        %2025 = vmatprep.subr.bf16.mxu0 0
        %2026 = vmatpush1.bf16.msra.mxu0 0
        %2027 = vmatprep.subr.bf16.mxu0 0
        %2028 = vmatpush1.bf16.msra.mxu0 0
        %2029 = vmatprep.subr.bf16.mxu0 0
        %2030 = vmatpush1.bf16.msra.mxu0 0
        %2031 = vmatprep.subr.bf16.mxu0 0
        %2032 = vmatpush1.bf16.msra.mxu0 0
        %2033 = vmatprep.subr.bf16.mxu0 0
        %2034 = vmatpush1.bf16.msra.mxu0 0
        %2035 = vmatprep.subr.bf16.mxu0 0
        %2036 = vmatpush1.bf16.msra.mxu0 0
        %2037 = vmatprep.subr.bf16.mxu0 0
        %2038 = vmatpush1.bf16.msra.mxu0 0
        %2039 = vmatprep.subr.bf16.mxu0 0
        %2040 = vmatpush1.bf16.msra.mxu0 0
        %2041 = vmatprep.subr.bf16.mxu0 0
        %2042 = vmatpush1.bf16.msra.mxu0 0
        %2043 = vmatprep.mubr.bf16.mxu0 0
        %2044 = vmatmul.mubr.bf16.gmra.mrb[0].mxu0 %v1784
        %v2045 = vpop.f32.mrb[0].mxu0
        %v2046 = vadd.f32 0.0, %v2045
        %v2047 = vpop.f32.mrb[0].mxu0
        %v2048 = vpop.f32.mrb[0].mxu0
        %v2049 = vpop.f32.mrb[0].mxu0
        %2050 = vdwg.mxu0
        %2051 = vmatprep.subr.bf16.mxu0 0
        %2052 = vmatpush1.bf16.msra.mxu0 %v1967
        %2053 = vmatprep.subr.bf16.mxu0 0
        %2054 = vmatpush1.bf16.msra.mxu0 %v1968
        %2055 = vmatprep.subr.bf16.mxu0 0
        %2056 = vmatpush1.bf16.msra.mxu0 0
        %2057 = vmatprep.subr.bf16.mxu0 0
        %2058 = vmatpush1.bf16.msra.mxu0 0
        %2059 = vmatprep.subr.bf16.mxu0 0
        %2060 = vmatpush1.bf16.msra.mxu0 0
        %2061 = vmatprep.subr.bf16.mxu0 0
        %2062 = vmatpush1.bf16.msra.mxu0 0
        %2063 = vmatprep.subr.bf16.mxu0 0
        %2064 = vmatpush1.bf16.msra.mxu0 0
        %2065 = vmatprep.subr.bf16.mxu0 0
        %2066 = vmatpush1.bf16.msra.mxu0 0
        %2067 = vmatprep.subr.bf16.mxu0 0
        %2068 = vmatpush1.bf16.msra.mxu0 0
        %2069 = vmatprep.subr.bf16.mxu0 0
        %2070 = vmatpush1.bf16.msra.mxu0 0
        %2071 = vmatprep.subr.bf16.mxu0 0
        %2072 = vmatpush1.bf16.msra.mxu0 0
        %2073 = vmatprep.subr.bf16.mxu0 0
        %2074 = vmatpush1.bf16.msra.mxu0 0
        %2075 = vmatprep.subr.bf16.mxu0 0
        %2076 = vmatpush1.bf16.msra.mxu0 0
        %2077 = vmatprep.subr.bf16.mxu0 0
        %2078 = vmatpush1.bf16.msra.mxu0 0
        %2079 = vmatprep.subr.bf16.mxu0 0
        %2080 = vmatpush1.bf16.msra.mxu0 0
        %2081 = vmatprep.subr.bf16.mxu0 0
        %2082 = vmatpush1.bf16.msra.mxu0 0
        %2083 = vmatprep.mubr.bf16.mxu0 0
        %2084 = vmatmul.mubr.bf16.gmra.mrb[0].mxu0 %v1784
        %v2085 = vpop.f32.mrb[0].mxu0
        %v2086 = vadd.f32 0.0, %v2085
        %v2087 = vpop.f32.mrb[0].mxu0
        %v2088 = vpop.f32.mrb[0].mxu0
        %v2089 = vpop.f32.mrb[0].mxu0
        %2090 = vdwg.mxu0
        %2091 = vmatprep.subr.bf16.mxu0 0
        %2092 = vmatpush1.bf16.msra.mxu0 %v1969
        %2093 = vmatprep.subr.bf16.mxu0 0
        %2094 = vmatpush1.bf16.msra.mxu0 %v1970
        %2095 = vmatprep.subr.bf16.mxu0 0
        %2096 = vmatpush1.bf16.msra.mxu0 0
        %2097 = vmatprep.subr.bf16.mxu0 0
        %2098 = vmatpush1.bf16.msra.mxu0 0
        %2099 = vmatprep.subr.bf16.mxu0 0
        %2100 = vmatpush1.bf16.msra.mxu0 0
        %2101 = vmatprep.subr.bf16.mxu0 0
        %2102 = vmatpush1.bf16.msra.mxu0 0
        %2103 = vmatprep.subr.bf16.mxu0 0
        %2104 = vmatpush1.bf16.msra.mxu0 0
        %2105 = vmatprep.subr.bf16.mxu0 0
        %2106 = vmatpush1.bf16.msra.mxu0 0
        %2107 = vmatprep.subr.bf16.mxu0 0
        %2108 = vmatpush1.bf16.msra.mxu0 0
        %2109 = vmatprep.subr.bf16.mxu0 0
        %2110 = vmatpush1.bf16.msra.mxu0 0
        %2111 = vmatprep.subr.bf16.mxu0 0
        %2112 = vmatpush1.bf16.msra.mxu0 0
        %2113 = vmatprep.subr.bf16.mxu0 0
        %2114 = vmatpush1.bf16.msra.mxu0 0
        %2115 = vmatprep.subr.bf16.mxu0 0
        %2116 = vmatpush1.bf16.msra.mxu0 0
        %2117 = vmatprep.subr.bf16.mxu0 0
        %2118 = vmatpush1.bf16.msra.mxu0 0
        %2119 = vmatprep.subr.bf16.mxu0 0
        %2120 = vmatpush1.bf16.msra.mxu0 0
        %2121 = vmatprep.subr.bf16.mxu0 0
        %2122 = vmatpush1.bf16.msra.mxu0 0
        %2123 = vmatprep.mubr.bf16.mxu0 0
        %2124 = vmatmul.mubr.bf16.gmra.mrb[0].mxu0 %v1784
        %v2125 = vpop.f32.mrb[0].mxu0
        %v2126 = vadd.f32 0.0, %v2125
        %v2127 = vpop.f32.mrb[0].mxu0
        %v2128 = vpop.f32.mrb[0].mxu0
        %v2129 = vpop.f32.mrb[0].mxu0
        %2130 = vdwg.mxu0
        %s2131 = scalar_lea.vmem %s5, 128
        %v2132 = vld [vmem:[%s2131] sm:$0xff]
        %v2133 = vld [vmem:[%s2131 + $0x8] sm:$0xff]
        %v2134 = vld [vmem:[%s2131 + $0x10] sm:$0xff]
        %v2135 = vld [vmem:[%s2131 + $0x18] sm:$0xff]
        %v2136 = vld [vmem:[%s2131 + $0x20] sm:$0xff]
        %v2137 = vld [vmem:[%s2131 + $0x28] sm:$0xff]
        %v2138 = vld [vmem:[%s2131 + $0x30] sm:$0xff]
        %v2139 = vld [vmem:[%s2131 + $0x38] sm:$0xff]
        %v2140 = vld [vmem:[%s2131 + $0x40] sm:$0xff]
        %v2141 = vld [vmem:[%s2131 + $0x48] sm:$0xff]
        %v2142 = vld [vmem:[%s2131 + $0x50] sm:$0xff]
        %v2143 = vld [vmem:[%s2131 + $0x58] sm:$0xff]
        %v2144 = vld [vmem:[%s2131 + $0x60] sm:$0xff]
        %v2145 = vld [vmem:[%s2131 + $0x68] sm:$0xff]
        %v2146 = vld [vmem:[%s2131 + $0x70] sm:$0xff]
        %v2147 = vld [vmem:[%s2131 + $0x78] sm:$0xff]
        %v2148 = vpack.c.bf16 %v2133, %v2132
        %v2149 = vpack.c.bf16 %v2135, %v2134
        %v2150 = vpack.c.bf16 %v2137, %v2136
        %v2151 = vpack.c.bf16 %v2139, %v2138
        %v2152 = vpack.c.bf16 %v2141, %v2140
        %v2153 = vpack.c.bf16 %v2143, %v2142
        %v2154 = vpack.c.bf16 %v2145, %v2144
        %v2155 = vpack.c.bf16 %v2147, %v2146
        %2156 = vmatprep.subr.bf16.mxu0 0
        %2157 = vmatpush1.bf16.msra.mxu0 %v2148
        %2158 = vmatprep.subr.bf16.mxu0 0
        %2159 = vmatpush1.bf16.msra.mxu0 %v2149
        %2160 = vmatprep.subr.bf16.mxu0 0
        %2161 = vmatpush1.bf16.msra.mxu0 0
        %2162 = vmatprep.subr.bf16.mxu0 0
        %2163 = vmatpush1.bf16.msra.mxu0 0
        %2164 = vmatprep.subr.bf16.mxu0 0
        %2165 = vmatpush1.bf16.msra.mxu0 0
        %2166 = vmatprep.subr.bf16.mxu0 0
        %2167 = vmatpush1.bf16.msra.mxu0 0
        %2168 = vmatprep.subr.bf16.mxu0 0
        %2169 = vmatpush1.bf16.msra.mxu0 0
        %2170 = vmatprep.subr.bf16.mxu0 0
        %2171 = vmatpush1.bf16.msra.mxu0 0
        %2172 = vmatprep.subr.bf16.mxu0 0
        %2173 = vmatpush1.bf16.msra.mxu0 0
        %2174 = vmatprep.subr.bf16.mxu0 0
        %2175 = vmatpush1.bf16.msra.mxu0 0
        %2176 = vmatprep.subr.bf16.mxu0 0
        %2177 = vmatpush1.bf16.msra.mxu0 0
        %2178 = vmatprep.subr.bf16.mxu0 0
        %2179 = vmatpush1.bf16.msra.mxu0 0
        %2180 = vmatprep.subr.bf16.mxu0 0
        %2181 = vmatpush1.bf16.msra.mxu0 0
        %2182 = vmatprep.subr.bf16.mxu0 0
        %2183 = vmatpush1.bf16.msra.mxu0 0
        %2184 = vmatprep.subr.bf16.mxu0 0
        %2185 = vmatpush1.bf16.msra.mxu0 0
        %2186 = vmatprep.subr.bf16.mxu0 0
        %2187 = vmatpush1.bf16.msra.mxu0 0
        %2188 = vmatprep.mubr.bf16.mxu0 0
        %2189 = vmatmul.mubr.bf16.gmra.mrb[0].mxu0 %v1784
        %v2190 = vpop.f32.mrb[0].mxu0
        %v2191 = vadd.f32 0.0, %v2190
        %v2192 = vpop.f32.mrb[0].mxu0
        %v2193 = vpop.f32.mrb[0].mxu0
        %v2194 = vpop.f32.mrb[0].mxu0
        %2195 = vdwg.mxu0
        %2196 = vmatprep.subr.bf16.mxu0 0
        %2197 = vmatpush1.bf16.msra.mxu0 %v2150
        %2198 = vmatprep.subr.bf16.mxu0 0
        %2199 = vmatpush1.bf16.msra.mxu0 %v2151
        %2200 = vmatprep.subr.bf16.mxu0 0
        %2201 = vmatpush1.bf16.msra.mxu0 0
        %2202 = vmatprep.subr.bf16.mxu0 0
        %2203 = vmatpush1.bf16.msra.mxu0 0
        %2204 = vmatprep.subr.bf16.mxu0 0
        %2205 = vmatpush1.bf16.msra.mxu0 0
        %2206 = vmatprep.subr.bf16.mxu0 0
        %2207 = vmatpush1.bf16.msra.mxu0 0
        %2208 = vmatprep.subr.bf16.mxu0 0
        %2209 = vmatpush1.bf16.msra.mxu0 0
        %2210 = vmatprep.subr.bf16.mxu0 0
        %2211 = vmatpush1.bf16.msra.mxu0 0
        %2212 = vmatprep.subr.bf16.mxu0 0
        %2213 = vmatpush1.bf16.msra.mxu0 0
        %2214 = vmatprep.subr.bf16.mxu0 0
        %2215 = vmatpush1.bf16.msra.mxu0 0
        %2216 = vmatprep.subr.bf16.mxu0 0
        %2217 = vmatpush1.bf16.msra.mxu0 0
        %2218 = vmatprep.subr.bf16.mxu0 0
        %2219 = vmatpush1.bf16.msra.mxu0 0
        %2220 = vmatprep.subr.bf16.mxu0 0
        %2221 = vmatpush1.bf16.msra.mxu0 0
        %2222 = vmatprep.subr.bf16.mxu0 0
        %2223 = vmatpush1.bf16.msra.mxu0 0
        %2224 = vmatprep.subr.bf16.mxu0 0
        %2225 = vmatpush1.bf16.msra.mxu0 0
        %2226 = vmatprep.subr.bf16.mxu0 0
        %2227 = vmatpush1.bf16.msra.mxu0 0
        %2228 = vmatprep.mubr.bf16.mxu0 0
        %2229 = vmatmul.mubr.bf16.gmra.mrb[0].mxu0 %v1784
        %v2230 = vpop.f32.mrb[0].mxu0
        %v2231 = vadd.f32 0.0, %v2230
        %v2232 = vpop.f32.mrb[0].mxu0
        %v2233 = vpop.f32.mrb[0].mxu0
        %v2234 = vpop.f32.mrb[0].mxu0
        %2235 = vdwg.mxu0
        %2236 = vmatprep.subr.bf16.mxu0 0
        %2237 = vmatpush1.bf16.msra.mxu0 %v2152
        %2238 = vmatprep.subr.bf16.mxu0 0
        %2239 = vmatpush1.bf16.msra.mxu0 %v2153
        %2240 = vmatprep.subr.bf16.mxu0 0
        %2241 = vmatpush1.bf16.msra.mxu0 0
        %2242 = vmatprep.subr.bf16.mxu0 0
        %2243 = vmatpush1.bf16.msra.mxu0 0
        %2244 = vmatprep.subr.bf16.mxu0 0
        %2245 = vmatpush1.bf16.msra.mxu0 0
        %2246 = vmatprep.subr.bf16.mxu0 0
        %2247 = vmatpush1.bf16.msra.mxu0 0
        %2248 = vmatprep.subr.bf16.mxu0 0
        %2249 = vmatpush1.bf16.msra.mxu0 0
        %2250 = vmatprep.subr.bf16.mxu0 0
        %2251 = vmatpush1.bf16.msra.mxu0 0
        %2252 = vmatprep.subr.bf16.mxu0 0
        %2253 = vmatpush1.bf16.msra.mxu0 0
        %2254 = vmatprep.subr.bf16.mxu0 0
        %2255 = vmatpush1.bf16.msra.mxu0 0
        %2256 = vmatprep.subr.bf16.mxu0 0
        %2257 = vmatpush1.bf16.msra.mxu0 0
        %2258 = vmatprep.subr.bf16.mxu0 0
        %2259 = vmatpush1.bf16.msra.mxu0 0
        %2260 = vmatprep.subr.bf16.mxu0 0
        %2261 = vmatpush1.bf16.msra.mxu0 0
        %2262 = vmatprep.subr.bf16.mxu0 0
        %2263 = vmatpush1.bf16.msra.mxu0 0
        %2264 = vmatprep.subr.bf16.mxu0 0
        %2265 = vmatpush1.bf16.msra.mxu0 0
        %2266 = vmatprep.subr.bf16.mxu0 0
        %2267 = vmatpush1.bf16.msra.mxu0 0
        %2268 = vmatprep.mubr.bf16.mxu0 0
        %2269 = vmatmul.mubr.bf16.gmra.mrb[0].mxu0 %v1784
        %v2270 = vpop.f32.mrb[0].mxu0
        %v2271 = vadd.f32 0.0, %v2270
        %v2272 = vpop.f32.mrb[0].mxu0
        %v2273 = vpop.f32.mrb[0].mxu0
        %v2274 = vpop.f32.mrb[0].mxu0
        %2275 = vdwg.mxu0
        %2276 = vmatprep.subr.bf16.mxu0 0
        %2277 = vmatpush1.bf16.msra.mxu0 %v2154
        %2278 = vmatprep.subr.bf16.mxu0 0
        %2279 = vmatpush1.bf16.msra.mxu0 %v2155
        %2280 = vmatprep.subr.bf16.mxu0 0
        %2281 = vmatpush1.bf16.msra.mxu0 0
        %2282 = vmatprep.subr.bf16.mxu0 0
        %2283 = vmatpush1.bf16.msra.mxu0 0
        %2284 = vmatprep.subr.bf16.mxu0 0
        %2285 = vmatpush1.bf16.msra.mxu0 0
        %2286 = vmatprep.subr.bf16.mxu0 0
        %2287 = vmatpush1.bf16.msra.mxu0 0
        %2288 = vmatprep.subr.bf16.mxu0 0
        %2289 = vmatpush1.bf16.msra.mxu0 0
        %2290 = vmatprep.subr.bf16.mxu0 0
        %2291 = vmatpush1.bf16.msra.mxu0 0
        %2292 = vmatprep.subr.bf16.mxu0 0
        %2293 = vmatpush1.bf16.msra.mxu0 0
        %2294 = vmatprep.subr.bf16.mxu0 0
        %2295 = vmatpush1.bf16.msra.mxu0 0
        %2296 = vmatprep.subr.bf16.mxu0 0
        %2297 = vmatpush1.bf16.msra.mxu0 0
        %2298 = vmatprep.subr.bf16.mxu0 0
        %2299 = vmatpush1.bf16.msra.mxu0 0
        %2300 = vmatprep.subr.bf16.mxu0 0
        %2301 = vmatpush1.bf16.msra.mxu0 0
        %2302 = vmatprep.subr.bf16.mxu0 0
        %2303 = vmatpush1.bf16.msra.mxu0 0
        %2304 = vmatprep.subr.bf16.mxu0 0
        %2305 = vmatpush1.bf16.msra.mxu0 0
        %2306 = vmatprep.subr.bf16.mxu0 0
        %2307 = vmatpush1.bf16.msra.mxu0 0
        %2308 = vmatprep.mubr.bf16.mxu0 0
        %2309 = vmatmul.mubr.bf16.gmra.mrb[0].mxu0 %v1784
        %v2310 = vpop.f32.mrb[0].mxu0
        %v2311 = vadd.f32 0.0, %v2310
        %v2312 = vpop.f32.mrb[0].mxu0
        %v2313 = vpop.f32.mrb[0].mxu0
        %v2314 = vpop.f32.mrb[0].mxu0
        %2315 = vdwg.mxu0
        %v2316 = vpack.c.bf16 %v1821, %v1821
        %v2317 = vpack.c.bf16 %v1861, %v1861
        %v2318 = vpack.c.bf16 %v1901, %v1901
        %v2319 = vpack.c.bf16 %v1941, %v1941
        %v2320 = vpack.c.bf16 %v2006, %v2006
        %v2321 = vpack.c.bf16 %v2046, %v2046
        %v2322 = vpack.c.bf16 %v2086, %v2086
        %v2323 = vpack.c.bf16 %v2126, %v2126
        %v2325 = vsel %vm989, %v2316, 0
        %v2328 = vsel %vm989, %v2320, 0
        %2330 = vmatprep.subr.bf16.mxu0 0
        %2331 = vmatpush1.bf16.xpose.msra.mxu0 %v2328
        %2332 = vmatprep.subr.bf16.mxu0 0
        %2333 = vmatpush1.bf16.xpose.msra.mxu0 0
        %2334 = vmatprep.subr.bf16.mxu0 0
        %2335 = vmatpush1.bf16.xpose.msra.mxu0 0
        %2336 = vmatprep.subr.bf16.mxu0 0
        %2337 = vmatpush1.bf16.xpose.msra.mxu0 0
        %2338 = vmatprep.subr.bf16.mxu0 0
        %2339 = vmatpush1.bf16.xpose.msra.mxu0 0
        %2340 = vmatprep.subr.bf16.mxu0 0
        %2341 = vmatpush1.bf16.xpose.msra.mxu0 0
        %2342 = vmatprep.subr.bf16.mxu0 0
        %2343 = vmatpush1.bf16.xpose.msra.mxu0 0
        %2344 = vmatprep.subr.bf16.mxu0 0
        %2345 = vmatpush1.bf16.xpose.msra.mxu0 0
        %2346 = vmatprep.subr.bf16.mxu0 0
        %2347 = vmatpush1.bf16.xpose.msra.mxu0 0
        %2348 = vmatprep.subr.bf16.mxu0 0
        %2349 = vmatpush1.bf16.xpose.msra.mxu0 0
        %2350 = vmatprep.subr.bf16.mxu0 0
        %2351 = vmatpush1.bf16.xpose.msra.mxu0 0
        %2352 = vmatprep.subr.bf16.mxu0 0
        %2353 = vmatpush1.bf16.xpose.msra.mxu0 0
        %2354 = vmatprep.subr.bf16.mxu0 0
        %2355 = vmatpush1.bf16.xpose.msra.mxu0 0
        %2356 = vmatprep.subr.bf16.mxu0 0
        %2357 = vmatpush1.bf16.xpose.msra.mxu0 0
        %2358 = vmatprep.subr.bf16.mxu0 0
        %2359 = vmatpush1.bf16.xpose.msra.mxu0 0
        %2360 = vmatprep.subr.bf16.mxu0 0
        %2361 = vmatpush1.bf16.xpose.msra.mxu0 0
        %2362 = vmatprep.mubr.bf16.mxu0 0
        %2363 = vmatmul.mubr.bf16.gmra.mrb[0].mxu0 %v2325
        %v2364 = vpop.f32.mrb[0].mxu0
        %v2365 = vadd.f32 %v403, %v2364
        %v2366 = vpop.f32.mrb[0].mxu0
        %v2367 = vpop.f32.mrb[0].mxu0
        %v2368 = vpop.f32.mrb[0].mxu0
        %2369 = vdwg.mxu0
        %v2371 = vsel %vm989, %v2317, 0
        %v2374 = vsel %vm989, %v2321, 0
        %2376 = vmatprep.subr.bf16.mxu0 0
        %2377 = vmatpush1.bf16.xpose.msra.mxu0 %v2374
        %2378 = vmatprep.subr.bf16.mxu0 0
        %2379 = vmatpush1.bf16.xpose.msra.mxu0 0
        %2380 = vmatprep.subr.bf16.mxu0 0
        %2381 = vmatpush1.bf16.xpose.msra.mxu0 0
        %2382 = vmatprep.subr.bf16.mxu0 0
        %2383 = vmatpush1.bf16.xpose.msra.mxu0 0
        %2384 = vmatprep.subr.bf16.mxu0 0
        %2385 = vmatpush1.bf16.xpose.msra.mxu0 0
        %2386 = vmatprep.subr.bf16.mxu0 0
        %2387 = vmatpush1.bf16.xpose.msra.mxu0 0
        %2388 = vmatprep.subr.bf16.mxu0 0
        %2389 = vmatpush1.bf16.xpose.msra.mxu0 0
        %2390 = vmatprep.subr.bf16.mxu0 0
        %2391 = vmatpush1.bf16.xpose.msra.mxu0 0
        %2392 = vmatprep.subr.bf16.mxu0 0
        %2393 = vmatpush1.bf16.xpose.msra.mxu0 0
        %2394 = vmatprep.subr.bf16.mxu0 0
        %2395 = vmatpush1.bf16.xpose.msra.mxu0 0
        %2396 = vmatprep.subr.bf16.mxu0 0
        %2397 = vmatpush1.bf16.xpose.msra.mxu0 0
        %2398 = vmatprep.subr.bf16.mxu0 0
        %2399 = vmatpush1.bf16.xpose.msra.mxu0 0
        %2400 = vmatprep.subr.bf16.mxu0 0
        %2401 = vmatpush1.bf16.xpose.msra.mxu0 0
        %2402 = vmatprep.subr.bf16.mxu0 0
        %2403 = vmatpush1.bf16.xpose.msra.mxu0 0
        %2404 = vmatprep.subr.bf16.mxu0 0
        %2405 = vmatpush1.bf16.xpose.msra.mxu0 0
        %2406 = vmatprep.subr.bf16.mxu0 0
        %2407 = vmatpush1.bf16.xpose.msra.mxu0 0
        %2408 = vmatprep.mubr.bf16.mxu0 0
        %2409 = vmatmul.mubr.bf16.gmra.mrb[0].mxu0 %v2371
        %v2410 = vpop.f32.mrb[0].mxu0
        %v2411 = vadd.f32 %v404, %v2410
        %v2412 = vpop.f32.mrb[0].mxu0
        %v2413 = vpop.f32.mrb[0].mxu0
        %v2414 = vpop.f32.mrb[0].mxu0
        %2415 = vdwg.mxu0
        %v2417 = vsel %vm989, %v2318, 0
        %v2420 = vsel %vm989, %v2322, 0
        %2422 = vmatprep.subr.bf16.mxu0 0
        %2423 = vmatpush1.bf16.xpose.msra.mxu0 %v2420
        %2424 = vmatprep.subr.bf16.mxu0 0
        %2425 = vmatpush1.bf16.xpose.msra.mxu0 0
        %2426 = vmatprep.subr.bf16.mxu0 0
        %2427 = vmatpush1.bf16.xpose.msra.mxu0 0
        %2428 = vmatprep.subr.bf16.mxu0 0
        %2429 = vmatpush1.bf16.xpose.msra.mxu0 0
        %2430 = vmatprep.subr.bf16.mxu0 0
        %2431 = vmatpush1.bf16.xpose.msra.mxu0 0
        %2432 = vmatprep.subr.bf16.mxu0 0
        %2433 = vmatpush1.bf16.xpose.msra.mxu0 0
        %2434 = vmatprep.subr.bf16.mxu0 0
        %2435 = vmatpush1.bf16.xpose.msra.mxu0 0
        %2436 = vmatprep.subr.bf16.mxu0 0
        %2437 = vmatpush1.bf16.xpose.msra.mxu0 0
        %2438 = vmatprep.subr.bf16.mxu0 0
        %2439 = vmatpush1.bf16.xpose.msra.mxu0 0
        %2440 = vmatprep.subr.bf16.mxu0 0
        %2441 = vmatpush1.bf16.xpose.msra.mxu0 0
        %2442 = vmatprep.subr.bf16.mxu0 0
        %2443 = vmatpush1.bf16.xpose.msra.mxu0 0
        %2444 = vmatprep.subr.bf16.mxu0 0
        %2445 = vmatpush1.bf16.xpose.msra.mxu0 0
        %2446 = vmatprep.subr.bf16.mxu0 0
        %2447 = vmatpush1.bf16.xpose.msra.mxu0 0
        %2448 = vmatprep.subr.bf16.mxu0 0
        %2449 = vmatpush1.bf16.xpose.msra.mxu0 0
        %2450 = vmatprep.subr.bf16.mxu0 0
        %2451 = vmatpush1.bf16.xpose.msra.mxu0 0
        %2452 = vmatprep.subr.bf16.mxu0 0
        %2453 = vmatpush1.bf16.xpose.msra.mxu0 0
        %2454 = vmatprep.mubr.bf16.mxu0 0
        %2455 = vmatmul.mubr.bf16.gmra.mrb[0].mxu0 %v2417
        %v2456 = vpop.f32.mrb[0].mxu0
        %v2457 = vadd.f32 %v405, %v2456
        %v2458 = vpop.f32.mrb[0].mxu0
        %v2459 = vpop.f32.mrb[0].mxu0
        %v2460 = vpop.f32.mrb[0].mxu0
        %2461 = vdwg.mxu0
        %v2463 = vsel %vm989, %v2319, 0
        %v2466 = vsel %vm989, %v2323, 0
        %2468 = vmatprep.subr.bf16.mxu0 0
        %2469 = vmatpush1.bf16.xpose.msra.mxu0 %v2466
        %2470 = vmatprep.subr.bf16.mxu0 0
        %2471 = vmatpush1.bf16.xpose.msra.mxu0 0
        %2472 = vmatprep.subr.bf16.mxu0 0
        %2473 = vmatpush1.bf16.xpose.msra.mxu0 0
        %2474 = vmatprep.subr.bf16.mxu0 0
        %2475 = vmatpush1.bf16.xpose.msra.mxu0 0
        %2476 = vmatprep.subr.bf16.mxu0 0
        %2477 = vmatpush1.bf16.xpose.msra.mxu0 0
        %2478 = vmatprep.subr.bf16.mxu0 0
        %2479 = vmatpush1.bf16.xpose.msra.mxu0 0
        %2480 = vmatprep.subr.bf16.mxu0 0
        %2481 = vmatpush1.bf16.xpose.msra.mxu0 0
        %2482 = vmatprep.subr.bf16.mxu0 0
        %2483 = vmatpush1.bf16.xpose.msra.mxu0 0
        %2484 = vmatprep.subr.bf16.mxu0 0
        %2485 = vmatpush1.bf16.xpose.msra.mxu0 0
        %2486 = vmatprep.subr.bf16.mxu0 0
        %2487 = vmatpush1.bf16.xpose.msra.mxu0 0
        %2488 = vmatprep.subr.bf16.mxu0 0
        %2489 = vmatpush1.bf16.xpose.msra.mxu0 0
        %2490 = vmatprep.subr.bf16.mxu0 0
        %2491 = vmatpush1.bf16.xpose.msra.mxu0 0
        %2492 = vmatprep.subr.bf16.mxu0 0
        %2493 = vmatpush1.bf16.xpose.msra.mxu0 0
        %2494 = vmatprep.subr.bf16.mxu0 0
        %2495 = vmatpush1.bf16.xpose.msra.mxu0 0
        %2496 = vmatprep.subr.bf16.mxu0 0
        %2497 = vmatpush1.bf16.xpose.msra.mxu0 0
        %2498 = vmatprep.subr.bf16.mxu0 0
        %2499 = vmatpush1.bf16.xpose.msra.mxu0 0
        %2500 = vmatprep.mubr.bf16.mxu0 0
        %2501 = vmatmul.mubr.bf16.gmra.mrb[0].mxu0 %v2463
        %v2502 = vpop.f32.mrb[0].mxu0
        %v2503 = vadd.f32 %v406, %v2502
        %v2504 = vpop.f32.mrb[0].mxu0
        %v2505 = vpop.f32.mrb[0].mxu0
        %v2506 = vpop.f32.mrb[0].mxu0
        %2507 = vdwg.mxu0
        %v2508 = vsel %vm989, %v2365, -inf
        %2509 = vmax.xlane.f32.xlu0 %v2508
        %v2510 = vpop.xlane.xlu0 %2509
        %v2511 = vsel %vm989, %v2411, -inf
        %2512 = vmax.xlane.f32.xlu0 %v2511
        %v2513 = vpop.xlane.xlu0 %2512
        %v2514 = vsel %vm989, %v2457, -inf
        %2515 = vmax.xlane.f32.xlu0 %v2514
        %v2516 = vpop.xlane.xlu0 %2515
        %v2517 = vsel %vm989, %v2503, -inf
        %2518 = vmax.xlane.f32.xlu0 %v2517
        %v2519 = vpop.xlane.xlu0 %2518
        %v2520 = vsub.f32 %v2365, %v2510
        %v2521 = vsub.f32 %v2411, %v2513
        %v2522 = vsub.f32 %v2457, %v2516
        %v2523 = vsub.f32 %v2503, %v2519
        %v2524 = vmul.f32 %v2520, 1.442695
        %v2525 = vpow.pop %v2524
        %v2526 = vmul.f32 %v2521, 1.442695
        %v2527 = vpow.pop %v2526
        %v2528 = vmul.f32 %v2522, 1.442695
        %v2529 = vpow.pop %v2528
        %v2530 = vmul.f32 %v2523, 1.442695
        %v2531 = vpow.pop %v2530
        %v2532 = vsel %vm989, %v2525, 0.0
        %2533 = vadd.xlane.f32.xlu0 %v2532
        %v2534 = vpop.xlane.xlu0 %2533
        %v2535 = vsel %vm989, %v2527, 0.0
        %2536 = vadd.xlane.f32.xlu0 %v2535
        %v2537 = vpop.xlane.xlu0 %2536
        %v2538 = vsel %vm989, %v2529, 0.0
        %2539 = vadd.xlane.f32.xlu0 %v2538
        %v2540 = vpop.xlane.xlu0 %2539
        %v2541 = vsel %vm989, %v2531, 0.0
        %2542 = vadd.xlane.f32.xlu0 %v2541
        %v2543 = vpop.xlane.xlu0 %2542
        %v2544 = vrcp.pop %v2534
        %v2545 = vrcp.pop %v2537
        %v2546 = vrcp.pop %v2540
        %v2547 = vrcp.pop %v2543
        %v2548 = vmul.f32 %v2525, %v2544
        %v2549 = vmul.f32 %v2527, %v2545
        %v2550 = vmul.f32 %v2529, %v2546
        %v2551 = vmul.f32 %v2531, %v2547
        %v2552 = vpack.c.bf16 %v2548, %v2548
        %v2553 = vpack.c.bf16 %v2549, %v2549
        %v2554 = vpack.c.bf16 %v2550, %v2550
        %v2555 = vpack.c.bf16 %v2551, %v2551
        %v2556 = vpack.c.bf16 %v2191, %v2191
        %v2557 = vpack.c.bf16 %v2231, %v2231
        %v2558 = vpack.c.bf16 %v2271, %v2271
        %v2559 = vpack.c.bf16 %v2311, %v2311
        %v2561 = vsel %vm989, %v2552, 0
        %v2564 = vsel %vm1229, %v2556, 0
        %2566 = vmatprep.subr.bf16.mxu0 0
        %2567 = vmatpush1.bf16.msra.mxu0 %v2564
        %2568 = vmatprep.subr.bf16.mxu0 0
        %2569 = vmatpush1.bf16.msra.mxu0 0
        %2570 = vmatprep.subr.bf16.mxu0 0
        %2571 = vmatpush1.bf16.msra.mxu0 0
        %2572 = vmatprep.subr.bf16.mxu0 0
        %2573 = vmatpush1.bf16.msra.mxu0 0
        %2574 = vmatprep.subr.bf16.mxu0 0
        %2575 = vmatpush1.bf16.msra.mxu0 0
        %2576 = vmatprep.subr.bf16.mxu0 0
        %2577 = vmatpush1.bf16.msra.mxu0 0
        %2578 = vmatprep.subr.bf16.mxu0 0
        %2579 = vmatpush1.bf16.msra.mxu0 0
        %2580 = vmatprep.subr.bf16.mxu0 0
        %2581 = vmatpush1.bf16.msra.mxu0 0
        %2582 = vmatprep.subr.bf16.mxu0 0
        %2583 = vmatpush1.bf16.msra.mxu0 0
        %2584 = vmatprep.subr.bf16.mxu0 0
        %2585 = vmatpush1.bf16.msra.mxu0 0
        %2586 = vmatprep.subr.bf16.mxu0 0
        %2587 = vmatpush1.bf16.msra.mxu0 0
        %2588 = vmatprep.subr.bf16.mxu0 0
        %2589 = vmatpush1.bf16.msra.mxu0 0
        %2590 = vmatprep.subr.bf16.mxu0 0
        %2591 = vmatpush1.bf16.msra.mxu0 0
        %2592 = vmatprep.subr.bf16.mxu0 0
        %2593 = vmatpush1.bf16.msra.mxu0 0
        %2594 = vmatprep.subr.bf16.mxu0 0
        %2595 = vmatpush1.bf16.msra.mxu0 0
        %2596 = vmatprep.subr.bf16.mxu0 0
        %2597 = vmatpush1.bf16.msra.mxu0 0
        %2598 = vmatprep.mubr.bf16.mxu0 0
        %2599 = vmatmul.mubr.bf16.gmra.mrb[0].mxu0 %v2561
        %v2600 = vpop.f32.mrb[0].mxu0
        %v2601 = vadd.f32 0.0, %v2600
        %v2602 = vpop.f32.mrb[0].mxu0
        %v2603 = vpop.f32.mrb[0].mxu0
        %v2604 = vpop.f32.mrb[0].mxu0
        %2605 = vdwg.mxu0
        %v2607 = vsel %vm989, %v2553, 0
        %v2610 = vsel %vm1229, %v2557, 0
        %2612 = vmatprep.subr.bf16.mxu0 0
        %2613 = vmatpush1.bf16.msra.mxu0 %v2610
        %2614 = vmatprep.subr.bf16.mxu0 0
        %2615 = vmatpush1.bf16.msra.mxu0 0
        %2616 = vmatprep.subr.bf16.mxu0 0
        %2617 = vmatpush1.bf16.msra.mxu0 0
        %2618 = vmatprep.subr.bf16.mxu0 0
        %2619 = vmatpush1.bf16.msra.mxu0 0
        %2620 = vmatprep.subr.bf16.mxu0 0
        %2621 = vmatpush1.bf16.msra.mxu0 0
        %2622 = vmatprep.subr.bf16.mxu0 0
        %2623 = vmatpush1.bf16.msra.mxu0 0
        %2624 = vmatprep.subr.bf16.mxu0 0
        %2625 = vmatpush1.bf16.msra.mxu0 0
        %2626 = vmatprep.subr.bf16.mxu0 0
        %2627 = vmatpush1.bf16.msra.mxu0 0
        %2628 = vmatprep.subr.bf16.mxu0 0
        %2629 = vmatpush1.bf16.msra.mxu0 0
        %2630 = vmatprep.subr.bf16.mxu0 0
        %2631 = vmatpush1.bf16.msra.mxu0 0
        %2632 = vmatprep.subr.bf16.mxu0 0
        %2633 = vmatpush1.bf16.msra.mxu0 0
        %2634 = vmatprep.subr.bf16.mxu0 0
        %2635 = vmatpush1.bf16.msra.mxu0 0
        %2636 = vmatprep.subr.bf16.mxu0 0
        %2637 = vmatpush1.bf16.msra.mxu0 0
        %2638 = vmatprep.subr.bf16.mxu0 0
        %2639 = vmatpush1.bf16.msra.mxu0 0
        %2640 = vmatprep.subr.bf16.mxu0 0
        %2641 = vmatpush1.bf16.msra.mxu0 0
        %2642 = vmatprep.subr.bf16.mxu0 0
        %2643 = vmatpush1.bf16.msra.mxu0 0
        %2644 = vmatprep.mubr.bf16.mxu0 0
        %2645 = vmatmul.mubr.bf16.gmra.mrb[0].mxu0 %v2607
        %v2646 = vpop.f32.mrb[0].mxu0
        %v2647 = vadd.f32 0.0, %v2646
        %v2648 = vpop.f32.mrb[0].mxu0
        %v2649 = vpop.f32.mrb[0].mxu0
        %v2650 = vpop.f32.mrb[0].mxu0
        %2651 = vdwg.mxu0
        %v2653 = vsel %vm989, %v2554, 0
        %v2656 = vsel %vm1229, %v2558, 0
        %2658 = vmatprep.subr.bf16.mxu0 0
        %2659 = vmatpush1.bf16.msra.mxu0 %v2656
        %2660 = vmatprep.subr.bf16.mxu0 0
        %2661 = vmatpush1.bf16.msra.mxu0 0
        %2662 = vmatprep.subr.bf16.mxu0 0
        %2663 = vmatpush1.bf16.msra.mxu0 0
        %2664 = vmatprep.subr.bf16.mxu0 0
        %2665 = vmatpush1.bf16.msra.mxu0 0
        %2666 = vmatprep.subr.bf16.mxu0 0
        %2667 = vmatpush1.bf16.msra.mxu0 0
        %2668 = vmatprep.subr.bf16.mxu0 0
        %2669 = vmatpush1.bf16.msra.mxu0 0
        %2670 = vmatprep.subr.bf16.mxu0 0
        %2671 = vmatpush1.bf16.msra.mxu0 0
        %2672 = vmatprep.subr.bf16.mxu0 0
        %2673 = vmatpush1.bf16.msra.mxu0 0
        %2674 = vmatprep.subr.bf16.mxu0 0
        %2675 = vmatpush1.bf16.msra.mxu0 0
        %2676 = vmatprep.subr.bf16.mxu0 0
        %2677 = vmatpush1.bf16.msra.mxu0 0
        %2678 = vmatprep.subr.bf16.mxu0 0
        %2679 = vmatpush1.bf16.msra.mxu0 0
        %2680 = vmatprep.subr.bf16.mxu0 0
        %2681 = vmatpush1.bf16.msra.mxu0 0
        %2682 = vmatprep.subr.bf16.mxu0 0
        %2683 = vmatpush1.bf16.msra.mxu0 0
        %2684 = vmatprep.subr.bf16.mxu0 0
        %2685 = vmatpush1.bf16.msra.mxu0 0
        %2686 = vmatprep.subr.bf16.mxu0 0
        %2687 = vmatpush1.bf16.msra.mxu0 0
        %2688 = vmatprep.subr.bf16.mxu0 0
        %2689 = vmatpush1.bf16.msra.mxu0 0
        %2690 = vmatprep.mubr.bf16.mxu0 0
        %2691 = vmatmul.mubr.bf16.gmra.mrb[0].mxu0 %v2653
        %v2692 = vpop.f32.mrb[0].mxu0
        %v2693 = vadd.f32 0.0, %v2692
        %v2694 = vpop.f32.mrb[0].mxu0
        %v2695 = vpop.f32.mrb[0].mxu0
        %v2696 = vpop.f32.mrb[0].mxu0
        %2697 = vdwg.mxu0
        %v2699 = vsel %vm989, %v2555, 0
        %v2702 = vsel %vm1229, %v2559, 0
        %2704 = vmatprep.subr.bf16.mxu0 0
        %2705 = vmatpush1.bf16.msra.mxu0 %v2702
        %2706 = vmatprep.subr.bf16.mxu0 0
        %2707 = vmatpush1.bf16.msra.mxu0 0
        %2708 = vmatprep.subr.bf16.mxu0 0
        %2709 = vmatpush1.bf16.msra.mxu0 0
        %2710 = vmatprep.subr.bf16.mxu0 0
        %2711 = vmatpush1.bf16.msra.mxu0 0
        %2712 = vmatprep.subr.bf16.mxu0 0
        %2713 = vmatpush1.bf16.msra.mxu0 0
        %2714 = vmatprep.subr.bf16.mxu0 0
        %2715 = vmatpush1.bf16.msra.mxu0 0
        %2716 = vmatprep.subr.bf16.mxu0 0
        %2717 = vmatpush1.bf16.msra.mxu0 0
        %2718 = vmatprep.subr.bf16.mxu0 0
        %2719 = vmatpush1.bf16.msra.mxu0 0
        %2720 = vmatprep.subr.bf16.mxu0 0
        %2721 = vmatpush1.bf16.msra.mxu0 0
        %2722 = vmatprep.subr.bf16.mxu0 0
        %2723 = vmatpush1.bf16.msra.mxu0 0
        %2724 = vmatprep.subr.bf16.mxu0 0
        %2725 = vmatpush1.bf16.msra.mxu0 0
        %2726 = vmatprep.subr.bf16.mxu0 0
        %2727 = vmatpush1.bf16.msra.mxu0 0
        %2728 = vmatprep.subr.bf16.mxu0 0
        %2729 = vmatpush1.bf16.msra.mxu0 0
        %2730 = vmatprep.subr.bf16.mxu0 0
        %2731 = vmatpush1.bf16.msra.mxu0 0
        %2732 = vmatprep.subr.bf16.mxu0 0
        %2733 = vmatpush1.bf16.msra.mxu0 0
        %2734 = vmatprep.subr.bf16.mxu0 0
        %2735 = vmatpush1.bf16.msra.mxu0 0
        %2736 = vmatprep.mubr.bf16.mxu0 0
        %2737 = vmatmul.mubr.bf16.gmra.mrb[0].mxu0 %v2699
        %v2738 = vpop.f32.mrb[0].mxu0
        %v2739 = vadd.f32 0.0, %v2738
        %v2740 = vpop.f32.mrb[0].mxu0
        %v2741 = vpop.f32.mrb[0].mxu0
        %v2742 = vpop.f32.mrb[0].mxu0
        %2743 = vdwg.mxu0
        %v2744 = vpack.c.bf16 %v2601, %v2601
        %v2745 = vpack.c.bf16 %v2647, %v2647
        %v2746 = vpack.c.bf16 %v2693, %v2693
        %v2747 = vpack.c.bf16 %v2739, %v2739
        %s2748 = scalar_lea.vmem %s6, 32
        %v2749 = vld [vmem:[%s2748] sm:$0xff]
        %v2750 = vld [vmem:[%s2748 + $0x8] sm:$0xff]
        %v2751 = vld [vmem:[%s2748 + $0x10] sm:$0xff]
        %v2752 = vld [vmem:[%s2748 + $0x18] sm:$0xff]
        %v2753 = vpack.c.bf16 %v2749, %v2749
        %v2754 = vpack.c.bf16 %v2750, %v2750
        %v2755 = vpack.c.bf16 %v2751, %v2751
        %v2756 = vpack.c.bf16 %v2752, %v2752
        %v2758 = vsel %vm989, %v2744, 0
        %v2761 = vsel %vm1229, %v2753, 0
        %2763 = vmatprep.subr.bf16.mxu0 0
        %2764 = vmatpush1.bf16.msra.mxu0 %v2761
        %2765 = vmatprep.subr.bf16.mxu0 0
        %2766 = vmatpush1.bf16.msra.mxu0 0
        %2767 = vmatprep.subr.bf16.mxu0 0
        %2768 = vmatpush1.bf16.msra.mxu0 0
        %2769 = vmatprep.subr.bf16.mxu0 0
        %2770 = vmatpush1.bf16.msra.mxu0 0
        %2771 = vmatprep.subr.bf16.mxu0 0
        %2772 = vmatpush1.bf16.msra.mxu0 0
        %2773 = vmatprep.subr.bf16.mxu0 0
        %2774 = vmatpush1.bf16.msra.mxu0 0
        %2775 = vmatprep.subr.bf16.mxu0 0
        %2776 = vmatpush1.bf16.msra.mxu0 0
        %2777 = vmatprep.subr.bf16.mxu0 0
        %2778 = vmatpush1.bf16.msra.mxu0 0
        %2779 = vmatprep.subr.bf16.mxu0 0
        %2780 = vmatpush1.bf16.msra.mxu0 0
        %2781 = vmatprep.subr.bf16.mxu0 0
        %2782 = vmatpush1.bf16.msra.mxu0 0
        %2783 = vmatprep.subr.bf16.mxu0 0
        %2784 = vmatpush1.bf16.msra.mxu0 0
        %2785 = vmatprep.subr.bf16.mxu0 0
        %2786 = vmatpush1.bf16.msra.mxu0 0
        %2787 = vmatprep.subr.bf16.mxu0 0
        %2788 = vmatpush1.bf16.msra.mxu0 0
        %2789 = vmatprep.subr.bf16.mxu0 0
        %2790 = vmatpush1.bf16.msra.mxu0 0
        %2791 = vmatprep.subr.bf16.mxu0 0
        %2792 = vmatpush1.bf16.msra.mxu0 0
        %2793 = vmatprep.subr.bf16.mxu0 0
        %2794 = vmatpush1.bf16.msra.mxu0 0
        %2795 = vmatprep.mubr.bf16.mxu0 0
        %2796 = vmatmul.mubr.bf16.gmra.mrb[0].mxu0 %v2758
        %v2797 = vpop.f32.mrb[0].mxu0
        %v2798 = vadd.f32 0.0, %v2797
        %v2799 = vpop.f32.mrb[0].mxu0
        %v2800 = vpop.f32.mrb[0].mxu0
        %v2801 = vpop.f32.mrb[0].mxu0
        %2802 = vdwg.mxu0
        %v2804 = vsel %vm989, %v2745, 0
        %v2807 = vsel %vm1229, %v2754, 0
        %2809 = vmatprep.subr.bf16.mxu0 0
        %2810 = vmatpush1.bf16.msra.mxu0 %v2807
        %2811 = vmatprep.subr.bf16.mxu0 0
        %2812 = vmatpush1.bf16.msra.mxu0 0
        %2813 = vmatprep.subr.bf16.mxu0 0
        %2814 = vmatpush1.bf16.msra.mxu0 0
        %2815 = vmatprep.subr.bf16.mxu0 0
        %2816 = vmatpush1.bf16.msra.mxu0 0
        %2817 = vmatprep.subr.bf16.mxu0 0
        %2818 = vmatpush1.bf16.msra.mxu0 0
        %2819 = vmatprep.subr.bf16.mxu0 0
        %2820 = vmatpush1.bf16.msra.mxu0 0
        %2821 = vmatprep.subr.bf16.mxu0 0
        %2822 = vmatpush1.bf16.msra.mxu0 0
        %2823 = vmatprep.subr.bf16.mxu0 0
        %2824 = vmatpush1.bf16.msra.mxu0 0
        %2825 = vmatprep.subr.bf16.mxu0 0
        %2826 = vmatpush1.bf16.msra.mxu0 0
        %2827 = vmatprep.subr.bf16.mxu0 0
        %2828 = vmatpush1.bf16.msra.mxu0 0
        %2829 = vmatprep.subr.bf16.mxu0 0
        %2830 = vmatpush1.bf16.msra.mxu0 0
        %2831 = vmatprep.subr.bf16.mxu0 0
        %2832 = vmatpush1.bf16.msra.mxu0 0
        %2833 = vmatprep.subr.bf16.mxu0 0
        %2834 = vmatpush1.bf16.msra.mxu0 0
        %2835 = vmatprep.subr.bf16.mxu0 0
        %2836 = vmatpush1.bf16.msra.mxu0 0
        %2837 = vmatprep.subr.bf16.mxu0 0
        %2838 = vmatpush1.bf16.msra.mxu0 0
        %2839 = vmatprep.subr.bf16.mxu0 0
        %2840 = vmatpush1.bf16.msra.mxu0 0
        %2841 = vmatprep.mubr.bf16.mxu0 0
        %2842 = vmatmul.mubr.bf16.gmra.mrb[0].mxu0 %v2804
        %v2843 = vpop.f32.mrb[0].mxu0
        %v2844 = vadd.f32 0.0, %v2843
        %v2845 = vpop.f32.mrb[0].mxu0
        %v2846 = vpop.f32.mrb[0].mxu0
        %v2847 = vpop.f32.mrb[0].mxu0
        %2848 = vdwg.mxu0
        %v2850 = vsel %vm989, %v2746, 0
        %v2853 = vsel %vm1229, %v2755, 0
        %2855 = vmatprep.subr.bf16.mxu0 0
        %2856 = vmatpush1.bf16.msra.mxu0 %v2853
        %2857 = vmatprep.subr.bf16.mxu0 0
        %2858 = vmatpush1.bf16.msra.mxu0 0
        %2859 = vmatprep.subr.bf16.mxu0 0
        %2860 = vmatpush1.bf16.msra.mxu0 0
        %2861 = vmatprep.subr.bf16.mxu0 0
        %2862 = vmatpush1.bf16.msra.mxu0 0
        %2863 = vmatprep.subr.bf16.mxu0 0
        %2864 = vmatpush1.bf16.msra.mxu0 0
        %2865 = vmatprep.subr.bf16.mxu0 0
        %2866 = vmatpush1.bf16.msra.mxu0 0
        %2867 = vmatprep.subr.bf16.mxu0 0
        %2868 = vmatpush1.bf16.msra.mxu0 0
        %2869 = vmatprep.subr.bf16.mxu0 0
        %2870 = vmatpush1.bf16.msra.mxu0 0
        %2871 = vmatprep.subr.bf16.mxu0 0
        %2872 = vmatpush1.bf16.msra.mxu0 0
        %2873 = vmatprep.subr.bf16.mxu0 0
        %2874 = vmatpush1.bf16.msra.mxu0 0
        %2875 = vmatprep.subr.bf16.mxu0 0
        %2876 = vmatpush1.bf16.msra.mxu0 0
        %2877 = vmatprep.subr.bf16.mxu0 0
        %2878 = vmatpush1.bf16.msra.mxu0 0
        %2879 = vmatprep.subr.bf16.mxu0 0
        %2880 = vmatpush1.bf16.msra.mxu0 0
        %2881 = vmatprep.subr.bf16.mxu0 0
        %2882 = vmatpush1.bf16.msra.mxu0 0
        %2883 = vmatprep.subr.bf16.mxu0 0
        %2884 = vmatpush1.bf16.msra.mxu0 0
        %2885 = vmatprep.subr.bf16.mxu0 0
        %2886 = vmatpush1.bf16.msra.mxu0 0
        %2887 = vmatprep.mubr.bf16.mxu0 0
        %2888 = vmatmul.mubr.bf16.gmra.mrb[0].mxu0 %v2850
        %v2889 = vpop.f32.mrb[0].mxu0
        %v2890 = vadd.f32 0.0, %v2889
        %v2891 = vpop.f32.mrb[0].mxu0
        %v2892 = vpop.f32.mrb[0].mxu0
        %v2893 = vpop.f32.mrb[0].mxu0
        %2894 = vdwg.mxu0
        %v2896 = vsel %vm989, %v2747, 0
        %v2899 = vsel %vm1229, %v2756, 0
        %2901 = vmatprep.subr.bf16.mxu0 0
        %2902 = vmatpush1.bf16.msra.mxu0 %v2899
        %2903 = vmatprep.subr.bf16.mxu0 0
        %2904 = vmatpush1.bf16.msra.mxu0 0
        %2905 = vmatprep.subr.bf16.mxu0 0
        %2906 = vmatpush1.bf16.msra.mxu0 0
        %2907 = vmatprep.subr.bf16.mxu0 0
        %2908 = vmatpush1.bf16.msra.mxu0 0
        %2909 = vmatprep.subr.bf16.mxu0 0
        %2910 = vmatpush1.bf16.msra.mxu0 0
        %2911 = vmatprep.subr.bf16.mxu0 0
        %2912 = vmatpush1.bf16.msra.mxu0 0
        %2913 = vmatprep.subr.bf16.mxu0 0
        %2914 = vmatpush1.bf16.msra.mxu0 0
        %2915 = vmatprep.subr.bf16.mxu0 0
        %2916 = vmatpush1.bf16.msra.mxu0 0
        %2917 = vmatprep.subr.bf16.mxu0 0
        %2918 = vmatpush1.bf16.msra.mxu0 0
        %2919 = vmatprep.subr.bf16.mxu0 0
        %2920 = vmatpush1.bf16.msra.mxu0 0
        %2921 = vmatprep.subr.bf16.mxu0 0
        %2922 = vmatpush1.bf16.msra.mxu0 0
        %2923 = vmatprep.subr.bf16.mxu0 0
        %2924 = vmatpush1.bf16.msra.mxu0 0
        %2925 = vmatprep.subr.bf16.mxu0 0
        %2926 = vmatpush1.bf16.msra.mxu0 0
        %2927 = vmatprep.subr.bf16.mxu0 0
        %2928 = vmatpush1.bf16.msra.mxu0 0
        %2929 = vmatprep.subr.bf16.mxu0 0
        %2930 = vmatpush1.bf16.msra.mxu0 0
        %2931 = vmatprep.subr.bf16.mxu0 0
        %2932 = vmatpush1.bf16.msra.mxu0 0
        %2933 = vmatprep.mubr.bf16.mxu0 0
        %2934 = vmatmul.mubr.bf16.gmra.mrb[0].mxu0 %v2896
        %v2935 = vpop.f32.mrb[0].mxu0
        %v2936 = vadd.f32 0.0, %v2935
        %v2937 = vpop.f32.mrb[0].mxu0
        %v2938 = vpop.f32.mrb[0].mxu0
        %v2939 = vpop.f32.mrb[0].mxu0
        %2940 = vdwg.mxu0
        %v2941 = vsel %vm409, %v2798, 0.0
        %v2942 = vsel %vm409, %v2844, 0.0
        %v2943 = vadd.f32 %v2941, %v2942
        %v2944 = vsel %vm409, %v2890, 0.0
        %v2945 = vadd.f32 %v2943, %v2944
        %v2946 = vsel %vm409, %v2936, 0.0
        %v2947 = vadd.f32 %v2945, %v2946
        %v2948 = vadd.f32 %v1739, %v2947
        %s2949 = scalar_lea.vmem %s7, 1
        %v2950 = vld [vmem:[%s2949] sm:$0x1]
        %v2951 = vmul.f32 %v2948, %v2948
        %v2952 = vsel %vm409, %v2951, 0.0
        %2953 = vadd.xlane.f32.xlu0 %v2952
        %v2954 = vpop.xlane.xlu0 %2953
        %v2955 = vmul.f32 %v2954, %v413
        %v2956 = vadd.f32 %v2955, 1e-06
        %v2957 = vrsqrt.pop %v2956
        %v2958 = vmul.f32 %v2948, %v2957
        %v2960 = vlaneseq
        %v2961 = vshrl.u32 %v2960, 7
        %v2962 = vsub.s32 0, %v2961
        %v2963 = vrot.slane %v2950, %v2962
        %v2965 = vmul.f32 %v2958, %v2963
        %v2966 = vpack.c.bf16 %v2965, %v2965
        %s2967 = scalar_lea.vmem %s8, 32
        %v2968 = vld [vmem:[%s2967] sm:$0xff]
        %v2969 = vld [vmem:[%s2967 + $0x8] sm:$0xff]
        %v2970 = vld [vmem:[%s2967 + $0x10] sm:$0xff]
        %v2971 = vld [vmem:[%s2967 + $0x18] sm:$0xff]
        %v2972 = vpack.c.bf16 %v2969, %v2968
        %v2973 = vpack.c.bf16 %v2971, %v2970
        %v2975 = vsel %vm409, %v2966, 0
        %2977 = vmatprep.subr.bf16.mxu0 0
        %2978 = vmatpush1.bf16.msra.mxu0 %v2972
        %2979 = vmatprep.subr.bf16.mxu0 0
        %2980 = vmatpush1.bf16.msra.mxu0 %v2973
        %2981 = vmatprep.subr.bf16.mxu0 0
        %2982 = vmatpush1.bf16.msra.mxu0 0
        %2983 = vmatprep.subr.bf16.mxu0 0
        %2984 = vmatpush1.bf16.msra.mxu0 0
        %2985 = vmatprep.subr.bf16.mxu0 0
        %2986 = vmatpush1.bf16.msra.mxu0 0
        %2987 = vmatprep.subr.bf16.mxu0 0
        %2988 = vmatpush1.bf16.msra.mxu0 0
        %2989 = vmatprep.subr.bf16.mxu0 0
        %2990 = vmatpush1.bf16.msra.mxu0 0
        %2991 = vmatprep.subr.bf16.mxu0 0
        %2992 = vmatpush1.bf16.msra.mxu0 0
        %2993 = vmatprep.subr.bf16.mxu0 0
        %2994 = vmatpush1.bf16.msra.mxu0 0
        %2995 = vmatprep.subr.bf16.mxu0 0
        %2996 = vmatpush1.bf16.msra.mxu0 0
        %2997 = vmatprep.subr.bf16.mxu0 0
        %2998 = vmatpush1.bf16.msra.mxu0 0
        %2999 = vmatprep.subr.bf16.mxu0 0
        %3000 = vmatpush1.bf16.msra.mxu0 0
        %3001 = vmatprep.subr.bf16.mxu0 0
        %3002 = vmatpush1.bf16.msra.mxu0 0
        %3003 = vmatprep.subr.bf16.mxu0 0
        %3004 = vmatpush1.bf16.msra.mxu0 0
        %3005 = vmatprep.subr.bf16.mxu0 0
        %3006 = vmatpush1.bf16.msra.mxu0 0
        %3007 = vmatprep.subr.bf16.mxu0 0
        %3008 = vmatpush1.bf16.msra.mxu0 0
        %3009 = vmatprep.mubr.bf16.mxu0 0
        %3010 = vmatmul.mubr.bf16.gmra.mrb[0].mxu0 %v2975
        %v3011 = vpop.f32.mrb[0].mxu0
        %v3012 = vadd.f32 0.0, %v3011
        %v3013 = vpop.f32.mrb[0].mxu0
        %v3014 = vpop.f32.mrb[0].mxu0
        %v3015 = vpop.f32.mrb[0].mxu0
        %3016 = vdwg.mxu0
        %v3017 = vmax.f32 %v3012, 0.0
        %v3018 = vpack.c.bf16 %v3017, %v3017
        %s3019 = scalar_lea.vmem %s9, 64
        %v3020 = vld [vmem:[%s3019] sm:$0xff]
        %v3021 = vld [vmem:[%s3019 + $0x8] sm:$0xff]
        %v3022 = vld [vmem:[%s3019 + $0x10] sm:$0xff]
        %v3023 = vld [vmem:[%s3019 + $0x18] sm:$0xff]
        %v3024 = vld [vmem:[%s3019 + $0x20] sm:$0xff]
        %v3025 = vld [vmem:[%s3019 + $0x28] sm:$0xff]
        %v3026 = vld [vmem:[%s3019 + $0x30] sm:$0xff]
        %v3027 = vld [vmem:[%s3019 + $0x38] sm:$0xff]
        %v3028 = vpack.c.bf16 %v3021, %v3020
        %v3029 = vpack.c.bf16 %v3023, %v3022
        %v3030 = vpack.c.bf16 %v3025, %v3024
        %v3031 = vpack.c.bf16 %v3027, %v3026
        %v3033 = vsel %vm1695, %v3018, 0
        %3035 = vmatprep.subr.bf16.mxu0 0
        %3036 = vmatpush1.bf16.msra.mxu0 %v3028
        %3037 = vmatprep.subr.bf16.mxu0 0
        %3038 = vmatpush1.bf16.msra.mxu0 %v3029
        %3039 = vmatprep.subr.bf16.mxu0 0
        %3040 = vmatpush1.bf16.msra.mxu0 %v3030
        %3041 = vmatprep.subr.bf16.mxu0 0
        %3042 = vmatpush1.bf16.msra.mxu0 %v3031
        %3043 = vmatprep.subr.bf16.mxu0 0
        %3044 = vmatpush1.bf16.msra.mxu0 0
        %3045 = vmatprep.subr.bf16.mxu0 0
        %3046 = vmatpush1.bf16.msra.mxu0 0
        %3047 = vmatprep.subr.bf16.mxu0 0
        %3048 = vmatpush1.bf16.msra.mxu0 0
        %3049 = vmatprep.subr.bf16.mxu0 0
        %3050 = vmatpush1.bf16.msra.mxu0 0
        %3051 = vmatprep.subr.bf16.mxu0 0
        %3052 = vmatpush1.bf16.msra.mxu0 0
        %3053 = vmatprep.subr.bf16.mxu0 0
        %3054 = vmatpush1.bf16.msra.mxu0 0
        %3055 = vmatprep.subr.bf16.mxu0 0
        %3056 = vmatpush1.bf16.msra.mxu0 0
        %3057 = vmatprep.subr.bf16.mxu0 0
        %3058 = vmatpush1.bf16.msra.mxu0 0
        %3059 = vmatprep.subr.bf16.mxu0 0
        %3060 = vmatpush1.bf16.msra.mxu0 0
        %3061 = vmatprep.subr.bf16.mxu0 0
        %3062 = vmatpush1.bf16.msra.mxu0 0
        %3063 = vmatprep.subr.bf16.mxu0 0
        %3064 = vmatpush1.bf16.msra.mxu0 0
        %3065 = vmatprep.subr.bf16.mxu0 0
        %3066 = vmatpush1.bf16.msra.mxu0 0
        %3067 = vmatprep.mubr.bf16.mxu0 0
        %3068 = vmatmul.mubr.bf16.gmra.mrb[0].mxu0 %v3033
        %v3069 = vpop.f32.mrb[0].mxu0
        %v3070 = vadd.f32 0.0, %v3069
        %v3071 = vpop.f32.mrb[0].mxu0
        %v3072 = vpop.f32.mrb[0].mxu0
        %v3073 = vpop.f32.mrb[0].mxu0
        %3074 = vdwg.mxu0
        %v3075 = vadd.f32 %v2948, %v3070
        %v3076 = vld [vmem:[%s10] sm:$0x1]
        %v3077 = vmul.f32 %v3075, %v3075
        %v3078 = vsel %vm409, %v3077, 0.0
        %3079 = vadd.xlane.f32.xlu0 %v3078
        %v3080 = vpop.xlane.xlu0 %3079
        %v3081 = vmul.f32 %v3080, %v413
        %v3082 = vadd.f32 %v3081, 1e-06
        %v3083 = vrsqrt.pop %v3082
        %v3084 = vmul.f32 %v3075, %v3083
        %v3086 = vlaneseq
        %v3087 = vshrl.u32 %v3086, 7
        %v3088 = vsub.s32 0, %v3087
        %v3089 = vrot.slane %v3076, %v3088
        %v3091 = vmul.f32 %v3084, %v3089
        %v3092 = vsel %vm409, %v3091, 0.0
        %v3093 = vrot.slane %v3092, 4
        %v3094 = vadd.f32 %v3092, %v3093
        %v3095 = vrot.slane %v3094, 2
        %v3096 = vadd.f32 %v3094, %v3095
        %v3097 = vrot.slane %v3096, 1
        %v3098 = vadd.f32 %v3096, %v3097
        %v3099 = vrcp.pop 8.0
        %v3100 = vmul.f32 %v3098, %v3099
        %vm3101 = vcmask 253952
        %3102 = vst.msk [vmem:[%s391] sm:$0x1] %vm3101, %v3100
        %s3103 = sand.u32 %s274, 1
        %s3104 = scalar_lea.sflag [#allocation3], %s3103
        %s3105 = sand.u32 %s274, 1
        %s3106 = scalar_lea.vmem [#allocation2], %s3105
        // Predicated region
        $region65: #{protein_encoder_forward.1} parent=63 // pred_check
          %p3107 = pneg %p284
        $region66: #{protein_encoder_forward.1} parent=63 // pred_check_branch
          %3109 = sbr.rel (%p3107) target = $region68
        $region67: #{protein_encoder_forward.1} parent=63 // pred_region
          %s3111 = ssub.s32 16, 16
          %3112 = vsyncadd %s3104, %s3111
          %s3113 = smul.addr %s25, 16
          %s3114 = scalar_lea.hbm %s11, %s3113
          %s3116 = sshll.u32 %s3106, 4
          %s3117 = int_to_ptr.vmem [resolvable:$true] %s3116
          %3119 = dma.vmem_to_hbm [thread:$0]  %s3117, 16, %s3114, %s3104
        $region68: #{protein_encoder_forward.1} parent=63 // pred_fallthru
          _
      $region64: #{protein_encoder_forward.1} parent=5 // pred_fallthru
        _
      %p3120 = scmp.le.s32.totalorder 2, %s20
      // Predicated region
      $region69: #{protein_encoder_forward.1} parent=5 // pred_check
        %p3121 = pneg %p3120
      $region70: #{protein_encoder_forward.1} parent=5 // pred_check_branch
        %3123 = sbr.rel (%p3121) target = $region72
      $region71: #{protein_encoder_forward.1} parent=5 // pred_region
        %s3124 = ssub.s32 %s20, 2
        // Predicated region
        $region73: #{protein_encoder_forward.1} parent=71 // pred_check
          %p3125 = pneg %p290
        $region74: #{protein_encoder_forward.1} parent=71 // pred_check_branch
          %3127 = sbr.rel (%p3125) target = $region76
        $region75: #{protein_encoder_forward.1} parent=71 // pred_region
          %s3128 = sand.u32 %s275, 1
          %s3129 = scalar_lea.sflag [#allocation3], %s3128
          %s3130 = sand.u32 %s275, 1
          %s3131 = scalar_lea.vmem [#allocation2], %s3130
          %3132 = dma.done %s3129, 16
        $region76: #{protein_encoder_forward.1} parent=71 // pred_fallthru
          _
      $region72: #{protein_encoder_forward.1} parent=5 // pred_fallthru
        _
    $region6: #{protein_encoder_forward.1} parent=1 // loop_footer
      %s24 = sadd.s32 1, %s20
    $region7: #{protein_encoder_forward.1} parent=1 // loop_footer_branch
      %19 = sbr.rel target = $region3
    $region8: #{protein_encoder_forward.1} parent=1 // loop_exit
      _
    %3133 = vsyncpa [#allocation3], 1
    %s3134 = scalar_lea.sflag [#allocation3], 1
    %3135 = vsyncpa %s3134, 1

</llo_original>
